<compile_context>
chip_gen: v5e
topology: v5e:2x2
jax: 0.10.0
libtpu: 0.0.40
codegen_flags: <defaults>
</compile_context>

<pallas_src>
import jax
import jax.numpy as jnp
from jax.experimental import pallas as pl
from jax.experimental.pallas import tpu as pltpu


def _round_up(x, m):
    return (x + m - 1) // m * m


# -----------------------------------------------------------------------------
# Fused kernel factory.
# Ref order: x, [per layer: wih_f, whh_f, b_f, wih_b, whh_b, b_b],
#            [per MLP layer: w, b], out, xpf, xpb, hs
# Gate order matches PyTorch: [i, f, g, o], packed contiguously (width 4*H,
# zero-padded up to GP = round_up(4H, 128) lanes).
# -----------------------------------------------------------------------------
def make_fused_kernel(*, num_layers, num_mlp, T, Bp, H, GP, relu_flags):
    assert len(relu_flags) == num_mlp

    def kernel(*refs):
        x_ref = refs[0]
        idx = 1
        lstm = []
        for _ in range(num_layers):
            lstm.append(refs[idx:idx + 6])
            idx += 6
        mlp = []
        for _ in range(num_mlp):
            mlp.append(refs[idx:idx + 2])
            idx += 2
        o_ref = refs[idx]
        xpf, xpb, hs = refs[idx + 1:idx + 4]

        def cell(gates, c):
            # Contiguously packed gates: intra-vreg (Bp, H) slices.
            i_g = jax.nn.sigmoid(gates[:, 0 * H:1 * H])
            f_g = jax.nn.sigmoid(gates[:, 1 * H:2 * H])
            g_g = jnp.tanh(gates[:, 2 * H:3 * H])
            o_g = jax.nn.sigmoid(gates[:, 3 * H:4 * H])
            c_new = f_g * c + i_g * g_g
            h_new = o_g * jnp.tanh(c_new)
            return h_new, c_new

        for layer in range(num_layers):
            wih_f, whh_f, b_f, wih_b, whh_b, b_b = lstm[layer]

            # Hoisted input projection (+ bias) for the WHOLE sequence.
            # Layer 0 consumes the embedded input; layer>0 consumes the merged
            # (fwd|bwd) bf16 h-sequence as ONE K=2H matmul per direction.
            if layer == 0:
                xin = x_ref[...]                                   # (T*Bp, E) bf16
            else:
                xin = hs[...]                                      # (T*Bp, 2H) bf16
            # Store fwd before computing bwd -> bounded vreg pressure.
            xpf[...] = jnp.dot(xin, wih_f[...],
                               preferred_element_type=jnp.float32) + b_f[...]
            xpb[...] = jnp.dot(xin, wih_b[...],
                               preferred_element_type=jnp.float32) + b_b[...]

            # Hoist the recurrent weight loads out of the unrolled loop.
            whh_f_v = whh_f[...]
            whh_b_v = whh_b[...]

            # Fused bidirectional recurrence, fully unrolled (T small/static);
            # h/c live in registers, only one bf16 h tile is written per step
            # per direction.  The bf16 cast of h is reused as next-step MXU
            # operand AND the hseq store value.
            hf_bf = jnp.zeros((Bp, H), jnp.bfloat16)
            hb_bf = jnp.zeros((Bp, H), jnp.bfloat16)
            cf = jnp.zeros((Bp, H), jnp.float32)
            cb = jnp.zeros((Bp, H), jnp.float32)
            for t in range(T):
                tb = T - 1 - t
                g_f = xpf[t * Bp:(t + 1) * Bp, :] + jnp.dot(
                    hf_bf, whh_f_v, preferred_element_type=jnp.float32)
                g_b = xpb[tb * Bp:(tb + 1) * Bp, :] + jnp.dot(
                    hb_bf, whh_b_v, preferred_element_type=jnp.float32)
                hf, cf = cell(g_f, cf)
                hb, cb = cell(g_b, cb)
                hf_bf = hf.astype(jnp.bfloat16)
                hb_bf = hb.astype(jnp.bfloat16)
                hs[t * Bp:(t + 1) * Bp, 0:H] = hf_bf
                hs[tb * Bp:(tb + 1) * Bp, H:2 * H] = hb_bf

        # Direction sum + MLP head + output projection, all VMEM-resident.
        hs_v = hs[...]                                             # (T*Bp, 2H) bf16
        y = hs_v[:, 0:H].astype(jnp.float32) + hs_v[:, H:2 * H].astype(jnp.float32)
        for i in range(num_mlp):
            w_ref, b_ref = mlp[i]
            y = jnp.dot(y.astype(jnp.bfloat16), w_ref[...],
                        preferred_element_type=jnp.float32) + b_ref[...]
            if relu_flags[i]:
                y = jnp.maximum(y, 0.0)
        o_ref[...] = y.astype(o_ref.dtype)                         # lane-dense store

    return kernel


# -----------------------------------------------------------------------------
# Forward pass wrapper.
# -----------------------------------------------------------------------------
def vanilla_rnn_ner_forward(X_ids, kp, *, hidden, num_labels):
    B, T = X_ids.shape
    H = kp["h"]
    GP = kp["gp"]
    NLp = kp["nl_pad"]
    Bp = _round_up(B, 16)           # bf16 sublane tile for the recurrent LHS
    num_layers = len(kp["lstm_layers"])

    # Embedding lookup (glue; gather has no dense Pallas hot path at this size).
    emb = jnp.take(kp["embedding"], X_ids, axis=0)                 # (B, T, E)
    x = jnp.transpose(emb, (1, 0, 2))                              # (T, B, E) time-major
    x = jnp.pad(x, ((0, 0), (0, Bp - B), (0, 0)))                  # pad batch -> sublanes
    x = x.reshape(T * Bp, -1).astype(jnp.bfloat16)

    flat_lstm = [a for layer in kp["lstm_layers"] for a in layer]
    flat_mlp = []
    relu_flags = []
    for (w, b, relu) in kp["mlp_layers"]:
        flat_mlp += [w, b]
        relu_flags.append(relu)

    kernel = make_fused_kernel(num_layers=num_layers, num_mlp=len(relu_flags),
                               T=T, Bp=Bp, H=H, GP=GP,
                               relu_flags=tuple(relu_flags))
    n_in = 1 + len(flat_lstm) + len(flat_mlp)

    out = pl.pallas_call(
        kernel,
        out_shape=jax.ShapeDtypeStruct((T * Bp, NLp), jnp.float32),
        in_specs=[pl.BlockSpec(memory_space=pltpu.MemorySpace.VMEM)] * n_in,
        out_specs=pl.BlockSpec(memory_space=pltpu.MemorySpace.VMEM),
        scratch_shapes=[
            pltpu.VMEM((T * Bp, GP), jnp.float32),        # hoisted proj, fwd
            pltpu.VMEM((T * Bp, GP), jnp.float32),        # hoisted proj, bwd
            pltpu.VMEM((T * Bp, 2 * H), jnp.bfloat16),    # merged h seq [fwd|bwd]
        ],
        compiler_params=pltpu.CompilerParams(
            vmem_limit_bytes=32 * 1024 * 1024),           # explicit VMEM budget
    )(x, *flat_lstm, *flat_mlp)

    out = out.reshape(T, Bp, NLp)[:, :B, :num_labels]              # strip padding
    return jnp.transpose(out, (1, 0, 2))                           # (B, T, num_labels)


# -----------------------------------------------------------------------------
# Deterministic parameter construction (synthetic; mirrors PyTorch layouts).
# -----------------------------------------------------------------------------
def init_params(key, *, vocab_size_words, embed_size, hidden, num_layers,
                linear_hidden_sizes, vocab_size_label):
    def uniform(k, shape, scale):
        return jax.random.uniform(k, shape, jnp.float32, -scale, scale)

    keys = iter(jax.random.split(key, 64))
    k = 1.0 / float(hidden) ** 0.5

    params = {"embedding": jax.random.normal(
        next(keys), (vocab_size_words, embed_size), jnp.float32)}

    lstm_layers = []
    for layer in range(num_layers):
        d_in = embed_size if layer == 0 else 2 * hidden
        dirs = []
        for _direction in range(2):
            w_ih = uniform(next(keys), (d_in, 4 * hidden), k)       # (D_in, 4H)
            w_hh = uniform(next(keys), (hidden, 4 * hidden), k)     # (H, 4H)
            b_ih = uniform(next(keys), (1, 4 * hidden), k)
            b_hh = uniform(next(keys), (1, 4 * hidden), k)
            dirs.append((w_ih, w_hh, b_ih + b_hh))
        lstm_layers.append(tuple(dirs))
    params["lstm_layers"] = lstm_layers

    sizes = [hidden] + list(linear_hidden_sizes)
    mlp = []
    for i in range(len(sizes) - 1):
        s = 1.0 / float(sizes[i]) ** 0.5
        mlp.append((uniform(next(keys), (sizes[i], sizes[i + 1]), s),
                    uniform(next(keys), (1, sizes[i + 1]), s), True))  # Linear+ReLU
    s = 1.0 / float(sizes[-1]) ** 0.5
    mlp.append((uniform(next(keys), (sizes[-1], vocab_size_label), s),
                uniform(next(keys), (1, vocab_size_label), s), False))  # self.out
    params["mlp_layers"] = mlp
    return params


# -----------------------------------------------------------------------------
# Pad parameters into the kernel's lane/sublane-aligned layout.
#   * gates packed contiguously: block width 4*H, zero-padded to GP =
#     round_up(4H, 128) lanes (GP == 4H for H=32 -> no waste)
#   * layer>0 W_ih rows are already [h_fwd(H) | h_bwd(H)] -> no remapping
#   * MLP in/out widths padded to multiples of 128 (zero-filled, no leakage)
#   * matmul weights cast to bf16 (MXU), biases kept f32
# -----------------------------------------------------------------------------
def prepare_kernel_params(params, *, hidden):
    H = hidden
    GP = _round_up(4 * H, 128)
    pad = GP - 4 * H

    kp = {"embedding": params["embedding"], "h": H, "gp": GP}

    lstm_layers = []
    for dirs in params["lstm_layers"]:
        flat = []
        for (w_ih, w_hh, b) in dirs:
            w_ih_p = jnp.pad(w_ih, ((0, 0), (0, pad)))              # (D_in, GP)
            w_hh_p = jnp.pad(w_hh, ((0, 0), (0, pad)))              # (H, GP)
            b_p = jnp.pad(b, ((0, 0), (0, pad)))                    # (1, GP)
            flat += [w_ih_p.astype(jnp.bfloat16),
                     w_hh_p.astype(jnp.bfloat16),
                     b_p.astype(jnp.float32)]
        lstm_layers.append(tuple(flat))
    kp["lstm_layers"] = lstm_layers

    mlp = []
    in_real, in_pad = H, H          # MLP input is the H-wide direction sum
    for (w, b, relu) in params["mlp_layers"]:
        out_real = w.shape[1]
        out_pad = _round_up(out_real, 128)
        w_p = jnp.zeros((in_pad, out_pad), jnp.float32).at[:in_real, :out_real].set(w)
        b_p = jnp.zeros((1, out_pad), jnp.float32).at[:, :out_real].set(b)
        mlp.append((w_p.astype(jnp.bfloat16), b_p, relu))
        in_real, in_pad = out_real, out_pad
    kp["mlp_layers"] = mlp
    kp["nl_pad"] = in_pad
    return kp


if __name__ == "__main__":
    # Small, module-consistent configuration.
    VOCAB_WORDS = 50
    EMBED = 32
    HIDDEN = 32
    NUM_LAYERS = 2          # bilstm_num_layers (bilstm_dropout = 0.0)
    LINEAR_HIDDEN = [64]    # params.linear_hidden_sizes
    VOCAB_LABELS = 9
    BATCH, SEQ = 2, 8

    key = jax.random.PRNGKey(0)
    pkey, xkey = jax.random.split(key)
    params = init_params(
        pkey,
        vocab_size_words=VOCAB_WORDS,
        embed_size=EMBED,
        hidden=HIDDEN,
        num_layers=NUM_LAYERS,
        linear_hidden_sizes=LINEAR_HIDDEN,
        vocab_size_label=VOCAB_LABELS,
    )
    kparams = prepare_kernel_params(params, hidden=HIDDEN)

    X = jax.random.randint(xkey, (BATCH, SEQ), 0, VOCAB_WORDS, dtype=jnp.int32)

    logits = vanilla_rnn_ner_forward(X, kparams, hidden=HIDDEN,
                                     num_labels=VOCAB_LABELS)
    logits = jax.block_until_ready(logits)

    assert logits.shape == (BATCH, SEQ, VOCAB_LABELS)
    assert bool(jnp.all(jnp.isfinite(logits)))
    print("KERNEL_OK")
</pallas_src>

<mosaic_0001>
module attributes {stable_mosaic.version = 11 : i64} {
  func.func @kernel(%arg0: memref<128x32xbf16, #tpu.memory_space<vmem>>, %arg1: memref<32x128xbf16, #tpu.memory_space<vmem>>, %arg2: memref<32x128xbf16, #tpu.memory_space<vmem>>, %arg3: memref<1x128xf32, #tpu.memory_space<vmem>>, %arg4: memref<32x128xbf16, #tpu.memory_space<vmem>>, %arg5: memref<32x128xbf16, #tpu.memory_space<vmem>>, %arg6: memref<1x128xf32, #tpu.memory_space<vmem>>, %arg7: memref<64x128xbf16, #tpu.memory_space<vmem>>, %arg8: memref<32x128xbf16, #tpu.memory_space<vmem>>, %arg9: memref<1x128xf32, #tpu.memory_space<vmem>>, %arg10: memref<64x128xbf16, #tpu.memory_space<vmem>>, %arg11: memref<32x128xbf16, #tpu.memory_space<vmem>>, %arg12: memref<1x128xf32, #tpu.memory_space<vmem>>, %arg13: memref<32x128xbf16, #tpu.memory_space<vmem>>, %arg14: memref<1x128xf32, #tpu.memory_space<vmem>>, %arg15: memref<128x128xbf16, #tpu.memory_space<vmem>>, %arg16: memref<1x128xf32, #tpu.memory_space<vmem>>, %arg17: memref<128x128xf32, #tpu.memory_space<vmem>>, %arg18: memref<128x128xf32, #tpu.memory_space<vmem>>, %arg19: memref<128x128xf32, #tpu.memory_space<vmem>>, %arg20: memref<128x64xbf16, #tpu.memory_space<vmem>>) attributes {dimension_semantics = [], scalar_prefetch = 0 : i64, scratch_operands = 3 : i64, tpu.core_type = #tpu.core_type<tc>} {
    %c0 = arith.constant 0 : index
    %c0_0 = arith.constant 0 : index
    %0 = vector.load %arg0[%c0, %c0_0] : memref<128x32xbf16, #tpu.memory_space<vmem>>, vector<128x32xbf16>
    %c0_1 = arith.constant 0 : index
    %c0_2 = arith.constant 0 : index
    %1 = vector.load %arg1[%c0_1, %c0_2] : memref<32x128xbf16, #tpu.memory_space<vmem>>, vector<32x128xbf16>
    %cst = arith.constant dense<0.000000e+00> : vector<128x128xf32>
    %2 = tpu.matmul %0, %1, %cst {dimension_numbers = #tpu.dot_dimension_numbers<[1], [0], [0], [1], [0, 0, 1, 1], [], []>} : vector<128x32xbf16>, vector<32x128xbf16>, vector<128x128xf32> -> vector<128x128xf32>
    %c0_3 = arith.constant 0 : index
    %c0_4 = arith.constant 0 : index
    %3 = vector.load %arg3[%c0_3, %c0_4] : memref<1x128xf32, #tpu.memory_space<vmem>>, vector<1x128xf32>
    %4 = vector.broadcast %3 : vector<1x128xf32> to vector<128x128xf32>
    %5 = arith.addf %2, %4 : vector<128x128xf32>
    %c0_5 = arith.constant 0 : index
    %c0_6 = arith.constant 0 : index
    %6 = vector.load %arg18[%c0_5, %c0_6] : memref<128x128xf32, #tpu.memory_space<vmem>>, vector<128x128xf32>
    tpu.vector_store %arg18[%c0_5, %c0_6], %5 {strides = array<i32>} : memref<128x128xf32, #tpu.memory_space<vmem>>, vector<128x128xf32>,
    %c0_7 = arith.constant 0 : index
    %c0_8 = arith.constant 0 : index
    %7 = vector.load %arg4[%c0_7, %c0_8] : memref<32x128xbf16, #tpu.memory_space<vmem>>, vector<32x128xbf16>
    %cst_9 = arith.constant dense<0.000000e+00> : vector<128x128xf32>
    %8 = tpu.matmul %0, %7, %cst_9 {dimension_numbers = #tpu.dot_dimension_numbers<[1], [0], [0], [1], [0, 0, 1, 1], [], []>} : vector<128x32xbf16>, vector<32x128xbf16>, vector<128x128xf32> -> vector<128x128xf32>
    %c0_10 = arith.constant 0 : index
    %c0_11 = arith.constant 0 : index
    %9 = vector.load %arg6[%c0_10, %c0_11] : memref<1x128xf32, #tpu.memory_space<vmem>>, vector<1x128xf32>
    %10 = vector.broadcast %9 : vector<1x128xf32> to vector<128x128xf32>
    %11 = arith.addf %8, %10 : vector<128x128xf32>
    %c0_12 = arith.constant 0 : index
    %c0_13 = arith.constant 0 : index
    %12 = vector.load %arg19[%c0_12, %c0_13] : memref<128x128xf32, #tpu.memory_space<vmem>>, vector<128x128xf32>
    tpu.vector_store %arg19[%c0_12, %c0_13], %11 {strides = array<i32>} : memref<128x128xf32, #tpu.memory_space<vmem>>, vector<128x128xf32>,
    %c0_14 = arith.constant 0 : index
    %c0_15 = arith.constant 0 : index
    %13 = vector.load %arg2[%c0_14, %c0_15] : memref<32x128xbf16, #tpu.memory_space<vmem>>, vector<32x128xbf16>
    %c0_16 = arith.constant 0 : index
    %c0_17 = arith.constant 0 : index
    %14 = vector.load %arg5[%c0_16, %c0_17] : memref<32x128xbf16, #tpu.memory_space<vmem>>, vector<32x128xbf16>
    %cst_18 = arith.constant 0.000000e+00 : bf16
    %15 = vector.broadcast %cst_18 : bf16 to vector<16x32xbf16>
    %cst_19 = arith.constant 0.000000e+00 : bf16
    %16 = vector.broadcast %cst_19 : bf16 to vector<16x32xbf16>
    %cst_20 = arith.constant 0.000000e+00 : f32
    %17 = vector.broadcast %cst_20 : f32 to vector<16x32xf32>
    %cst_21 = arith.constant 0.000000e+00 : f32
    %18 = vector.broadcast %cst_21 : f32 to vector<16x32xf32>
    %c0_22 = arith.constant 0 : index
    %c0_23 = arith.constant 0 : index
    %19 = vector.load %arg18[%c0_22, %c0_23] : memref<128x128xf32, #tpu.memory_space<vmem>>, vector<16x128xf32>
    %cst_24 = arith.constant dense<0.000000e+00> : vector<16x128xf32>
    %20 = tpu.matmul %15, %13, %cst_24 {dimension_numbers = #tpu.dot_dimension_numbers<[1], [0], [0], [1], [0, 0, 1, 1], [], []>} : vector<16x32xbf16>, vector<32x128xbf16>, vector<16x128xf32> -> vector<16x128xf32>
    %21 = arith.addf %19, %20 : vector<16x128xf32>
    %c112 = arith.constant 112 : index
    %c0_25 = arith.constant 0 : index
    %22 = vector.load %arg19[%c112, %c0_25] : memref<128x128xf32, #tpu.memory_space<vmem>>, vector<16x128xf32>
    %cst_26 = arith.constant dense<0.000000e+00> : vector<16x128xf32>
    %23 = tpu.matmul %16, %14, %cst_26 {dimension_numbers = #tpu.dot_dimension_numbers<[1], [0], [0], [1], [0, 0, 1, 1], [], []>} : vector<16x32xbf16>, vector<32x128xbf16>, vector<16x128xf32> -> vector<16x128xf32>
    %24 = arith.addf %22, %23 : vector<16x128xf32>
    %25 = vector.extract_strided_slice %21 {offsets = [0, 0], sizes = [16, 32], strides = [1, 1]} : vector<16x128xf32> to vector<16x32xf32>
    %26 = arith.negf %25 : vector<16x32xf32>
    %27 = math.exp %26 : vector<16x32xf32>
    %cst_27 = arith.constant 1.000000e+00 : f32
    %28 = vector.broadcast %cst_27 : f32 to vector<16x32xf32>
    %29 = arith.addf %28, %27 : vector<16x32xf32>
    %30 = arith.divf %28, %29 : vector<16x32xf32>
    %31 = vector.extract_strided_slice %21 {offsets = [0, 32], sizes = [16, 32], strides = [1, 1]} : vector<16x128xf32> to vector<16x32xf32>
    %32 = arith.negf %31 : vector<16x32xf32>
    %33 = math.exp %32 : vector<16x32xf32>
    %cst_28 = arith.constant 1.000000e+00 : f32
    %34 = vector.broadcast %cst_28 : f32 to vector<16x32xf32>
    %35 = arith.addf %34, %33 : vector<16x32xf32>
    %36 = arith.divf %34, %35 : vector<16x32xf32>
    %37 = vector.extract_strided_slice %21 {offsets = [0, 64], sizes = [16, 32], strides = [1, 1]} : vector<16x128xf32> to vector<16x32xf32>
    %38 = math.tanh %37 : vector<16x32xf32>
    %39 = vector.extract_strided_slice %21 {offsets = [0, 96], sizes = [16, 32], strides = [1, 1]} : vector<16x128xf32> to vector<16x32xf32>
    %40 = arith.negf %39 : vector<16x32xf32>
    %41 = math.exp %40 : vector<16x32xf32>
    %cst_29 = arith.constant 1.000000e+00 : f32
    %42 = vector.broadcast %cst_29 : f32 to vector<16x32xf32>
    %43 = arith.addf %42, %41 : vector<16x32xf32>
    %44 = arith.divf %42, %43 : vector<16x32xf32>
    %45 = arith.mulf %36, %17 : vector<16x32xf32>
    %46 = arith.mulf %30, %38 : vector<16x32xf32>
    %47 = arith.addf %45, %46 : vector<16x32xf32>
    %48 = math.tanh %47 : vector<16x32xf32>
    %49 = arith.mulf %44, %48 : vector<16x32xf32>
    %50 = vector.extract_strided_slice %24 {offsets = [0, 0], sizes = [16, 32], strides = [1, 1]} : vector<16x128xf32> to vector<16x32xf32>
    %51 = arith.negf %50 : vector<16x32xf32>
    %52 = math.exp %51 : vector<16x32xf32>
    %cst_30 = arith.constant 1.000000e+00 : f32
    %53 = vector.broadcast %cst_30 : f32 to vector<16x32xf32>
    %54 = arith.addf %53, %52 : vector<16x32xf32>
    %55 = arith.divf %53, %54 : vector<16x32xf32>
    %56 = vector.extract_strided_slice %24 {offsets = [0, 32], sizes = [16, 32], strides = [1, 1]} : vector<16x128xf32> to vector<16x32xf32>
    %57 = arith.negf %56 : vector<16x32xf32>
    %58 = math.exp %57 : vector<16x32xf32>
    %cst_31 = arith.constant 1.000000e+00 : f32
    %59 = vector.broadcast %cst_31 : f32 to vector<16x32xf32>
    %60 = arith.addf %59, %58 : vector<16x32xf32>
    %61 = arith.divf %59, %60 : vector<16x32xf32>
    %62 = vector.extract_strided_slice %24 {offsets = [0, 64], sizes = [16, 32], strides = [1, 1]} : vector<16x128xf32> to vector<16x32xf32>
    %63 = math.tanh %62 : vector<16x32xf32>
    %64 = vector.extract_strided_slice %24 {offsets = [0, 96], sizes = [16, 32], strides = [1, 1]} : vector<16x128xf32> to vector<16x32xf32>
    %65 = arith.negf %64 : vector<16x32xf32>
    %66 = math.exp %65 : vector<16x32xf32>
    %cst_32 = arith.constant 1.000000e+00 : f32
    %67 = vector.broadcast %cst_32 : f32 to vector<16x32xf32>
    %68 = arith.addf %67, %66 : vector<16x32xf32>
    %69 = arith.divf %67, %68 : vector<16x32xf32>
    %70 = arith.mulf %61, %18 : vector<16x32xf32>
    %71 = arith.mulf %55, %63 : vector<16x32xf32>
    %72 = arith.addf %70, %71 : vector<16x32xf32>
    %73 = math.tanh %72 : vector<16x32xf32>
    %74 = arith.mulf %69, %73 : vector<16x32xf32>
    %75 = arith.truncf %49 : vector<16x32xf32> to vector<16x32xbf16>
    %76 = arith.truncf %74 : vector<16x32xf32> to vector<16x32xbf16>
    %c0_33 = arith.constant 0 : index
    %c0_34 = arith.constant 0 : index
    %77 = vector.load %arg20[%c0_33, %c0_34] : memref<128x64xbf16, #tpu.memory_space<vmem>>, vector<16x32xbf16>
    tpu.vector_store %arg20[%c0_33, %c0_34], %75 {strides = array<i32>} : memref<128x64xbf16, #tpu.memory_space<vmem>>, vector<16x32xbf16>,
    %c112_35 = arith.constant 112 : index
    %c32 = arith.constant 32 : index
    %78 = vector.load %arg20[%c112_35, %c32] : memref<128x64xbf16, #tpu.memory_space<vmem>>, vector<16x32xbf16>
    tpu.vector_store %arg20[%c112_35, %c32], %76 {strides = array<i32>} : memref<128x64xbf16, #tpu.memory_space<vmem>>, vector<16x32xbf16>,
    %c16 = arith.constant 16 : index
    %c0_36 = arith.constant 0 : index
    %79 = vector.load %arg18[%c16, %c0_36] : memref<128x128xf32, #tpu.memory_space<vmem>>, vector<16x128xf32>
    %cst_37 = arith.constant dense<0.000000e+00> : vector<16x128xf32>
    %80 = tpu.matmul %75, %13, %cst_37 {dimension_numbers = #tpu.dot_dimension_numbers<[1], [0], [0], [1], [0, 0, 1, 1], [], []>} : vector<16x32xbf16>, vector<32x128xbf16>, vector<16x128xf32> -> vector<16x128xf32>
    %81 = arith.addf %79, %80 : vector<16x128xf32>
    %c96 = arith.constant 96 : index
    %c0_38 = arith.constant 0 : index
    %82 = vector.load %arg19[%c96, %c0_38] : memref<128x128xf32, #tpu.memory_space<vmem>>, vector<16x128xf32>
    %cst_39 = arith.constant dense<0.000000e+00> : vector<16x128xf32>
    %83 = tpu.matmul %76, %14, %cst_39 {dimension_numbers = #tpu.dot_dimension_numbers<[1], [0], [0], [1], [0, 0, 1, 1], [], []>} : vector<16x32xbf16>, vector<32x128xbf16>, vector<16x128xf32> -> vector<16x128xf32>
    %84 = arith.addf %82, %83 : vector<16x128xf32>
    %85 = vector.extract_strided_slice %81 {offsets = [0, 0], sizes = [16, 32], strides = [1, 1]} : vector<16x128xf32> to vector<16x32xf32>
    %86 = arith.negf %85 : vector<16x32xf32>
    %87 = math.exp %86 : vector<16x32xf32>
    %cst_40 = arith.constant 1.000000e+00 : f32
    %88 = vector.broadcast %cst_40 : f32 to vector<16x32xf32>
    %89 = arith.addf %88, %87 : vector<16x32xf32>
    %90 = arith.divf %88, %89 : vector<16x32xf32>
    %91 = vector.extract_strided_slice %81 {offsets = [0, 32], sizes = [16, 32], strides = [1, 1]} : vector<16x128xf32> to vector<16x32xf32>
    %92 = arith.negf %91 : vector<16x32xf32>
    %93 = math.exp %92 : vector<16x32xf32>
    %cst_41 = arith.constant 1.000000e+00 : f32
    %94 = vector.broadcast %cst_41 : f32 to vector<16x32xf32>
    %95 = arith.addf %94, %93 : vector<16x32xf32>
    %96 = arith.divf %94, %95 : vector<16x32xf32>
    %97 = vector.extract_strided_slice %81 {offsets = [0, 64], sizes = [16, 32], strides = [1, 1]} : vector<16x128xf32> to vector<16x32xf32>
    %98 = math.tanh %97 : vector<16x32xf32>
    %99 = vector.extract_strided_slice %81 {offsets = [0, 96], sizes = [16, 32], strides = [1, 1]} : vector<16x128xf32> to vector<16x32xf32>
    %100 = arith.negf %99 : vector<16x32xf32>
    %101 = math.exp %100 : vector<16x32xf32>
    %cst_42 = arith.constant 1.000000e+00 : f32
    %102 = vector.broadcast %cst_42 : f32 to vector<16x32xf32>
    %103 = arith.addf %102, %101 : vector<16x32xf32>
    %104 = arith.divf %102, %103 : vector<16x32xf32>
    %105 = arith.mulf %96, %47 : vector<16x32xf32>
    %106 = arith.mulf %90, %98 : vector<16x32xf32>
    %107 = arith.addf %105, %106 : vector<16x32xf32>
    %108 = math.tanh %107 : vector<16x32xf32>
    %109 = arith.mulf %104, %108 : vector<16x32xf32>
    %110 = vector.extract_strided_slice %84 {offsets = [0, 0], sizes = [16, 32], strides = [1, 1]} : vector<16x128xf32> to vector<16x32xf32>
    %111 = arith.negf %110 : vector<16x32xf32>
    %112 = math.exp %111 : vector<16x32xf32>
    %cst_43 = arith.constant 1.000000e+00 : f32
    %113 = vector.broadcast %cst_43 : f32 to vector<16x32xf32>
    %114 = arith.addf %113, %112 : vector<16x32xf32>
    %115 = arith.divf %113, %114 : vector<16x32xf32>
    %116 = vector.extract_strided_slice %84 {offsets = [0, 32], sizes = [16, 32], strides = [1, 1]} : vector<16x128xf32> to vector<16x32xf32>
    %117 = arith.negf %116 : vector<16x32xf32>
    %118 = math.exp %117 : vector<16x32xf32>
    %cst_44 = arith.constant 1.000000e+00 : f32
    %119 = vector.broadcast %cst_44 : f32 to vector<16x32xf32>
    %120 = arith.addf %119, %118 : vector<16x32xf32>
    %121 = arith.divf %119, %120 : vector<16x32xf32>
    %122 = vector.extract_strided_slice %84 {offsets = [0, 64], sizes = [16, 32], strides = [1, 1]} : vector<16x128xf32> to vector<16x32xf32>
    %123 = math.tanh %122 : vector<16x32xf32>
    %124 = vector.extract_strided_slice %84 {offsets = [0, 96], sizes = [16, 32], strides = [1, 1]} : vector<16x128xf32> to vector<16x32xf32>
    %125 = arith.negf %124 : vector<16x32xf32>
    %126 = math.exp %125 : vector<16x32xf32>
    %cst_45 = arith.constant 1.000000e+00 : f32
    %127 = vector.broadcast %cst_45 : f32 to vector<16x32xf32>
    %128 = arith.addf %127, %126 : vector<16x32xf32>
    %129 = arith.divf %127, %128 : vector<16x32xf32>
    %130 = arith.mulf %121, %72 : vector<16x32xf32>
    %131 = arith.mulf %115, %123 : vector<16x32xf32>
    %132 = arith.addf %130, %131 : vector<16x32xf32>
    %133 = math.tanh %132 : vector<16x32xf32>
    %134 = arith.mulf %129, %133 : vector<16x32xf32>
    %135 = arith.truncf %109 : vector<16x32xf32> to vector<16x32xbf16>
    %136 = arith.truncf %134 : vector<16x32xf32> to vector<16x32xbf16>
    %c16_46 = arith.constant 16 : index
    %c0_47 = arith.constant 0 : index
    %137 = vector.load %arg20[%c16_46, %c0_47] : memref<128x64xbf16, #tpu.memory_space<vmem>>, vector<16x32xbf16>
    tpu.vector_store %arg20[%c16_46, %c0_47], %135 {strides = array<i32>} : memref<128x64xbf16, #tpu.memory_space<vmem>>, vector<16x32xbf16>,
    %c96_48 = arith.constant 96 : index
    %c32_49 = arith.constant 32 : index
    %138 = vector.load %arg20[%c96_48, %c32_49] : memref<128x64xbf16, #tpu.memory_space<vmem>>, vector<16x32xbf16>
    tpu.vector_store %arg20[%c96_48, %c32_49], %136 {strides = array<i32>} : memref<128x64xbf16, #tpu.memory_space<vmem>>, vector<16x32xbf16>,
    %c32_50 = arith.constant 32 : index
    %c0_51 = arith.constant 0 : index
    %139 = vector.load %arg18[%c32_50, %c0_51] : memref<128x128xf32, #tpu.memory_space<vmem>>, vector<16x128xf32>
    %cst_52 = arith.constant dense<0.000000e+00> : vector<16x128xf32>
    %140 = tpu.matmul %135, %13, %cst_52 {dimension_numbers = #tpu.dot_dimension_numbers<[1], [0], [0], [1], [0, 0, 1, 1], [], []>} : vector<16x32xbf16>, vector<32x128xbf16>, vector<16x128xf32> -> vector<16x128xf32>
    %141 = arith.addf %139, %140 : vector<16x128xf32>
    %c80 = arith.constant 80 : index
    %c0_53 = arith.constant 0 : index
    %142 = vector.load %arg19[%c80, %c0_53] : memref<128x128xf32, #tpu.memory_space<vmem>>, vector<16x128xf32>
    %cst_54 = arith.constant dense<0.000000e+00> : vector<16x128xf32>
    %143 = tpu.matmul %136, %14, %cst_54 {dimension_numbers = #tpu.dot_dimension_numbers<[1], [0], [0], [1], [0, 0, 1, 1], [], []>} : vector<16x32xbf16>, vector<32x128xbf16>, vector<16x128xf32> -> vector<16x128xf32>
    %144 = arith.addf %142, %143 : vector<16x128xf32>
    %145 = vector.extract_strided_slice %141 {offsets = [0, 0], sizes = [16, 32], strides = [1, 1]} : vector<16x128xf32> to vector<16x32xf32>
    %146 = arith.negf %145 : vector<16x32xf32>
    %147 = math.exp %146 : vector<16x32xf32>
    %cst_55 = arith.constant 1.000000e+00 : f32
    %148 = vector.broadcast %cst_55 : f32 to vector<16x32xf32>
    %149 = arith.addf %148, %147 : vector<16x32xf32>
    %150 = arith.divf %148, %149 : vector<16x32xf32>
    %151 = vector.extract_strided_slice %141 {offsets = [0, 32], sizes = [16, 32], strides = [1, 1]} : vector<16x128xf32> to vector<16x32xf32>
    %152 = arith.negf %151 : vector<16x32xf32>
    %153 = math.exp %152 : vector<16x32xf32>
    %cst_56 = arith.constant 1.000000e+00 : f32
    %154 = vector.broadcast %cst_56 : f32 to vector<16x32xf32>
    %155 = arith.addf %154, %153 : vector<16x32xf32>
    %156 = arith.divf %154, %155 : vector<16x32xf32>
    %157 = vector.extract_strided_slice %141 {offsets = [0, 64], sizes = [16, 32], strides = [1, 1]} : vector<16x128xf32> to vector<16x32xf32>
    %158 = math.tanh %157 : vector<16x32xf32>
    %159 = vector.extract_strided_slice %141 {offsets = [0, 96], sizes = [16, 32], strides = [1, 1]} : vector<16x128xf32> to vector<16x32xf32>
    %160 = arith.negf %159 : vector<16x32xf32>
    %161 = math.exp %160 : vector<16x32xf32>
    %cst_57 = arith.constant 1.000000e+00 : f32
    %162 = vector.broadcast %cst_57 : f32 to vector<16x32xf32>
    %163 = arith.addf %162, %161 : vector<16x32xf32>
    %164 = arith.divf %162, %163 : vector<16x32xf32>
    %165 = arith.mulf %156, %107 : vector<16x32xf32>
    %166 = arith.mulf %150, %158 : vector<16x32xf32>
    %167 = arith.addf %165, %166 : vector<16x32xf32>
    %168 = math.tanh %167 : vector<16x32xf32>
    %169 = arith.mulf %164, %168 : vector<16x32xf32>
    %170 = vector.extract_strided_slice %144 {offsets = [0, 0], sizes = [16, 32], strides = [1, 1]} : vector<16x128xf32> to vector<16x32xf32>
    %171 = arith.negf %170 : vector<16x32xf32>
    %172 = math.exp %171 : vector<16x32xf32>
    %cst_58 = arith.constant 1.000000e+00 : f32
    %173 = vector.broadcast %cst_58 : f32 to vector<16x32xf32>
    %174 = arith.addf %173, %172 : vector<16x32xf32>
    %175 = arith.divf %173, %174 : vector<16x32xf32>
    %176 = vector.extract_strided_slice %144 {offsets = [0, 32], sizes = [16, 32], strides = [1, 1]} : vector<16x128xf32> to vector<16x32xf32>
    %177 = arith.negf %176 : vector<16x32xf32>
    %178 = math.exp %177 : vector<16x32xf32>
    %cst_59 = arith.constant 1.000000e+00 : f32
    %179 = vector.broadcast %cst_59 : f32 to vector<16x32xf32>
    %180 = arith.addf %179, %178 : vector<16x32xf32>
    %181 = arith.divf %179, %180 : vector<16x32xf32>
    %182 = vector.extract_strided_slice %144 {offsets = [0, 64], sizes = [16, 32], strides = [1, 1]} : vector<16x128xf32> to vector<16x32xf32>
    %183 = math.tanh %182 : vector<16x32xf32>
    %184 = vector.extract_strided_slice %144 {offsets = [0, 96], sizes = [16, 32], strides = [1, 1]} : vector<16x128xf32> to vector<16x32xf32>
    %185 = arith.negf %184 : vector<16x32xf32>
    %186 = math.exp %185 : vector<16x32xf32>
    %cst_60 = arith.constant 1.000000e+00 : f32
    %187 = vector.broadcast %cst_60 : f32 to vector<16x32xf32>
    %188 = arith.addf %187, %186 : vector<16x32xf32>
    %189 = arith.divf %187, %188 : vector<16x32xf32>
    %190 = arith.mulf %181, %132 : vector<16x32xf32>
    %191 = arith.mulf %175, %183 : vector<16x32xf32>
    %192 = arith.addf %190, %191 : vector<16x32xf32>
    %193 = math.tanh %192 : vector<16x32xf32>
    %194 = arith.mulf %189, %193 : vector<16x32xf32>
    %195 = arith.truncf %169 : vector<16x32xf32> to vector<16x32xbf16>
    %196 = arith.truncf %194 : vector<16x32xf32> to vector<16x32xbf16>
    %c32_61 = arith.constant 32 : index
    %c0_62 = arith.constant 0 : index
    %197 = vector.load %arg20[%c32_61, %c0_62] : memref<128x64xbf16, #tpu.memory_space<vmem>>, vector<16x32xbf16>
    tpu.vector_store %arg20[%c32_61, %c0_62], %195 {strides = array<i32>} : memref<128x64xbf16, #tpu.memory_space<vmem>>, vector<16x32xbf16>,
    %c80_63 = arith.constant 80 : index
    %c32_64 = arith.constant 32 : index
    %198 = vector.load %arg20[%c80_63, %c32_64] : memref<128x64xbf16, #tpu.memory_space<vmem>>, vector<16x32xbf16>
    tpu.vector_store %arg20[%c80_63, %c32_64], %196 {strides = array<i32>} : memref<128x64xbf16, #tpu.memory_space<vmem>>, vector<16x32xbf16>,
    %c48 = arith.constant 48 : index
    %c0_65 = arith.constant 0 : index
    %199 = vector.load %arg18[%c48, %c0_65] : memref<128x128xf32, #tpu.memory_space<vmem>>, vector<16x128xf32>
    %cst_66 = arith.constant dense<0.000000e+00> : vector<16x128xf32>
    %200 = tpu.matmul %195, %13, %cst_66 {dimension_numbers = #tpu.dot_dimension_numbers<[1], [0], [0], [1], [0, 0, 1, 1], [], []>} : vector<16x32xbf16>, vector<32x128xbf16>, vector<16x128xf32> -> vector<16x128xf32>
    %201 = arith.addf %199, %200 : vector<16x128xf32>
    %c64 = arith.constant 64 : index
    %c0_67 = arith.constant 0 : index
    %202 = vector.load %arg19[%c64, %c0_67] : memref<128x128xf32, #tpu.memory_space<vmem>>, vector<16x128xf32>
    %cst_68 = arith.constant dense<0.000000e+00> : vector<16x128xf32>
    %203 = tpu.matmul %196, %14, %cst_68 {dimension_numbers = #tpu.dot_dimension_numbers<[1], [0], [0], [1], [0, 0, 1, 1], [], []>} : vector<16x32xbf16>, vector<32x128xbf16>, vector<16x128xf32> -> vector<16x128xf32>
    %204 = arith.addf %202, %203 : vector<16x128xf32>
    %205 = vector.extract_strided_slice %201 {offsets = [0, 0], sizes = [16, 32], strides = [1, 1]} : vector<16x128xf32> to vector<16x32xf32>
    %206 = arith.negf %205 : vector<16x32xf32>
    %207 = math.exp %206 : vector<16x32xf32>
    %cst_69 = arith.constant 1.000000e+00 : f32
    %208 = vector.broadcast %cst_69 : f32 to vector<16x32xf32>
    %209 = arith.addf %208, %207 : vector<16x32xf32>
    %210 = arith.divf %208, %209 : vector<16x32xf32>
    %211 = vector.extract_strided_slice %201 {offsets = [0, 32], sizes = [16, 32], strides = [1, 1]} : vector<16x128xf32> to vector<16x32xf32>
    %212 = arith.negf %211 : vector<16x32xf32>
    %213 = math.exp %212 : vector<16x32xf32>
    %cst_70 = arith.constant 1.000000e+00 : f32
    %214 = vector.broadcast %cst_70 : f32 to vector<16x32xf32>
    %215 = arith.addf %214, %213 : vector<16x32xf32>
    %216 = arith.divf %214, %215 : vector<16x32xf32>
    %217 = vector.extract_strided_slice %201 {offsets = [0, 64], sizes = [16, 32], strides = [1, 1]} : vector<16x128xf32> to vector<16x32xf32>
    %218 = math.tanh %217 : vector<16x32xf32>
    %219 = vector.extract_strided_slice %201 {offsets = [0, 96], sizes = [16, 32], strides = [1, 1]} : vector<16x128xf32> to vector<16x32xf32>
    %220 = arith.negf %219 : vector<16x32xf32>
    %221 = math.exp %220 : vector<16x32xf32>
    %cst_71 = arith.constant 1.000000e+00 : f32
    %222 = vector.broadcast %cst_71 : f32 to vector<16x32xf32>
    %223 = arith.addf %222, %221 : vector<16x32xf32>
    %224 = arith.divf %222, %223 : vector<16x32xf32>
    %225 = arith.mulf %216, %167 : vector<16x32xf32>
    %226 = arith.mulf %210, %218 : vector<16x32xf32>
    %227 = arith.addf %225, %226 : vector<16x32xf32>
    %228 = math.tanh %227 : vector<16x32xf32>
    %229 = arith.mulf %224, %228 : vector<16x32xf32>
    %230 = vector.extract_strided_slice %204 {offsets = [0, 0], sizes = [16, 32], strides = [1, 1]} : vector<16x128xf32> to vector<16x32xf32>
    %231 = arith.negf %230 : vector<16x32xf32>
    %232 = math.exp %231 : vector<16x32xf32>
    %cst_72 = arith.constant 1.000000e+00 : f32
    %233 = vector.broadcast %cst_72 : f32 to vector<16x32xf32>
    %234 = arith.addf %233, %232 : vector<16x32xf32>
    %235 = arith.divf %233, %234 : vector<16x32xf32>
    %236 = vector.extract_strided_slice %204 {offsets = [0, 32], sizes = [16, 32], strides = [1, 1]} : vector<16x128xf32> to vector<16x32xf32>
    %237 = arith.negf %236 : vector<16x32xf32>
    %238 = math.exp %237 : vector<16x32xf32>
    %cst_73 = arith.constant 1.000000e+00 : f32
    %239 = vector.broadcast %cst_73 : f32 to vector<16x32xf32>
    %240 = arith.addf %239, %238 : vector<16x32xf32>
    %241 = arith.divf %239, %240 : vector<16x32xf32>
    %242 = vector.extract_strided_slice %204 {offsets = [0, 64], sizes = [16, 32], strides = [1, 1]} : vector<16x128xf32> to vector<16x32xf32>
    %243 = math.tanh %242 : vector<16x32xf32>
    %244 = vector.extract_strided_slice %204 {offsets = [0, 96], sizes = [16, 32], strides = [1, 1]} : vector<16x128xf32> to vector<16x32xf32>
    %245 = arith.negf %244 : vector<16x32xf32>
    %246 = math.exp %245 : vector<16x32xf32>
    %cst_74 = arith.constant 1.000000e+00 : f32
    %247 = vector.broadcast %cst_74 : f32 to vector<16x32xf32>
    %248 = arith.addf %247, %246 : vector<16x32xf32>
    %249 = arith.divf %247, %248 : vector<16x32xf32>
    %250 = arith.mulf %241, %192 : vector<16x32xf32>
    %251 = arith.mulf %235, %243 : vector<16x32xf32>
    %252 = arith.addf %250, %251 : vector<16x32xf32>
    %253 = math.tanh %252 : vector<16x32xf32>
    %254 = arith.mulf %249, %253 : vector<16x32xf32>
    %255 = arith.truncf %229 : vector<16x32xf32> to vector<16x32xbf16>
    %256 = arith.truncf %254 : vector<16x32xf32> to vector<16x32xbf16>
    %c48_75 = arith.constant 48 : index
    %c0_76 = arith.constant 0 : index
    %257 = vector.load %arg20[%c48_75, %c0_76] : memref<128x64xbf16, #tpu.memory_space<vmem>>, vector<16x32xbf16>
    tpu.vector_store %arg20[%c48_75, %c0_76], %255 {strides = array<i32>} : memref<128x64xbf16, #tpu.memory_space<vmem>>, vector<16x32xbf16>,
    %c64_77 = arith.constant 64 : index
    %c32_78 = arith.constant 32 : index
    %258 = vector.load %arg20[%c64_77, %c32_78] : memref<128x64xbf16, #tpu.memory_space<vmem>>, vector<16x32xbf16>
    tpu.vector_store %arg20[%c64_77, %c32_78], %256 {strides = array<i32>} : memref<128x64xbf16, #tpu.memory_space<vmem>>, vector<16x32xbf16>,
    %c64_79 = arith.constant 64 : index
    %c0_80 = arith.constant 0 : index
    %259 = vector.load %arg18[%c64_79, %c0_80] : memref<128x128xf32, #tpu.memory_space<vmem>>, vector<16x128xf32>
    %cst_81 = arith.constant dense<0.000000e+00> : vector<16x128xf32>
    %260 = tpu.matmul %255, %13, %cst_81 {dimension_numbers = #tpu.dot_dimension_numbers<[1], [0], [0], [1], [0, 0, 1, 1], [], []>} : vector<16x32xbf16>, vector<32x128xbf16>, vector<16x128xf32> -> vector<16x128xf32>
    %261 = arith.addf %259, %260 : vector<16x128xf32>
    %c48_82 = arith.constant 48 : index
    %c0_83 = arith.constant 0 : index
    %262 = vector.load %arg19[%c48_82, %c0_83] : memref<128x128xf32, #tpu.memory_space<vmem>>, vector<16x128xf32>
    %cst_84 = arith.constant dense<0.000000e+00> : vector<16x128xf32>
    %263 = tpu.matmul %256, %14, %cst_84 {dimension_numbers = #tpu.dot_dimension_numbers<[1], [0], [0], [1], [0, 0, 1, 1], [], []>} : vector<16x32xbf16>, vector<32x128xbf16>, vector<16x128xf32> -> vector<16x128xf32>
    %264 = arith.addf %262, %263 : vector<16x128xf32>
    %265 = vector.extract_strided_slice %261 {offsets = [0, 0], sizes = [16, 32], strides = [1, 1]} : vector<16x128xf32> to vector<16x32xf32>
    %266 = arith.negf %265 : vector<16x32xf32>
    %267 = math.exp %266 : vector<16x32xf32>
    %cst_85 = arith.constant 1.000000e+00 : f32
    %268 = vector.broadcast %cst_85 : f32 to vector<16x32xf32>
    %269 = arith.addf %268, %267 : vector<16x32xf32>
    %270 = arith.divf %268, %269 : vector<16x32xf32>
    %271 = vector.extract_strided_slice %261 {offsets = [0, 32], sizes = [16, 32], strides = [1, 1]} : vector<16x128xf32> to vector<16x32xf32>
    %272 = arith.negf %271 : vector<16x32xf32>
    %273 = math.exp %272 : vector<16x32xf32>
    %cst_86 = arith.constant 1.000000e+00 : f32
    %274 = vector.broadcast %cst_86 : f32 to vector<16x32xf32>
    %275 = arith.addf %274, %273 : vector<16x32xf32>
    %276 = arith.divf %274, %275 : vector<16x32xf32>
    %277 = vector.extract_strided_slice %261 {offsets = [0, 64], sizes = [16, 32], strides = [1, 1]} : vector<16x128xf32> to vector<16x32xf32>
    %278 = math.tanh %277 : vector<16x32xf32>
    %279 = vector.extract_strided_slice %261 {offsets = [0, 96], sizes = [16, 32], strides = [1, 1]} : vector<16x128xf32> to vector<16x32xf32>
    %280 = arith.negf %279 : vector<16x32xf32>
    %281 = math.exp %280 : vector<16x32xf32>
    %cst_87 = arith.constant 1.000000e+00 : f32
    %282 = vector.broadcast %cst_87 : f32 to vector<16x32xf32>
    %283 = arith.addf %282, %281 : vector<16x32xf32>
    %284 = arith.divf %282, %283 : vector<16x32xf32>
    %285 = arith.mulf %276, %227 : vector<16x32xf32>
    %286 = arith.mulf %270, %278 : vector<16x32xf32>
    %287 = arith.addf %285, %286 : vector<16x32xf32>
    %288 = math.tanh %287 : vector<16x32xf32>
    %289 = arith.mulf %284, %288 : vector<16x32xf32>
    %290 = vector.extract_strided_slice %264 {offsets = [0, 0], sizes = [16, 32], strides = [1, 1]} : vector<16x128xf32> to vector<16x32xf32>
    %291 = arith.negf %290 : vector<16x32xf32>
    %292 = math.exp %291 : vector<16x32xf32>
    %cst_88 = arith.constant 1.000000e+00 : f32
    %293 = vector.broadcast %cst_88 : f32 to vector<16x32xf32>
    %294 = arith.addf %293, %292 : vector<16x32xf32>
    %295 = arith.divf %293, %294 : vector<16x32xf32>
    %296 = vector.extract_strided_slice %264 {offsets = [0, 32], sizes = [16, 32], strides = [1, 1]} : vector<16x128xf32> to vector<16x32xf32>
    %297 = arith.negf %296 : vector<16x32xf32>
    %298 = math.exp %297 : vector<16x32xf32>
    %cst_89 = arith.constant 1.000000e+00 : f32
    %299 = vector.broadcast %cst_89 : f32 to vector<16x32xf32>
    %300 = arith.addf %299, %298 : vector<16x32xf32>
    %301 = arith.divf %299, %300 : vector<16x32xf32>
    %302 = vector.extract_strided_slice %264 {offsets = [0, 64], sizes = [16, 32], strides = [1, 1]} : vector<16x128xf32> to vector<16x32xf32>
    %303 = math.tanh %302 : vector<16x32xf32>
    %304 = vector.extract_strided_slice %264 {offsets = [0, 96], sizes = [16, 32], strides = [1, 1]} : vector<16x128xf32> to vector<16x32xf32>
    %305 = arith.negf %304 : vector<16x32xf32>
    %306 = math.exp %305 : vector<16x32xf32>
    %cst_90 = arith.constant 1.000000e+00 : f32
    %307 = vector.broadcast %cst_90 : f32 to vector<16x32xf32>
    %308 = arith.addf %307, %306 : vector<16x32xf32>
    %309 = arith.divf %307, %308 : vector<16x32xf32>
    %310 = arith.mulf %301, %252 : vector<16x32xf32>
    %311 = arith.mulf %295, %303 : vector<16x32xf32>
    %312 = arith.addf %310, %311 : vector<16x32xf32>
    %313 = math.tanh %312 : vector<16x32xf32>
    %314 = arith.mulf %309, %313 : vector<16x32xf32>
    %315 = arith.truncf %289 : vector<16x32xf32> to vector<16x32xbf16>
    %316 = arith.truncf %314 : vector<16x32xf32> to vector<16x32xbf16>
    %c64_91 = arith.constant 64 : index
    %c0_92 = arith.constant 0 : index
    %317 = vector.load %arg20[%c64_91, %c0_92] : memref<128x64xbf16, #tpu.memory_space<vmem>>, vector<16x32xbf16>
    tpu.vector_store %arg20[%c64_91, %c0_92], %315 {strides = array<i32>} : memref<128x64xbf16, #tpu.memory_space<vmem>>, vector<16x32xbf16>,
    %c48_93 = arith.constant 48 : index
    %c32_94 = arith.constant 32 : index
    %318 = vector.load %arg20[%c48_93, %c32_94] : memref<128x64xbf16, #tpu.memory_space<vmem>>, vector<16x32xbf16>
    tpu.vector_store %arg20[%c48_93, %c32_94], %316 {strides = array<i32>} : memref<128x64xbf16, #tpu.memory_space<vmem>>, vector<16x32xbf16>,
    %c80_95 = arith.constant 80 : index
    %c0_96 = arith.constant 0 : index
    %319 = vector.load %arg18[%c80_95, %c0_96] : memref<128x128xf32, #tpu.memory_space<vmem>>, vector<16x128xf32>
    %cst_97 = arith.constant dense<0.000000e+00> : vector<16x128xf32>
    %320 = tpu.matmul %315, %13, %cst_97 {dimension_numbers = #tpu.dot_dimension_numbers<[1], [0], [0], [1], [0, 0, 1, 1], [], []>} : vector<16x32xbf16>, vector<32x128xbf16>, vector<16x128xf32> -> vector<16x128xf32>
    %321 = arith.addf %319, %320 : vector<16x128xf32>
    %c32_98 = arith.constant 32 : index
    %c0_99 = arith.constant 0 : index
    %322 = vector.load %arg19[%c32_98, %c0_99] : memref<128x128xf32, #tpu.memory_space<vmem>>, vector<16x128xf32>
    %cst_100 = arith.constant dense<0.000000e+00> : vector<16x128xf32>
    %323 = tpu.matmul %316, %14, %cst_100 {dimension_numbers = #tpu.dot_dimension_numbers<[1], [0], [0], [1], [0, 0, 1, 1], [], []>} : vector<16x32xbf16>, vector<32x128xbf16>, vector<16x128xf32> -> vector<16x128xf32>
    %324 = arith.addf %322, %323 : vector<16x128xf32>
    %325 = vector.extract_strided_slice %321 {offsets = [0, 0], sizes = [16, 32], strides = [1, 1]} : vector<16x128xf32> to vector<16x32xf32>
    %326 = arith.negf %325 : vector<16x32xf32>
    %327 = math.exp %326 : vector<16x32xf32>
    %cst_101 = arith.constant 1.000000e+00 : f32
    %328 = vector.broadcast %cst_101 : f32 to vector<16x32xf32>
    %329 = arith.addf %328, %327 : vector<16x32xf32>
    %330 = arith.divf %328, %329 : vector<16x32xf32>
    %331 = vector.extract_strided_slice %321 {offsets = [0, 32], sizes = [16, 32], strides = [1, 1]} : vector<16x128xf32> to vector<16x32xf32>
    %332 = arith.negf %331 : vector<16x32xf32>
    %333 = math.exp %332 : vector<16x32xf32>
    %cst_102 = arith.constant 1.000000e+00 : f32
    %334 = vector.broadcast %cst_102 : f32 to vector<16x32xf32>
    %335 = arith.addf %334, %333 : vector<16x32xf32>
    %336 = arith.divf %334, %335 : vector<16x32xf32>
    %337 = vector.extract_strided_slice %321 {offsets = [0, 64], sizes = [16, 32], strides = [1, 1]} : vector<16x128xf32> to vector<16x32xf32>
    %338 = math.tanh %337 : vector<16x32xf32>
    %339 = vector.extract_strided_slice %321 {offsets = [0, 96], sizes = [16, 32], strides = [1, 1]} : vector<16x128xf32> to vector<16x32xf32>
    %340 = arith.negf %339 : vector<16x32xf32>
    %341 = math.exp %340 : vector<16x32xf32>
    %cst_103 = arith.constant 1.000000e+00 : f32
    %342 = vector.broadcast %cst_103 : f32 to vector<16x32xf32>
    %343 = arith.addf %342, %341 : vector<16x32xf32>
    %344 = arith.divf %342, %343 : vector<16x32xf32>
    %345 = arith.mulf %336, %287 : vector<16x32xf32>
    %346 = arith.mulf %330, %338 : vector<16x32xf32>
    %347 = arith.addf %345, %346 : vector<16x32xf32>
    %348 = math.tanh %347 : vector<16x32xf32>
    %349 = arith.mulf %344, %348 : vector<16x32xf32>
    %350 = vector.extract_strided_slice %324 {offsets = [0, 0], sizes = [16, 32], strides = [1, 1]} : vector<16x128xf32> to vector<16x32xf32>
    %351 = arith.negf %350 : vector<16x32xf32>
    %352 = math.exp %351 : vector<16x32xf32>
    %cst_104 = arith.constant 1.000000e+00 : f32
    %353 = vector.broadcast %cst_104 : f32 to vector<16x32xf32>
    %354 = arith.addf %353, %352 : vector<16x32xf32>
    %355 = arith.divf %353, %354 : vector<16x32xf32>
    %356 = vector.extract_strided_slice %324 {offsets = [0, 32], sizes = [16, 32], strides = [1, 1]} : vector<16x128xf32> to vector<16x32xf32>
    %357 = arith.negf %356 : vector<16x32xf32>
    %358 = math.exp %357 : vector<16x32xf32>
    %cst_105 = arith.constant 1.000000e+00 : f32
    %359 = vector.broadcast %cst_105 : f32 to vector<16x32xf32>
    %360 = arith.addf %359, %358 : vector<16x32xf32>
    %361 = arith.divf %359, %360 : vector<16x32xf32>
    %362 = vector.extract_strided_slice %324 {offsets = [0, 64], sizes = [16, 32], strides = [1, 1]} : vector<16x128xf32> to vector<16x32xf32>
    %363 = math.tanh %362 : vector<16x32xf32>
    %364 = vector.extract_strided_slice %324 {offsets = [0, 96], sizes = [16, 32], strides = [1, 1]} : vector<16x128xf32> to vector<16x32xf32>
    %365 = arith.negf %364 : vector<16x32xf32>
    %366 = math.exp %365 : vector<16x32xf32>
    %cst_106 = arith.constant 1.000000e+00 : f32
    %367 = vector.broadcast %cst_106 : f32 to vector<16x32xf32>
    %368 = arith.addf %367, %366 : vector<16x32xf32>
    %369 = arith.divf %367, %368 : vector<16x32xf32>
    %370 = arith.mulf %361, %312 : vector<16x32xf32>
    %371 = arith.mulf %355, %363 : vector<16x32xf32>
    %372 = arith.addf %370, %371 : vector<16x32xf32>
    %373 = math.tanh %372 : vector<16x32xf32>
    %374 = arith.mulf %369, %373 : vector<16x32xf32>
    %375 = arith.truncf %349 : vector<16x32xf32> to vector<16x32xbf16>
    %376 = arith.truncf %374 : vector<16x32xf32> to vector<16x32xbf16>
    %c80_107 = arith.constant 80 : index
    %c0_108 = arith.constant 0 : index
    %377 = vector.load %arg20[%c80_107, %c0_108] : memref<128x64xbf16, #tpu.memory_space<vmem>>, vector<16x32xbf16>
    tpu.vector_store %arg20[%c80_107, %c0_108], %375 {strides = array<i32>} : memref<128x64xbf16, #tpu.memory_space<vmem>>, vector<16x32xbf16>,
    %c32_109 = arith.constant 32 : index
    %c32_110 = arith.constant 32 : index
    %378 = vector.load %arg20[%c32_109, %c32_110] : memref<128x64xbf16, #tpu.memory_space<vmem>>, vector<16x32xbf16>
    tpu.vector_store %arg20[%c32_109, %c32_110], %376 {strides = array<i32>} : memref<128x64xbf16, #tpu.memory_space<vmem>>, vector<16x32xbf16>,
    %c96_111 = arith.constant 96 : index
    %c0_112 = arith.constant 0 : index
    %379 = vector.load %arg18[%c96_111, %c0_112] : memref<128x128xf32, #tpu.memory_space<vmem>>, vector<16x128xf32>
    %cst_113 = arith.constant dense<0.000000e+00> : vector<16x128xf32>
    %380 = tpu.matmul %375, %13, %cst_113 {dimension_numbers = #tpu.dot_dimension_numbers<[1], [0], [0], [1], [0, 0, 1, 1], [], []>} : vector<16x32xbf16>, vector<32x128xbf16>, vector<16x128xf32> -> vector<16x128xf32>
    %381 = arith.addf %379, %380 : vector<16x128xf32>
    %c16_114 = arith.constant 16 : index
    %c0_115 = arith.constant 0 : index
    %382 = vector.load %arg19[%c16_114, %c0_115] : memref<128x128xf32, #tpu.memory_space<vmem>>, vector<16x128xf32>
    %cst_116 = arith.constant dense<0.000000e+00> : vector<16x128xf32>
    %383 = tpu.matmul %376, %14, %cst_116 {dimension_numbers = #tpu.dot_dimension_numbers<[1], [0], [0], [1], [0, 0, 1, 1], [], []>} : vector<16x32xbf16>, vector<32x128xbf16>, vector<16x128xf32> -> vector<16x128xf32>
    %384 = arith.addf %382, %383 : vector<16x128xf32>
    %385 = vector.extract_strided_slice %381 {offsets = [0, 0], sizes = [16, 32], strides = [1, 1]} : vector<16x128xf32> to vector<16x32xf32>
    %386 = arith.negf %385 : vector<16x32xf32>
    %387 = math.exp %386 : vector<16x32xf32>
    %cst_117 = arith.constant 1.000000e+00 : f32
    %388 = vector.broadcast %cst_117 : f32 to vector<16x32xf32>
    %389 = arith.addf %388, %387 : vector<16x32xf32>
    %390 = arith.divf %388, %389 : vector<16x32xf32>
    %391 = vector.extract_strided_slice %381 {offsets = [0, 32], sizes = [16, 32], strides = [1, 1]} : vector<16x128xf32> to vector<16x32xf32>
    %392 = arith.negf %391 : vector<16x32xf32>
    %393 = math.exp %392 : vector<16x32xf32>
    %cst_118 = arith.constant 1.000000e+00 : f32
    %394 = vector.broadcast %cst_118 : f32 to vector<16x32xf32>
    %395 = arith.addf %394, %393 : vector<16x32xf32>
    %396 = arith.divf %394, %395 : vector<16x32xf32>
    %397 = vector.extract_strided_slice %381 {offsets = [0, 64], sizes = [16, 32], strides = [1, 1]} : vector<16x128xf32> to vector<16x32xf32>
    %398 = math.tanh %397 : vector<16x32xf32>
    %399 = vector.extract_strided_slice %381 {offsets = [0, 96], sizes = [16, 32], strides = [1, 1]} : vector<16x128xf32> to vector<16x32xf32>
    %400 = arith.negf %399 : vector<16x32xf32>
    %401 = math.exp %400 : vector<16x32xf32>
    %cst_119 = arith.constant 1.000000e+00 : f32
    %402 = vector.broadcast %cst_119 : f32 to vector<16x32xf32>
    %403 = arith.addf %402, %401 : vector<16x32xf32>
    %404 = arith.divf %402, %403 : vector<16x32xf32>
    %405 = arith.mulf %396, %347 : vector<16x32xf32>
    %406 = arith.mulf %390, %398 : vector<16x32xf32>
    %407 = arith.addf %405, %406 : vector<16x32xf32>
    %408 = math.tanh %407 : vector<16x32xf32>
    %409 = arith.mulf %404, %408 : vector<16x32xf32>
    %410 = vector.extract_strided_slice %384 {offsets = [0, 0], sizes = [16, 32], strides = [1, 1]} : vector<16x128xf32> to vector<16x32xf32>
    %411 = arith.negf %410 : vector<16x32xf32>
    %412 = math.exp %411 : vector<16x32xf32>
    %cst_120 = arith.constant 1.000000e+00 : f32
    %413 = vector.broadcast %cst_120 : f32 to vector<16x32xf32>
    %414 = arith.addf %413, %412 : vector<16x32xf32>
    %415 = arith.divf %413, %414 : vector<16x32xf32>
    %416 = vector.extract_strided_slice %384 {offsets = [0, 32], sizes = [16, 32], strides = [1, 1]} : vector<16x128xf32> to vector<16x32xf32>
    %417 = arith.negf %416 : vector<16x32xf32>
    %418 = math.exp %417 : vector<16x32xf32>
    %cst_121 = arith.constant 1.000000e+00 : f32
    %419 = vector.broadcast %cst_121 : f32 to vector<16x32xf32>
    %420 = arith.addf %419, %418 : vector<16x32xf32>
    %421 = arith.divf %419, %420 : vector<16x32xf32>
    %422 = vector.extract_strided_slice %384 {offsets = [0, 64], sizes = [16, 32], strides = [1, 1]} : vector<16x128xf32> to vector<16x32xf32>
    %423 = math.tanh %422 : vector<16x32xf32>
    %424 = vector.extract_strided_slice %384 {offsets = [0, 96], sizes = [16, 32], strides = [1, 1]} : vector<16x128xf32> to vector<16x32xf32>
    %425 = arith.negf %424 : vector<16x32xf32>
    %426 = math.exp %425 : vector<16x32xf32>
    %cst_122 = arith.constant 1.000000e+00 : f32
    %427 = vector.broadcast %cst_122 : f32 to vector<16x32xf32>
    %428 = arith.addf %427, %426 : vector<16x32xf32>
    %429 = arith.divf %427, %428 : vector<16x32xf32>
    %430 = arith.mulf %421, %372 : vector<16x32xf32>
    %431 = arith.mulf %415, %423 : vector<16x32xf32>
    %432 = arith.addf %430, %431 : vector<16x32xf32>
    %433 = math.tanh %432 : vector<16x32xf32>
    %434 = arith.mulf %429, %433 : vector<16x32xf32>
    %435 = arith.truncf %409 : vector<16x32xf32> to vector<16x32xbf16>
    %436 = arith.truncf %434 : vector<16x32xf32> to vector<16x32xbf16>
    %c96_123 = arith.constant 96 : index
    %c0_124 = arith.constant 0 : index
    %437 = vector.load %arg20[%c96_123, %c0_124] : memref<128x64xbf16, #tpu.memory_space<vmem>>, vector<16x32xbf16>
    tpu.vector_store %arg20[%c96_123, %c0_124], %435 {strides = array<i32>} : memref<128x64xbf16, #tpu.memory_space<vmem>>, vector<16x32xbf16>,
    %c16_125 = arith.constant 16 : index
    %c32_126 = arith.constant 32 : index
    %438 = vector.load %arg20[%c16_125, %c32_126] : memref<128x64xbf16, #tpu.memory_space<vmem>>, vector<16x32xbf16>
    tpu.vector_store %arg20[%c16_125, %c32_126], %436 {strides = array<i32>} : memref<128x64xbf16, #tpu.memory_space<vmem>>, vector<16x32xbf16>,
    %c112_127 = arith.constant 112 : index
    %c0_128 = arith.constant 0 : index
    %439 = vector.load %arg18[%c112_127, %c0_128] : memref<128x128xf32, #tpu.memory_space<vmem>>, vector<16x128xf32>
    %cst_129 = arith.constant dense<0.000000e+00> : vector<16x128xf32>
    %440 = tpu.matmul %435, %13, %cst_129 {dimension_numbers = #tpu.dot_dimension_numbers<[1], [0], [0], [1], [0, 0, 1, 1], [], []>} : vector<16x32xbf16>, vector<32x128xbf16>, vector<16x128xf32> -> vector<16x128xf32>
    %441 = arith.addf %439, %440 : vector<16x128xf32>
    %c0_130 = arith.constant 0 : index
    %c0_131 = arith.constant 0 : index
    %442 = vector.load %arg19[%c0_130, %c0_131] : memref<128x128xf32, #tpu.memory_space<vmem>>, vector<16x128xf32>
    %cst_132 = arith.constant dense<0.000000e+00> : vector<16x128xf32>
    %443 = tpu.matmul %436, %14, %cst_132 {dimension_numbers = #tpu.dot_dimension_numbers<[1], [0], [0], [1], [0, 0, 1, 1], [], []>} : vector<16x32xbf16>, vector<32x128xbf16>, vector<16x128xf32> -> vector<16x128xf32>
    %444 = arith.addf %442, %443 : vector<16x128xf32>
    %445 = vector.extract_strided_slice %441 {offsets = [0, 0], sizes = [16, 32], strides = [1, 1]} : vector<16x128xf32> to vector<16x32xf32>
    %446 = arith.negf %445 : vector<16x32xf32>
    %447 = math.exp %446 : vector<16x32xf32>
    %cst_133 = arith.constant 1.000000e+00 : f32
    %448 = vector.broadcast %cst_133 : f32 to vector<16x32xf32>
    %449 = arith.addf %448, %447 : vector<16x32xf32>
    %450 = arith.divf %448, %449 : vector<16x32xf32>
    %451 = vector.extract_strided_slice %441 {offsets = [0, 32], sizes = [16, 32], strides = [1, 1]} : vector<16x128xf32> to vector<16x32xf32>
    %452 = arith.negf %451 : vector<16x32xf32>
    %453 = math.exp %452 : vector<16x32xf32>
    %cst_134 = arith.constant 1.000000e+00 : f32
    %454 = vector.broadcast %cst_134 : f32 to vector<16x32xf32>
    %455 = arith.addf %454, %453 : vector<16x32xf32>
    %456 = arith.divf %454, %455 : vector<16x32xf32>
    %457 = vector.extract_strided_slice %441 {offsets = [0, 64], sizes = [16, 32], strides = [1, 1]} : vector<16x128xf32> to vector<16x32xf32>
    %458 = math.tanh %457 : vector<16x32xf32>
    %459 = vector.extract_strided_slice %441 {offsets = [0, 96], sizes = [16, 32], strides = [1, 1]} : vector<16x128xf32> to vector<16x32xf32>
    %460 = arith.negf %459 : vector<16x32xf32>
    %461 = math.exp %460 : vector<16x32xf32>
    %cst_135 = arith.constant 1.000000e+00 : f32
    %462 = vector.broadcast %cst_135 : f32 to vector<16x32xf32>
    %463 = arith.addf %462, %461 : vector<16x32xf32>
    %464 = arith.divf %462, %463 : vector<16x32xf32>
    %465 = arith.mulf %456, %407 : vector<16x32xf32>
    %466 = arith.mulf %450, %458 : vector<16x32xf32>
    %467 = arith.addf %465, %466 : vector<16x32xf32>
    %468 = math.tanh %467 : vector<16x32xf32>
    %469 = arith.mulf %464, %468 : vector<16x32xf32>
    %470 = vector.extract_strided_slice %444 {offsets = [0, 0], sizes = [16, 32], strides = [1, 1]} : vector<16x128xf32> to vector<16x32xf32>
    %471 = arith.negf %470 : vector<16x32xf32>
    %472 = math.exp %471 : vector<16x32xf32>
    %cst_136 = arith.constant 1.000000e+00 : f32
    %473 = vector.broadcast %cst_136 : f32 to vector<16x32xf32>
    %474 = arith.addf %473, %472 : vector<16x32xf32>
    %475 = arith.divf %473, %474 : vector<16x32xf32>
    %476 = vector.extract_strided_slice %444 {offsets = [0, 32], sizes = [16, 32], strides = [1, 1]} : vector<16x128xf32> to vector<16x32xf32>
    %477 = arith.negf %476 : vector<16x32xf32>
    %478 = math.exp %477 : vector<16x32xf32>
    %cst_137 = arith.constant 1.000000e+00 : f32
    %479 = vector.broadcast %cst_137 : f32 to vector<16x32xf32>
    %480 = arith.addf %479, %478 : vector<16x32xf32>
    %481 = arith.divf %479, %480 : vector<16x32xf32>
    %482 = vector.extract_strided_slice %444 {offsets = [0, 64], sizes = [16, 32], strides = [1, 1]} : vector<16x128xf32> to vector<16x32xf32>
    %483 = math.tanh %482 : vector<16x32xf32>
    %484 = vector.extract_strided_slice %444 {offsets = [0, 96], sizes = [16, 32], strides = [1, 1]} : vector<16x128xf32> to vector<16x32xf32>
    %485 = arith.negf %484 : vector<16x32xf32>
    %486 = math.exp %485 : vector<16x32xf32>
    %cst_138 = arith.constant 1.000000e+00 : f32
    %487 = vector.broadcast %cst_138 : f32 to vector<16x32xf32>
    %488 = arith.addf %487, %486 : vector<16x32xf32>
    %489 = arith.divf %487, %488 : vector<16x32xf32>
    %490 = arith.mulf %481, %432 : vector<16x32xf32>
    %491 = arith.mulf %475, %483 : vector<16x32xf32>
    %492 = arith.addf %490, %491 : vector<16x32xf32>
    %493 = math.tanh %492 : vector<16x32xf32>
    %494 = arith.mulf %489, %493 : vector<16x32xf32>
    %495 = arith.truncf %469 : vector<16x32xf32> to vector<16x32xbf16>
    %496 = arith.truncf %494 : vector<16x32xf32> to vector<16x32xbf16>
    %c112_139 = arith.constant 112 : index
    %c0_140 = arith.constant 0 : index
    %497 = vector.load %arg20[%c112_139, %c0_140] : memref<128x64xbf16, #tpu.memory_space<vmem>>, vector<16x32xbf16>
    tpu.vector_store %arg20[%c112_139, %c0_140], %495 {strides = array<i32>} : memref<128x64xbf16, #tpu.memory_space<vmem>>, vector<16x32xbf16>,
    %c0_141 = arith.constant 0 : index
    %c32_142 = arith.constant 32 : index
    %498 = vector.load %arg20[%c0_141, %c32_142] : memref<128x64xbf16, #tpu.memory_space<vmem>>, vector<16x32xbf16>
    tpu.vector_store %arg20[%c0_141, %c32_142], %496 {strides = array<i32>} : memref<128x64xbf16, #tpu.memory_space<vmem>>, vector<16x32xbf16>,
    %c0_143 = arith.constant 0 : index
    %c0_144 = arith.constant 0 : index
    %499 = vector.load %arg20[%c0_143, %c0_144] : memref<128x64xbf16, #tpu.memory_space<vmem>>, vector<128x64xbf16>
    %c0_145 = arith.constant 0 : index
    %c0_146 = arith.constant 0 : index
    %500 = vector.load %arg7[%c0_145, %c0_146] : memref<64x128xbf16, #tpu.memory_space<vmem>>, vector<64x128xbf16>
    %cst_147 = arith.constant dense<0.000000e+00> : vector<128x128xf32>
    %501 = tpu.matmul %499, %500, %cst_147 {dimension_numbers = #tpu.dot_dimension_numbers<[1], [0], [0], [1], [0, 0, 1, 1], [], []>} : vector<128x64xbf16>, vector<64x128xbf16>, vector<128x128xf32> -> vector<128x128xf32>
    %c0_148 = arith.constant 0 : index
    %c0_149 = arith.constant 0 : index
    %502 = vector.load %arg9[%c0_148, %c0_149] : memref<1x128xf32, #tpu.memory_space<vmem>>, vector<1x128xf32>
    %503 = vector.broadcast %502 : vector<1x128xf32> to vector<128x128xf32>
    %504 = arith.addf %501, %503 : vector<128x128xf32>
    %c0_150 = arith.constant 0 : index
    %c0_151 = arith.constant 0 : index
    %505 = vector.load %arg18[%c0_150, %c0_151] : memref<128x128xf32, #tpu.memory_space<vmem>>, vector<128x128xf32>
    tpu.vector_store %arg18[%c0_150, %c0_151], %504 {strides = array<i32>} : memref<128x128xf32, #tpu.memory_space<vmem>>, vector<128x128xf32>,
    %c0_152 = arith.constant 0 : index
    %c0_153 = arith.constant 0 : index
    %506 = vector.load %arg10[%c0_152, %c0_153] : memref<64x128xbf16, #tpu.memory_space<vmem>>, vector<64x128xbf16>
    %cst_154 = arith.constant dense<0.000000e+00> : vector<128x128xf32>
    %507 = tpu.matmul %499, %506, %cst_154 {dimension_numbers = #tpu.dot_dimension_numbers<[1], [0], [0], [1], [0, 0, 1, 1], [], []>} : vector<128x64xbf16>, vector<64x128xbf16>, vector<128x128xf32> -> vector<128x128xf32>
    %c0_155 = arith.constant 0 : index
    %c0_156 = arith.constant 0 : index
    %508 = vector.load %arg12[%c0_155, %c0_156] : memref<1x128xf32, #tpu.memory_space<vmem>>, vector<1x128xf32>
    %509 = vector.broadcast %508 : vector<1x128xf32> to vector<128x128xf32>
    %510 = arith.addf %507, %509 : vector<128x128xf32>
    %c0_157 = arith.constant 0 : index
    %c0_158 = arith.constant 0 : index
    %511 = vector.load %arg19[%c0_157, %c0_158] : memref<128x128xf32, #tpu.memory_space<vmem>>, vector<128x128xf32>
    tpu.vector_store %arg19[%c0_157, %c0_158], %510 {strides = array<i32>} : memref<128x128xf32, #tpu.memory_space<vmem>>, vector<128x128xf32>,
    %c0_159 = arith.constant 0 : index
    %c0_160 = arith.constant 0 : index
    %512 = vector.load %arg8[%c0_159, %c0_160] : memref<32x128xbf16, #tpu.memory_space<vmem>>, vector<32x128xbf16>
    %c0_161 = arith.constant 0 : index
    %c0_162 = arith.constant 0 : index
    %513 = vector.load %arg11[%c0_161, %c0_162] : memref<32x128xbf16, #tpu.memory_space<vmem>>, vector<32x128xbf16>
    %cst_163 = arith.constant 0.000000e+00 : bf16
    %514 = vector.broadcast %cst_163 : bf16 to vector<16x32xbf16>
    %cst_164 = arith.constant 0.000000e+00 : bf16
    %515 = vector.broadcast %cst_164 : bf16 to vector<16x32xbf16>
    %cst_165 = arith.constant 0.000000e+00 : f32
    %516 = vector.broadcast %cst_165 : f32 to vector<16x32xf32>
    %cst_166 = arith.constant 0.000000e+00 : f32
    %517 = vector.broadcast %cst_166 : f32 to vector<16x32xf32>
    %c0_167 = arith.constant 0 : index
    %c0_168 = arith.constant 0 : index
    %518 = vector.load %arg18[%c0_167, %c0_168] : memref<128x128xf32, #tpu.memory_space<vmem>>, vector<16x128xf32>
    %cst_169 = arith.constant dense<0.000000e+00> : vector<16x128xf32>
    %519 = tpu.matmul %514, %512, %cst_169 {dimension_numbers = #tpu.dot_dimension_numbers<[1], [0], [0], [1], [0, 0, 1, 1], [], []>} : vector<16x32xbf16>, vector<32x128xbf16>, vector<16x128xf32> -> vector<16x128xf32>
    %520 = arith.addf %518, %519 : vector<16x128xf32>
    %c112_170 = arith.constant 112 : index
    %c0_171 = arith.constant 0 : index
    %521 = vector.load %arg19[%c112_170, %c0_171] : memref<128x128xf32, #tpu.memory_space<vmem>>, vector<16x128xf32>
    %cst_172 = arith.constant dense<0.000000e+00> : vector<16x128xf32>
    %522 = tpu.matmul %515, %513, %cst_172 {dimension_numbers = #tpu.dot_dimension_numbers<[1], [0], [0], [1], [0, 0, 1, 1], [], []>} : vector<16x32xbf16>, vector<32x128xbf16>, vector<16x128xf32> -> vector<16x128xf32>
    %523 = arith.addf %521, %522 : vector<16x128xf32>
    %524 = vector.extract_strided_slice %520 {offsets = [0, 0], sizes = [16, 32], strides = [1, 1]} : vector<16x128xf32> to vector<16x32xf32>
    %525 = arith.negf %524 : vector<16x32xf32>
    %526 = math.exp %525 : vector<16x32xf32>
    %cst_173 = arith.constant 1.000000e+00 : f32
    %527 = vector.broadcast %cst_173 : f32 to vector<16x32xf32>
    %528 = arith.addf %527, %526 : vector<16x32xf32>
    %529 = arith.divf %527, %528 : vector<16x32xf32>
    %530 = vector.extract_strided_slice %520 {offsets = [0, 32], sizes = [16, 32], strides = [1, 1]} : vector<16x128xf32> to vector<16x32xf32>
    %531 = arith.negf %530 : vector<16x32xf32>
    %532 = math.exp %531 : vector<16x32xf32>
    %cst_174 = arith.constant 1.000000e+00 : f32
    %533 = vector.broadcast %cst_174 : f32 to vector<16x32xf32>
    %534 = arith.addf %533, %532 : vector<16x32xf32>
    %535 = arith.divf %533, %534 : vector<16x32xf32>
    %536 = vector.extract_strided_slice %520 {offsets = [0, 64], sizes = [16, 32], strides = [1, 1]} : vector<16x128xf32> to vector<16x32xf32>
    %537 = math.tanh %536 : vector<16x32xf32>
    %538 = vector.extract_strided_slice %520 {offsets = [0, 96], sizes = [16, 32], strides = [1, 1]} : vector<16x128xf32> to vector<16x32xf32>
    %539 = arith.negf %538 : vector<16x32xf32>
    %540 = math.exp %539 : vector<16x32xf32>
    %cst_175 = arith.constant 1.000000e+00 : f32
    %541 = vector.broadcast %cst_175 : f32 to vector<16x32xf32>
    %542 = arith.addf %541, %540 : vector<16x32xf32>
    %543 = arith.divf %541, %542 : vector<16x32xf32>
    %544 = arith.mulf %535, %516 : vector<16x32xf32>
    %545 = arith.mulf %529, %537 : vector<16x32xf32>
    %546 = arith.addf %544, %545 : vector<16x32xf32>
    %547 = math.tanh %546 : vector<16x32xf32>
    %548 = arith.mulf %543, %547 : vector<16x32xf32>
    %549 = vector.extract_strided_slice %523 {offsets = [0, 0], sizes = [16, 32], strides = [1, 1]} : vector<16x128xf32> to vector<16x32xf32>
    %550 = arith.negf %549 : vector<16x32xf32>
    %551 = math.exp %550 : vector<16x32xf32>
    %cst_176 = arith.constant 1.000000e+00 : f32
    %552 = vector.broadcast %cst_176 : f32 to vector<16x32xf32>
    %553 = arith.addf %552, %551 : vector<16x32xf32>
    %554 = arith.divf %552, %553 : vector<16x32xf32>
    %555 = vector.extract_strided_slice %523 {offsets = [0, 32], sizes = [16, 32], strides = [1, 1]} : vector<16x128xf32> to vector<16x32xf32>
    %556 = arith.negf %555 : vector<16x32xf32>
    %557 = math.exp %556 : vector<16x32xf32>
    %cst_177 = arith.constant 1.000000e+00 : f32
    %558 = vector.broadcast %cst_177 : f32 to vector<16x32xf32>
    %559 = arith.addf %558, %557 : vector<16x32xf32>
    %560 = arith.divf %558, %559 : vector<16x32xf32>
    %561 = vector.extract_strided_slice %523 {offsets = [0, 64], sizes = [16, 32], strides = [1, 1]} : vector<16x128xf32> to vector<16x32xf32>
    %562 = math.tanh %561 : vector<16x32xf32>
    %563 = vector.extract_strided_slice %523 {offsets = [0, 96], sizes = [16, 32], strides = [1, 1]} : vector<16x128xf32> to vector<16x32xf32>
    %564 = arith.negf %563 : vector<16x32xf32>
    %565 = math.exp %564 : vector<16x32xf32>
    %cst_178 = arith.constant 1.000000e+00 : f32
    %566 = vector.broadcast %cst_178 : f32 to vector<16x32xf32>
    %567 = arith.addf %566, %565 : vector<16x32xf32>
    %568 = arith.divf %566, %567 : vector<16x32xf32>
    %569 = arith.mulf %560, %517 : vector<16x32xf32>
    %570 = arith.mulf %554, %562 : vector<16x32xf32>
    %571 = arith.addf %569, %570 : vector<16x32xf32>
    %572 = math.tanh %571 : vector<16x32xf32>
    %573 = arith.mulf %568, %572 : vector<16x32xf32>
    %574 = arith.truncf %548 : vector<16x32xf32> to vector<16x32xbf16>
    %575 = arith.truncf %573 : vector<16x32xf32> to vector<16x32xbf16>
    %c0_179 = arith.constant 0 : index
    %c0_180 = arith.constant 0 : index
    %576 = vector.load %arg20[%c0_179, %c0_180] : memref<128x64xbf16, #tpu.memory_space<vmem>>, vector<16x32xbf16>
    tpu.vector_store %arg20[%c0_179, %c0_180], %574 {strides = array<i32>} : memref<128x64xbf16, #tpu.memory_space<vmem>>, vector<16x32xbf16>,
    %c112_181 = arith.constant 112 : index
    %c32_182 = arith.constant 32 : index
    %577 = vector.load %arg20[%c112_181, %c32_182] : memref<128x64xbf16, #tpu.memory_space<vmem>>, vector<16x32xbf16>
    tpu.vector_store %arg20[%c112_181, %c32_182], %575 {strides = array<i32>} : memref<128x64xbf16, #tpu.memory_space<vmem>>, vector<16x32xbf16>,
    %c16_183 = arith.constant 16 : index
    %c0_184 = arith.constant 0 : index
    %578 = vector.load %arg18[%c16_183, %c0_184] : memref<128x128xf32, #tpu.memory_space<vmem>>, vector<16x128xf32>
    %cst_185 = arith.constant dense<0.000000e+00> : vector<16x128xf32>
    %579 = tpu.matmul %574, %512, %cst_185 {dimension_numbers = #tpu.dot_dimension_numbers<[1], [0], [0], [1], [0, 0, 1, 1], [], []>} : vector<16x32xbf16>, vector<32x128xbf16>, vector<16x128xf32> -> vector<16x128xf32>
    %580 = arith.addf %578, %579 : vector<16x128xf32>
    %c96_186 = arith.constant 96 : index
    %c0_187 = arith.constant 0 : index
    %581 = vector.load %arg19[%c96_186, %c0_187] : memref<128x128xf32, #tpu.memory_space<vmem>>, vector<16x128xf32>
    %cst_188 = arith.constant dense<0.000000e+00> : vector<16x128xf32>
    %582 = tpu.matmul %575, %513, %cst_188 {dimension_numbers = #tpu.dot_dimension_numbers<[1], [0], [0], [1], [0, 0, 1, 1], [], []>} : vector<16x32xbf16>, vector<32x128xbf16>, vector<16x128xf32> -> vector<16x128xf32>
    %583 = arith.addf %581, %582 : vector<16x128xf32>
    %584 = vector.extract_strided_slice %580 {offsets = [0, 0], sizes = [16, 32], strides = [1, 1]} : vector<16x128xf32> to vector<16x32xf32>
    %585 = arith.negf %584 : vector<16x32xf32>
    %586 = math.exp %585 : vector<16x32xf32>
    %cst_189 = arith.constant 1.000000e+00 : f32
    %587 = vector.broadcast %cst_189 : f32 to vector<16x32xf32>
    %588 = arith.addf %587, %586 : vector<16x32xf32>
    %589 = arith.divf %587, %588 : vector<16x32xf32>
    %590 = vector.extract_strided_slice %580 {offsets = [0, 32], sizes = [16, 32], strides = [1, 1]} : vector<16x128xf32> to vector<16x32xf32>
    %591 = arith.negf %590 : vector<16x32xf32>
    %592 = math.exp %591 : vector<16x32xf32>
    %cst_190 = arith.constant 1.000000e+00 : f32
    %593 = vector.broadcast %cst_190 : f32 to vector<16x32xf32>
    %594 = arith.addf %593, %592 : vector<16x32xf32>
    %595 = arith.divf %593, %594 : vector<16x32xf32>
    %596 = vector.extract_strided_slice %580 {offsets = [0, 64], sizes = [16, 32], strides = [1, 1]} : vector<16x128xf32> to vector<16x32xf32>
    %597 = math.tanh %596 : vector<16x32xf32>
    %598 = vector.extract_strided_slice %580 {offsets = [0, 96], sizes = [16, 32], strides = [1, 1]} : vector<16x128xf32> to vector<16x32xf32>
    %599 = arith.negf %598 : vector<16x32xf32>
    %600 = math.exp %599 : vector<16x32xf32>
    %cst_191 = arith.constant 1.000000e+00 : f32
    %601 = vector.broadcast %cst_191 : f32 to vector<16x32xf32>
    %602 = arith.addf %601, %600 : vector<16x32xf32>
    %603 = arith.divf %601, %602 : vector<16x32xf32>
    %604 = arith.mulf %595, %546 : vector<16x32xf32>
    %605 = arith.mulf %589, %597 : vector<16x32xf32>
    %606 = arith.addf %604, %605 : vector<16x32xf32>
    %607 = math.tanh %606 : vector<16x32xf32>
    %608 = arith.mulf %603, %607 : vector<16x32xf32>
    %609 = vector.extract_strided_slice %583 {offsets = [0, 0], sizes = [16, 32], strides = [1, 1]} : vector<16x128xf32> to vector<16x32xf32>
    %610 = arith.negf %609 : vector<16x32xf32>
    %611 = math.exp %610 : vector<16x32xf32>
    %cst_192 = arith.constant 1.000000e+00 : f32
    %612 = vector.broadcast %cst_192 : f32 to vector<16x32xf32>
    %613 = arith.addf %612, %611 : vector<16x32xf32>
    %614 = arith.divf %612, %613 : vector<16x32xf32>
    %615 = vector.extract_strided_slice %583 {offsets = [0, 32], sizes = [16, 32], strides = [1, 1]} : vector<16x128xf32> to vector<16x32xf32>
    %616 = arith.negf %615 : vector<16x32xf32>
    %617 = math.exp %616 : vector<16x32xf32>
    %cst_193 = arith.constant 1.000000e+00 : f32
    %618 = vector.broadcast %cst_193 : f32 to vector<16x32xf32>
    %619 = arith.addf %618, %617 : vector<16x32xf32>
    %620 = arith.divf %618, %619 : vector<16x32xf32>
    %621 = vector.extract_strided_slice %583 {offsets = [0, 64], sizes = [16, 32], strides = [1, 1]} : vector<16x128xf32> to vector<16x32xf32>
    %622 = math.tanh %621 : vector<16x32xf32>
    %623 = vector.extract_strided_slice %583 {offsets = [0, 96], sizes = [16, 32], strides = [1, 1]} : vector<16x128xf32> to vector<16x32xf32>
    %624 = arith.negf %623 : vector<16x32xf32>
    %625 = math.exp %624 : vector<16x32xf32>
    %cst_194 = arith.constant 1.000000e+00 : f32
    %626 = vector.broadcast %cst_194 : f32 to vector<16x32xf32>
    %627 = arith.addf %626, %625 : vector<16x32xf32>
    %628 = arith.divf %626, %627 : vector<16x32xf32>
    %629 = arith.mulf %620, %571 : vector<16x32xf32>
    %630 = arith.mulf %614, %622 : vector<16x32xf32>
    %631 = arith.addf %629, %630 : vector<16x32xf32>
    %632 = math.tanh %631 : vector<16x32xf32>
    %633 = arith.mulf %628, %632 : vector<16x32xf32>
    %634 = arith.truncf %608 : vector<16x32xf32> to vector<16x32xbf16>
    %635 = arith.truncf %633 : vector<16x32xf32> to vector<16x32xbf16>
    %c16_195 = arith.constant 16 : index
    %c0_196 = arith.constant 0 : index
    %636 = vector.load %arg20[%c16_195, %c0_196] : memref<128x64xbf16, #tpu.memory_space<vmem>>, vector<16x32xbf16>
    tpu.vector_store %arg20[%c16_195, %c0_196], %634 {strides = array<i32>} : memref<128x64xbf16, #tpu.memory_space<vmem>>, vector<16x32xbf16>,
    %c96_197 = arith.constant 96 : index
    %c32_198 = arith.constant 32 : index
    %637 = vector.load %arg20[%c96_197, %c32_198] : memref<128x64xbf16, #tpu.memory_space<vmem>>, vector<16x32xbf16>
    tpu.vector_store %arg20[%c96_197, %c32_198], %635 {strides = array<i32>} : memref<128x64xbf16, #tpu.memory_space<vmem>>, vector<16x32xbf16>,
    %c32_199 = arith.constant 32 : index
    %c0_200 = arith.constant 0 : index
    %638 = vector.load %arg18[%c32_199, %c0_200] : memref<128x128xf32, #tpu.memory_space<vmem>>, vector<16x128xf32>
    %cst_201 = arith.constant dense<0.000000e+00> : vector<16x128xf32>
    %639 = tpu.matmul %634, %512, %cst_201 {dimension_numbers = #tpu.dot_dimension_numbers<[1], [0], [0], [1], [0, 0, 1, 1], [], []>} : vector<16x32xbf16>, vector<32x128xbf16>, vector<16x128xf32> -> vector<16x128xf32>
    %640 = arith.addf %638, %639 : vector<16x128xf32>
    %c80_202 = arith.constant 80 : index
    %c0_203 = arith.constant 0 : index
    %641 = vector.load %arg19[%c80_202, %c0_203] : memref<128x128xf32, #tpu.memory_space<vmem>>, vector<16x128xf32>
    %cst_204 = arith.constant dense<0.000000e+00> : vector<16x128xf32>
    %642 = tpu.matmul %635, %513, %cst_204 {dimension_numbers = #tpu.dot_dimension_numbers<[1], [0], [0], [1], [0, 0, 1, 1], [], []>} : vector<16x32xbf16>, vector<32x128xbf16>, vector<16x128xf32> -> vector<16x128xf32>
    %643 = arith.addf %641, %642 : vector<16x128xf32>
    %644 = vector.extract_strided_slice %640 {offsets = [0, 0], sizes = [16, 32], strides = [1, 1]} : vector<16x128xf32> to vector<16x32xf32>
    %645 = arith.negf %644 : vector<16x32xf32>
    %646 = math.exp %645 : vector<16x32xf32>
    %cst_205 = arith.constant 1.000000e+00 : f32
    %647 = vector.broadcast %cst_205 : f32 to vector<16x32xf32>
    %648 = arith.addf %647, %646 : vector<16x32xf32>
    %649 = arith.divf %647, %648 : vector<16x32xf32>
    %650 = vector.extract_strided_slice %640 {offsets = [0, 32], sizes = [16, 32], strides = [1, 1]} : vector<16x128xf32> to vector<16x32xf32>
    %651 = arith.negf %650 : vector<16x32xf32>
    %652 = math.exp %651 : vector<16x32xf32>
    %cst_206 = arith.constant 1.000000e+00 : f32
    %653 = vector.broadcast %cst_206 : f32 to vector<16x32xf32>
    %654 = arith.addf %653, %652 : vector<16x32xf32>
    %655 = arith.divf %653, %654 : vector<16x32xf32>
    %656 = vector.extract_strided_slice %640 {offsets = [0, 64], sizes = [16, 32], strides = [1, 1]} : vector<16x128xf32> to vector<16x32xf32>
    %657 = math.tanh %656 : vector<16x32xf32>
    %658 = vector.extract_strided_slice %640 {offsets = [0, 96], sizes = [16, 32], strides = [1, 1]} : vector<16x128xf32> to vector<16x32xf32>
    %659 = arith.negf %658 : vector<16x32xf32>
    %660 = math.exp %659 : vector<16x32xf32>
    %cst_207 = arith.constant 1.000000e+00 : f32
    %661 = vector.broadcast %cst_207 : f32 to vector<16x32xf32>
    %662 = arith.addf %661, %660 : vector<16x32xf32>
    %663 = arith.divf %661, %662 : vector<16x32xf32>
    %664 = arith.mulf %655, %606 : vector<16x32xf32>
    %665 = arith.mulf %649, %657 : vector<16x32xf32>
    %666 = arith.addf %664, %665 : vector<16x32xf32>
    %667 = math.tanh %666 : vector<16x32xf32>
    %668 = arith.mulf %663, %667 : vector<16x32xf32>
    %669 = vector.extract_strided_slice %643 {offsets = [0, 0], sizes = [16, 32], strides = [1, 1]} : vector<16x128xf32> to vector<16x32xf32>
    %670 = arith.negf %669 : vector<16x32xf32>
    %671 = math.exp %670 : vector<16x32xf32>
    %cst_208 = arith.constant 1.000000e+00 : f32
    %672 = vector.broadcast %cst_208 : f32 to vector<16x32xf32>
    %673 = arith.addf %672, %671 : vector<16x32xf32>
    %674 = arith.divf %672, %673 : vector<16x32xf32>
    %675 = vector.extract_strided_slice %643 {offsets = [0, 32], sizes = [16, 32], strides = [1, 1]} : vector<16x128xf32> to vector<16x32xf32>
    %676 = arith.negf %675 : vector<16x32xf32>
    %677 = math.exp %676 : vector<16x32xf32>
    %cst_209 = arith.constant 1.000000e+00 : f32
    %678 = vector.broadcast %cst_209 : f32 to vector<16x32xf32>
    %679 = arith.addf %678, %677 : vector<16x32xf32>
    %680 = arith.divf %678, %679 : vector<16x32xf32>
    %681 = vector.extract_strided_slice %643 {offsets = [0, 64], sizes = [16, 32], strides = [1, 1]} : vector<16x128xf32> to vector<16x32xf32>
    %682 = math.tanh %681 : vector<16x32xf32>
    %683 = vector.extract_strided_slice %643 {offsets = [0, 96], sizes = [16, 32], strides = [1, 1]} : vector<16x128xf32> to vector<16x32xf32>
    %684 = arith.negf %683 : vector<16x32xf32>
    %685 = math.exp %684 : vector<16x32xf32>
    %cst_210 = arith.constant 1.000000e+00 : f32
    %686 = vector.broadcast %cst_210 : f32 to vector<16x32xf32>
    %687 = arith.addf %686, %685 : vector<16x32xf32>
    %688 = arith.divf %686, %687 : vector<16x32xf32>
    %689 = arith.mulf %680, %631 : vector<16x32xf32>
    %690 = arith.mulf %674, %682 : vector<16x32xf32>
    %691 = arith.addf %689, %690 : vector<16x32xf32>
    %692 = math.tanh %691 : vector<16x32xf32>
    %693 = arith.mulf %688, %692 : vector<16x32xf32>
    %694 = arith.truncf %668 : vector<16x32xf32> to vector<16x32xbf16>
    %695 = arith.truncf %693 : vector<16x32xf32> to vector<16x32xbf16>
    %c32_211 = arith.constant 32 : index
    %c0_212 = arith.constant 0 : index
    %696 = vector.load %arg20[%c32_211, %c0_212] : memref<128x64xbf16, #tpu.memory_space<vmem>>, vector<16x32xbf16>
    tpu.vector_store %arg20[%c32_211, %c0_212], %694 {strides = array<i32>} : memref<128x64xbf16, #tpu.memory_space<vmem>>, vector<16x32xbf16>,
    %c80_213 = arith.constant 80 : index
    %c32_214 = arith.constant 32 : index
    %697 = vector.load %arg20[%c80_213, %c32_214] : memref<128x64xbf16, #tpu.memory_space<vmem>>, vector<16x32xbf16>
    tpu.vector_store %arg20[%c80_213, %c32_214], %695 {strides = array<i32>} : memref<128x64xbf16, #tpu.memory_space<vmem>>, vector<16x32xbf16>,
    %c48_215 = arith.constant 48 : index
    %c0_216 = arith.constant 0 : index
    %698 = vector.load %arg18[%c48_215, %c0_216] : memref<128x128xf32, #tpu.memory_space<vmem>>, vector<16x128xf32>
    %cst_217 = arith.constant dense<0.000000e+00> : vector<16x128xf32>
    %699 = tpu.matmul %694, %512, %cst_217 {dimension_numbers = #tpu.dot_dimension_numbers<[1], [0], [0], [1], [0, 0, 1, 1], [], []>} : vector<16x32xbf16>, vector<32x128xbf16>, vector<16x128xf32> -> vector<16x128xf32>
    %700 = arith.addf %698, %699 : vector<16x128xf32>
    %c64_218 = arith.constant 64 : index
    %c0_219 = arith.constant 0 : index
    %701 = vector.load %arg19[%c64_218, %c0_219] : memref<128x128xf32, #tpu.memory_space<vmem>>, vector<16x128xf32>
    %cst_220 = arith.constant dense<0.000000e+00> : vector<16x128xf32>
    %702 = tpu.matmul %695, %513, %cst_220 {dimension_numbers = #tpu.dot_dimension_numbers<[1], [0], [0], [1], [0, 0, 1, 1], [], []>} : vector<16x32xbf16>, vector<32x128xbf16>, vector<16x128xf32> -> vector<16x128xf32>
    %703 = arith.addf %701, %702 : vector<16x128xf32>
    %704 = vector.extract_strided_slice %700 {offsets = [0, 0], sizes = [16, 32], strides = [1, 1]} : vector<16x128xf32> to vector<16x32xf32>
    %705 = arith.negf %704 : vector<16x32xf32>
    %706 = math.exp %705 : vector<16x32xf32>
    %cst_221 = arith.constant 1.000000e+00 : f32
    %707 = vector.broadcast %cst_221 : f32 to vector<16x32xf32>
    %708 = arith.addf %707, %706 : vector<16x32xf32>
    %709 = arith.divf %707, %708 : vector<16x32xf32>
    %710 = vector.extract_strided_slice %700 {offsets = [0, 32], sizes = [16, 32], strides = [1, 1]} : vector<16x128xf32> to vector<16x32xf32>
    %711 = arith.negf %710 : vector<16x32xf32>
    %712 = math.exp %711 : vector<16x32xf32>
    %cst_222 = arith.constant 1.000000e+00 : f32
    %713 = vector.broadcast %cst_222 : f32 to vector<16x32xf32>
    %714 = arith.addf %713, %712 : vector<16x32xf32>
    %715 = arith.divf %713, %714 : vector<16x32xf32>
    %716 = vector.extract_strided_slice %700 {offsets = [0, 64], sizes = [16, 32], strides = [1, 1]} : vector<16x128xf32> to vector<16x32xf32>
    %717 = math.tanh %716 : vector<16x32xf32>
    %718 = vector.extract_strided_slice %700 {offsets = [0, 96], sizes = [16, 32], strides = [1, 1]} : vector<16x128xf32> to vector<16x32xf32>
    %719 = arith.negf %718 : vector<16x32xf32>
    %720 = math.exp %719 : vector<16x32xf32>
    %cst_223 = arith.constant 1.000000e+00 : f32
    %721 = vector.broadcast %cst_223 : f32 to vector<16x32xf32>
    %722 = arith.addf %721, %720 : vector<16x32xf32>
    %723 = arith.divf %721, %722 : vector<16x32xf32>
    %724 = arith.mulf %715, %666 : vector<16x32xf32>
    %725 = arith.mulf %709, %717 : vector<16x32xf32>
    %726 = arith.addf %724, %725 : vector<16x32xf32>
    %727 = math.tanh %726 : vector<16x32xf32>
    %728 = arith.mulf %723, %727 : vector<16x32xf32>
    %729 = vector.extract_strided_slice %703 {offsets = [0, 0], sizes = [16, 32], strides = [1, 1]} : vector<16x128xf32> to vector<16x32xf32>
    %730 = arith.negf %729 : vector<16x32xf32>
    %731 = math.exp %730 : vector<16x32xf32>
    %cst_224 = arith.constant 1.000000e+00 : f32
    %732 = vector.broadcast %cst_224 : f32 to vector<16x32xf32>
    %733 = arith.addf %732, %731 : vector<16x32xf32>
    %734 = arith.divf %732, %733 : vector<16x32xf32>
    %735 = vector.extract_strided_slice %703 {offsets = [0, 32], sizes = [16, 32], strides = [1, 1]} : vector<16x128xf32> to vector<16x32xf32>
    %736 = arith.negf %735 : vector<16x32xf32>
    %737 = math.exp %736 : vector<16x32xf32>
    %cst_225 = arith.constant 1.000000e+00 : f32
    %738 = vector.broadcast %cst_225 : f32 to vector<16x32xf32>
    %739 = arith.addf %738, %737 : vector<16x32xf32>
    %740 = arith.divf %738, %739 : vector<16x32xf32>
    %741 = vector.extract_strided_slice %703 {offsets = [0, 64], sizes = [16, 32], strides = [1, 1]} : vector<16x128xf32> to vector<16x32xf32>
    %742 = math.tanh %741 : vector<16x32xf32>
    %743 = vector.extract_strided_slice %703 {offsets = [0, 96], sizes = [16, 32], strides = [1, 1]} : vector<16x128xf32> to vector<16x32xf32>
    %744 = arith.negf %743 : vector<16x32xf32>
    %745 = math.exp %744 : vector<16x32xf32>
    %cst_226 = arith.constant 1.000000e+00 : f32
    %746 = vector.broadcast %cst_226 : f32 to vector<16x32xf32>
    %747 = arith.addf %746, %745 : vector<16x32xf32>
    %748 = arith.divf %746, %747 : vector<16x32xf32>
    %749 = arith.mulf %740, %691 : vector<16x32xf32>
    %750 = arith.mulf %734, %742 : vector<16x32xf32>
    %751 = arith.addf %749, %750 : vector<16x32xf32>
    %752 = math.tanh %751 : vector<16x32xf32>
    %753 = arith.mulf %748, %752 : vector<16x32xf32>
    %754 = arith.truncf %728 : vector<16x32xf32> to vector<16x32xbf16>
    %755 = arith.truncf %753 : vector<16x32xf32> to vector<16x32xbf16>
    %c48_227 = arith.constant 48 : index
    %c0_228 = arith.constant 0 : index
    %756 = vector.load %arg20[%c48_227, %c0_228] : memref<128x64xbf16, #tpu.memory_space<vmem>>, vector<16x32xbf16>
    tpu.vector_store %arg20[%c48_227, %c0_228], %754 {strides = array<i32>} : memref<128x64xbf16, #tpu.memory_space<vmem>>, vector<16x32xbf16>,
    %c64_229 = arith.constant 64 : index
    %c32_230 = arith.constant 32 : index
    %757 = vector.load %arg20[%c64_229, %c32_230] : memref<128x64xbf16, #tpu.memory_space<vmem>>, vector<16x32xbf16>
    tpu.vector_store %arg20[%c64_229, %c32_230], %755 {strides = array<i32>} : memref<128x64xbf16, #tpu.memory_space<vmem>>, vector<16x32xbf16>,
    %c64_231 = arith.constant 64 : index
    %c0_232 = arith.constant 0 : index
    %758 = vector.load %arg18[%c64_231, %c0_232] : memref<128x128xf32, #tpu.memory_space<vmem>>, vector<16x128xf32>
    %cst_233 = arith.constant dense<0.000000e+00> : vector<16x128xf32>
    %759 = tpu.matmul %754, %512, %cst_233 {dimension_numbers = #tpu.dot_dimension_numbers<[1], [0], [0], [1], [0, 0, 1, 1], [], []>} : vector<16x32xbf16>, vector<32x128xbf16>, vector<16x128xf32> -> vector<16x128xf32>
    %760 = arith.addf %758, %759 : vector<16x128xf32>
    %c48_234 = arith.constant 48 : index
    %c0_235 = arith.constant 0 : index
    %761 = vector.load %arg19[%c48_234, %c0_235] : memref<128x128xf32, #tpu.memory_space<vmem>>, vector<16x128xf32>
    %cst_236 = arith.constant dense<0.000000e+00> : vector<16x128xf32>
    %762 = tpu.matmul %755, %513, %cst_236 {dimension_numbers = #tpu.dot_dimension_numbers<[1], [0], [0], [1], [0, 0, 1, 1], [], []>} : vector<16x32xbf16>, vector<32x128xbf16>, vector<16x128xf32> -> vector<16x128xf32>
    %763 = arith.addf %761, %762 : vector<16x128xf32>
    %764 = vector.extract_strided_slice %760 {offsets = [0, 0], sizes = [16, 32], strides = [1, 1]} : vector<16x128xf32> to vector<16x32xf32>
    %765 = arith.negf %764 : vector<16x32xf32>
    %766 = math.exp %765 : vector<16x32xf32>
    %cst_237 = arith.constant 1.000000e+00 : f32
    %767 = vector.broadcast %cst_237 : f32 to vector<16x32xf32>
    %768 = arith.addf %767, %766 : vector<16x32xf32>
    %769 = arith.divf %767, %768 : vector<16x32xf32>
    %770 = vector.extract_strided_slice %760 {offsets = [0, 32], sizes = [16, 32], strides = [1, 1]} : vector<16x128xf32> to vector<16x32xf32>
    %771 = arith.negf %770 : vector<16x32xf32>
    %772 = math.exp %771 : vector<16x32xf32>
    %cst_238 = arith.constant 1.000000e+00 : f32
    %773 = vector.broadcast %cst_238 : f32 to vector<16x32xf32>
    %774 = arith.addf %773, %772 : vector<16x32xf32>
    %775 = arith.divf %773, %774 : vector<16x32xf32>
    %776 = vector.extract_strided_slice %760 {offsets = [0, 64], sizes = [16, 32], strides = [1, 1]} : vector<16x128xf32> to vector<16x32xf32>
    %777 = math.tanh %776 : vector<16x32xf32>
    %778 = vector.extract_strided_slice %760 {offsets = [0, 96], sizes = [16, 32], strides = [1, 1]} : vector<16x128xf32> to vector<16x32xf32>
    %779 = arith.negf %778 : vector<16x32xf32>
    %780 = math.exp %779 : vector<16x32xf32>
    %cst_239 = arith.constant 1.000000e+00 : f32
    %781 = vector.broadcast %cst_239 : f32 to vector<16x32xf32>
    %782 = arith.addf %781, %780 : vector<16x32xf32>
    %783 = arith.divf %781, %782 : vector<16x32xf32>
    %784 = arith.mulf %775, %726 : vector<16x32xf32>
    %785 = arith.mulf %769, %777 : vector<16x32xf32>
    %786 = arith.addf %784, %785 : vector<16x32xf32>
    %787 = math.tanh %786 : vector<16x32xf32>
    %788 = arith.mulf %783, %787 : vector<16x32xf32>
    %789 = vector.extract_strided_slice %763 {offsets = [0, 0], sizes = [16, 32], strides = [1, 1]} : vector<16x128xf32> to vector<16x32xf32>
    %790 = arith.negf %789 : vector<16x32xf32>
    %791 = math.exp %790 : vector<16x32xf32>
    %cst_240 = arith.constant 1.000000e+00 : f32
    %792 = vector.broadcast %cst_240 : f32 to vector<16x32xf32>
    %793 = arith.addf %792, %791 : vector<16x32xf32>
    %794 = arith.divf %792, %793 : vector<16x32xf32>
    %795 = vector.extract_strided_slice %763 {offsets = [0, 32], sizes = [16, 32], strides = [1, 1]} : vector<16x128xf32> to vector<16x32xf32>
    %796 = arith.negf %795 : vector<16x32xf32>
    %797 = math.exp %796 : vector<16x32xf32>
    %cst_241 = arith.constant 1.000000e+00 : f32
    %798 = vector.broadcast %cst_241 : f32 to vector<16x32xf32>
    %799 = arith.addf %798, %797 : vector<16x32xf32>
    %800 = arith.divf %798, %799 : vector<16x32xf32>
    %801 = vector.extract_strided_slice %763 {offsets = [0, 64], sizes = [16, 32], strides = [1, 1]} : vector<16x128xf32> to vector<16x32xf32>
    %802 = math.tanh %801 : vector<16x32xf32>
    %803 = vector.extract_strided_slice %763 {offsets = [0, 96], sizes = [16, 32], strides = [1, 1]} : vector<16x128xf32> to vector<16x32xf32>
    %804 = arith.negf %803 : vector<16x32xf32>
    %805 = math.exp %804 : vector<16x32xf32>
    %cst_242 = arith.constant 1.000000e+00 : f32
    %806 = vector.broadcast %cst_242 : f32 to vector<16x32xf32>
    %807 = arith.addf %806, %805 : vector<16x32xf32>
    %808 = arith.divf %806, %807 : vector<16x32xf32>
    %809 = arith.mulf %800, %751 : vector<16x32xf32>
    %810 = arith.mulf %794, %802 : vector<16x32xf32>
    %811 = arith.addf %809, %810 : vector<16x32xf32>
    %812 = math.tanh %811 : vector<16x32xf32>
    %813 = arith.mulf %808, %812 : vector<16x32xf32>
    %814 = arith.truncf %788 : vector<16x32xf32> to vector<16x32xbf16>
    %815 = arith.truncf %813 : vector<16x32xf32> to vector<16x32xbf16>
    %c64_243 = arith.constant 64 : index
    %c0_244 = arith.constant 0 : index
    %816 = vector.load %arg20[%c64_243, %c0_244] : memref<128x64xbf16, #tpu.memory_space<vmem>>, vector<16x32xbf16>
    tpu.vector_store %arg20[%c64_243, %c0_244], %814 {strides = array<i32>} : memref<128x64xbf16, #tpu.memory_space<vmem>>, vector<16x32xbf16>,
    %c48_245 = arith.constant 48 : index
    %c32_246 = arith.constant 32 : index
    %817 = vector.load %arg20[%c48_245, %c32_246] : memref<128x64xbf16, #tpu.memory_space<vmem>>, vector<16x32xbf16>
    tpu.vector_store %arg20[%c48_245, %c32_246], %815 {strides = array<i32>} : memref<128x64xbf16, #tpu.memory_space<vmem>>, vector<16x32xbf16>,
    %c80_247 = arith.constant 80 : index
    %c0_248 = arith.constant 0 : index
    %818 = vector.load %arg18[%c80_247, %c0_248] : memref<128x128xf32, #tpu.memory_space<vmem>>, vector<16x128xf32>
    %cst_249 = arith.constant dense<0.000000e+00> : vector<16x128xf32>
    %819 = tpu.matmul %814, %512, %cst_249 {dimension_numbers = #tpu.dot_dimension_numbers<[1], [0], [0], [1], [0, 0, 1, 1], [], []>} : vector<16x32xbf16>, vector<32x128xbf16>, vector<16x128xf32> -> vector<16x128xf32>
    %820 = arith.addf %818, %819 : vector<16x128xf32>
    %c32_250 = arith.constant 32 : index
    %c0_251 = arith.constant 0 : index
    %821 = vector.load %arg19[%c32_250, %c0_251] : memref<128x128xf32, #tpu.memory_space<vmem>>, vector<16x128xf32>
    %cst_252 = arith.constant dense<0.000000e+00> : vector<16x128xf32>
    %822 = tpu.matmul %815, %513, %cst_252 {dimension_numbers = #tpu.dot_dimension_numbers<[1], [0], [0], [1], [0, 0, 1, 1], [], []>} : vector<16x32xbf16>, vector<32x128xbf16>, vector<16x128xf32> -> vector<16x128xf32>
    %823 = arith.addf %821, %822 : vector<16x128xf32>
    %824 = vector.extract_strided_slice %820 {offsets = [0, 0], sizes = [16, 32], strides = [1, 1]} : vector<16x128xf32> to vector<16x32xf32>
    %825 = arith.negf %824 : vector<16x32xf32>
    %826 = math.exp %825 : vector<16x32xf32>
    %cst_253 = arith.constant 1.000000e+00 : f32
    %827 = vector.broadcast %cst_253 : f32 to vector<16x32xf32>
    %828 = arith.addf %827, %826 : vector<16x32xf32>
    %829 = arith.divf %827, %828 : vector<16x32xf32>
    %830 = vector.extract_strided_slice %820 {offsets = [0, 32], sizes = [16, 32], strides = [1, 1]} : vector<16x128xf32> to vector<16x32xf32>
    %831 = arith.negf %830 : vector<16x32xf32>
    %832 = math.exp %831 : vector<16x32xf32>
    %cst_254 = arith.constant 1.000000e+00 : f32
    %833 = vector.broadcast %cst_254 : f32 to vector<16x32xf32>
    %834 = arith.addf %833, %832 : vector<16x32xf32>
    %835 = arith.divf %833, %834 : vector<16x32xf32>
    %836 = vector.extract_strided_slice %820 {offsets = [0, 64], sizes = [16, 32], strides = [1, 1]} : vector<16x128xf32> to vector<16x32xf32>
    %837 = math.tanh %836 : vector<16x32xf32>
    %838 = vector.extract_strided_slice %820 {offsets = [0, 96], sizes = [16, 32], strides = [1, 1]} : vector<16x128xf32> to vector<16x32xf32>
    %839 = arith.negf %838 : vector<16x32xf32>
    %840 = math.exp %839 : vector<16x32xf32>
    %cst_255 = arith.constant 1.000000e+00 : f32
    %841 = vector.broadcast %cst_255 : f32 to vector<16x32xf32>
    %842 = arith.addf %841, %840 : vector<16x32xf32>
    %843 = arith.divf %841, %842 : vector<16x32xf32>
    %844 = arith.mulf %835, %786 : vector<16x32xf32>
    %845 = arith.mulf %829, %837 : vector<16x32xf32>
    %846 = arith.addf %844, %845 : vector<16x32xf32>
    %847 = math.tanh %846 : vector<16x32xf32>
    %848 = arith.mulf %843, %847 : vector<16x32xf32>
    %849 = vector.extract_strided_slice %823 {offsets = [0, 0], sizes = [16, 32], strides = [1, 1]} : vector<16x128xf32> to vector<16x32xf32>
    %850 = arith.negf %849 : vector<16x32xf32>
    %851 = math.exp %850 : vector<16x32xf32>
    %cst_256 = arith.constant 1.000000e+00 : f32
    %852 = vector.broadcast %cst_256 : f32 to vector<16x32xf32>
    %853 = arith.addf %852, %851 : vector<16x32xf32>
    %854 = arith.divf %852, %853 : vector<16x32xf32>
    %855 = vector.extract_strided_slice %823 {offsets = [0, 32], sizes = [16, 32], strides = [1, 1]} : vector<16x128xf32> to vector<16x32xf32>
    %856 = arith.negf %855 : vector<16x32xf32>
    %857 = math.exp %856 : vector<16x32xf32>
    %cst_257 = arith.constant 1.000000e+00 : f32
    %858 = vector.broadcast %cst_257 : f32 to vector<16x32xf32>
    %859 = arith.addf %858, %857 : vector<16x32xf32>
    %860 = arith.divf %858, %859 : vector<16x32xf32>
    %861 = vector.extract_strided_slice %823 {offsets = [0, 64], sizes = [16, 32], strides = [1, 1]} : vector<16x128xf32> to vector<16x32xf32>
    %862 = math.tanh %861 : vector<16x32xf32>
    %863 = vector.extract_strided_slice %823 {offsets = [0, 96], sizes = [16, 32], strides = [1, 1]} : vector<16x128xf32> to vector<16x32xf32>
    %864 = arith.negf %863 : vector<16x32xf32>
    %865 = math.exp %864 : vector<16x32xf32>
    %cst_258 = arith.constant 1.000000e+00 : f32
    %866 = vector.broadcast %cst_258 : f32 to vector<16x32xf32>
    %867 = arith.addf %866, %865 : vector<16x32xf32>
    %868 = arith.divf %866, %867 : vector<16x32xf32>
    %869 = arith.mulf %860, %811 : vector<16x32xf32>
    %870 = arith.mulf %854, %862 : vector<16x32xf32>
    %871 = arith.addf %869, %870 : vector<16x32xf32>
    %872 = math.tanh %871 : vector<16x32xf32>
    %873 = arith.mulf %868, %872 : vector<16x32xf32>
    %874 = arith.truncf %848 : vector<16x32xf32> to vector<16x32xbf16>
    %875 = arith.truncf %873 : vector<16x32xf32> to vector<16x32xbf16>
    %c80_259 = arith.constant 80 : index
    %c0_260 = arith.constant 0 : index
    %876 = vector.load %arg20[%c80_259, %c0_260] : memref<128x64xbf16, #tpu.memory_space<vmem>>, vector<16x32xbf16>
    tpu.vector_store %arg20[%c80_259, %c0_260], %874 {strides = array<i32>} : memref<128x64xbf16, #tpu.memory_space<vmem>>, vector<16x32xbf16>,
    %c32_261 = arith.constant 32 : index
    %c32_262 = arith.constant 32 : index
    %877 = vector.load %arg20[%c32_261, %c32_262] : memref<128x64xbf16, #tpu.memory_space<vmem>>, vector<16x32xbf16>
    tpu.vector_store %arg20[%c32_261, %c32_262], %875 {strides = array<i32>} : memref<128x64xbf16, #tpu.memory_space<vmem>>, vector<16x32xbf16>,
    %c96_263 = arith.constant 96 : index
    %c0_264 = arith.constant 0 : index
    %878 = vector.load %arg18[%c96_263, %c0_264] : memref<128x128xf32, #tpu.memory_space<vmem>>, vector<16x128xf32>
    %cst_265 = arith.constant dense<0.000000e+00> : vector<16x128xf32>
    %879 = tpu.matmul %874, %512, %cst_265 {dimension_numbers = #tpu.dot_dimension_numbers<[1], [0], [0], [1], [0, 0, 1, 1], [], []>} : vector<16x32xbf16>, vector<32x128xbf16>, vector<16x128xf32> -> vector<16x128xf32>
    %880 = arith.addf %878, %879 : vector<16x128xf32>
    %c16_266 = arith.constant 16 : index
    %c0_267 = arith.constant 0 : index
    %881 = vector.load %arg19[%c16_266, %c0_267] : memref<128x128xf32, #tpu.memory_space<vmem>>, vector<16x128xf32>
    %cst_268 = arith.constant dense<0.000000e+00> : vector<16x128xf32>
    %882 = tpu.matmul %875, %513, %cst_268 {dimension_numbers = #tpu.dot_dimension_numbers<[1], [0], [0], [1], [0, 0, 1, 1], [], []>} : vector<16x32xbf16>, vector<32x128xbf16>, vector<16x128xf32> -> vector<16x128xf32>
    %883 = arith.addf %881, %882 : vector<16x128xf32>
    %884 = vector.extract_strided_slice %880 {offsets = [0, 0], sizes = [16, 32], strides = [1, 1]} : vector<16x128xf32> to vector<16x32xf32>
    %885 = arith.negf %884 : vector<16x32xf32>
    %886 = math.exp %885 : vector<16x32xf32>
    %cst_269 = arith.constant 1.000000e+00 : f32
    %887 = vector.broadcast %cst_269 : f32 to vector<16x32xf32>
    %888 = arith.addf %887, %886 : vector<16x32xf32>
    %889 = arith.divf %887, %888 : vector<16x32xf32>
    %890 = vector.extract_strided_slice %880 {offsets = [0, 32], sizes = [16, 32], strides = [1, 1]} : vector<16x128xf32> to vector<16x32xf32>
    %891 = arith.negf %890 : vector<16x32xf32>
    %892 = math.exp %891 : vector<16x32xf32>
    %cst_270 = arith.constant 1.000000e+00 : f32
    %893 = vector.broadcast %cst_270 : f32 to vector<16x32xf32>
    %894 = arith.addf %893, %892 : vector<16x32xf32>
    %895 = arith.divf %893, %894 : vector<16x32xf32>
    %896 = vector.extract_strided_slice %880 {offsets = [0, 64], sizes = [16, 32], strides = [1, 1]} : vector<16x128xf32> to vector<16x32xf32>
    %897 = math.tanh %896 : vector<16x32xf32>
    %898 = vector.extract_strided_slice %880 {offsets = [0, 96], sizes = [16, 32], strides = [1, 1]} : vector<16x128xf32> to vector<16x32xf32>
    %899 = arith.negf %898 : vector<16x32xf32>
    %900 = math.exp %899 : vector<16x32xf32>
    %cst_271 = arith.constant 1.000000e+00 : f32
    %901 = vector.broadcast %cst_271 : f32 to vector<16x32xf32>
    %902 = arith.addf %901, %900 : vector<16x32xf32>
    %903 = arith.divf %901, %902 : vector<16x32xf32>
    %904 = arith.mulf %895, %846 : vector<16x32xf32>
    %905 = arith.mulf %889, %897 : vector<16x32xf32>
    %906 = arith.addf %904, %905 : vector<16x32xf32>
    %907 = math.tanh %906 : vector<16x32xf32>
    %908 = arith.mulf %903, %907 : vector<16x32xf32>
    %909 = vector.extract_strided_slice %883 {offsets = [0, 0], sizes = [16, 32], strides = [1, 1]} : vector<16x128xf32> to vector<16x32xf32>
    %910 = arith.negf %909 : vector<16x32xf32>
    %911 = math.exp %910 : vector<16x32xf32>
    %cst_272 = arith.constant 1.000000e+00 : f32
    %912 = vector.broadcast %cst_272 : f32 to vector<16x32xf32>
    %913 = arith.addf %912, %911 : vector<16x32xf32>
    %914 = arith.divf %912, %913 : vector<16x32xf32>
    %915 = vector.extract_strided_slice %883 {offsets = [0, 32], sizes = [16, 32], strides = [1, 1]} : vector<16x128xf32> to vector<16x32xf32>
    %916 = arith.negf %915 : vector<16x32xf32>
    %917 = math.exp %916 : vector<16x32xf32>
    %cst_273 = arith.constant 1.000000e+00 : f32
    %918 = vector.broadcast %cst_273 : f32 to vector<16x32xf32>
    %919 = arith.addf %918, %917 : vector<16x32xf32>
    %920 = arith.divf %918, %919 : vector<16x32xf32>
    %921 = vector.extract_strided_slice %883 {offsets = [0, 64], sizes = [16, 32], strides = [1, 1]} : vector<16x128xf32> to vector<16x32xf32>
    %922 = math.tanh %921 : vector<16x32xf32>
    %923 = vector.extract_strided_slice %883 {offsets = [0, 96], sizes = [16, 32], strides = [1, 1]} : vector<16x128xf32> to vector<16x32xf32>
    %924 = arith.negf %923 : vector<16x32xf32>
    %925 = math.exp %924 : vector<16x32xf32>
    %cst_274 = arith.constant 1.000000e+00 : f32
    %926 = vector.broadcast %cst_274 : f32 to vector<16x32xf32>
    %927 = arith.addf %926, %925 : vector<16x32xf32>
    %928 = arith.divf %926, %927 : vector<16x32xf32>
    %929 = arith.mulf %920, %871 : vector<16x32xf32>
    %930 = arith.mulf %914, %922 : vector<16x32xf32>
    %931 = arith.addf %929, %930 : vector<16x32xf32>
    %932 = math.tanh %931 : vector<16x32xf32>
    %933 = arith.mulf %928, %932 : vector<16x32xf32>
    %934 = arith.truncf %908 : vector<16x32xf32> to vector<16x32xbf16>
    %935 = arith.truncf %933 : vector<16x32xf32> to vector<16x32xbf16>
    %c96_275 = arith.constant 96 : index
    %c0_276 = arith.constant 0 : index
    %936 = vector.load %arg20[%c96_275, %c0_276] : memref<128x64xbf16, #tpu.memory_space<vmem>>, vector<16x32xbf16>
    tpu.vector_store %arg20[%c96_275, %c0_276], %934 {strides = array<i32>} : memref<128x64xbf16, #tpu.memory_space<vmem>>, vector<16x32xbf16>,
    %c16_277 = arith.constant 16 : index
    %c32_278 = arith.constant 32 : index
    %937 = vector.load %arg20[%c16_277, %c32_278] : memref<128x64xbf16, #tpu.memory_space<vmem>>, vector<16x32xbf16>
    tpu.vector_store %arg20[%c16_277, %c32_278], %935 {strides = array<i32>} : memref<128x64xbf16, #tpu.memory_space<vmem>>, vector<16x32xbf16>,
    %c112_279 = arith.constant 112 : index
    %c0_280 = arith.constant 0 : index
    %938 = vector.load %arg18[%c112_279, %c0_280] : memref<128x128xf32, #tpu.memory_space<vmem>>, vector<16x128xf32>
    %cst_281 = arith.constant dense<0.000000e+00> : vector<16x128xf32>
    %939 = tpu.matmul %934, %512, %cst_281 {dimension_numbers = #tpu.dot_dimension_numbers<[1], [0], [0], [1], [0, 0, 1, 1], [], []>} : vector<16x32xbf16>, vector<32x128xbf16>, vector<16x128xf32> -> vector<16x128xf32>
    %940 = arith.addf %938, %939 : vector<16x128xf32>
    %c0_282 = arith.constant 0 : index
    %c0_283 = arith.constant 0 : index
    %941 = vector.load %arg19[%c0_282, %c0_283] : memref<128x128xf32, #tpu.memory_space<vmem>>, vector<16x128xf32>
    %cst_284 = arith.constant dense<0.000000e+00> : vector<16x128xf32>
    %942 = tpu.matmul %935, %513, %cst_284 {dimension_numbers = #tpu.dot_dimension_numbers<[1], [0], [0], [1], [0, 0, 1, 1], [], []>} : vector<16x32xbf16>, vector<32x128xbf16>, vector<16x128xf32> -> vector<16x128xf32>
    %943 = arith.addf %941, %942 : vector<16x128xf32>
    %944 = vector.extract_strided_slice %940 {offsets = [0, 0], sizes = [16, 32], strides = [1, 1]} : vector<16x128xf32> to vector<16x32xf32>
    %945 = arith.negf %944 : vector<16x32xf32>
    %946 = math.exp %945 : vector<16x32xf32>
    %cst_285 = arith.constant 1.000000e+00 : f32
    %947 = vector.broadcast %cst_285 : f32 to vector<16x32xf32>
    %948 = arith.addf %947, %946 : vector<16x32xf32>
    %949 = arith.divf %947, %948 : vector<16x32xf32>
    %950 = vector.extract_strided_slice %940 {offsets = [0, 32], sizes = [16, 32], strides = [1, 1]} : vector<16x128xf32> to vector<16x32xf32>
    %951 = arith.negf %950 : vector<16x32xf32>
    %952 = math.exp %951 : vector<16x32xf32>
    %cst_286 = arith.constant 1.000000e+00 : f32
    %953 = vector.broadcast %cst_286 : f32 to vector<16x32xf32>
    %954 = arith.addf %953, %952 : vector<16x32xf32>
    %955 = arith.divf %953, %954 : vector<16x32xf32>
    %956 = vector.extract_strided_slice %940 {offsets = [0, 64], sizes = [16, 32], strides = [1, 1]} : vector<16x128xf32> to vector<16x32xf32>
    %957 = math.tanh %956 : vector<16x32xf32>
    %958 = vector.extract_strided_slice %940 {offsets = [0, 96], sizes = [16, 32], strides = [1, 1]} : vector<16x128xf32> to vector<16x32xf32>
    %959 = arith.negf %958 : vector<16x32xf32>
    %960 = math.exp %959 : vector<16x32xf32>
    %cst_287 = arith.constant 1.000000e+00 : f32
    %961 = vector.broadcast %cst_287 : f32 to vector<16x32xf32>
    %962 = arith.addf %961, %960 : vector<16x32xf32>
    %963 = arith.divf %961, %962 : vector<16x32xf32>
    %964 = arith.mulf %955, %906 : vector<16x32xf32>
    %965 = arith.mulf %949, %957 : vector<16x32xf32>
    %966 = arith.addf %964, %965 : vector<16x32xf32>
    %967 = math.tanh %966 : vector<16x32xf32>
    %968 = arith.mulf %963, %967 : vector<16x32xf32>
    %969 = vector.extract_strided_slice %943 {offsets = [0, 0], sizes = [16, 32], strides = [1, 1]} : vector<16x128xf32> to vector<16x32xf32>
    %970 = arith.negf %969 : vector<16x32xf32>
    %971 = math.exp %970 : vector<16x32xf32>
    %cst_288 = arith.constant 1.000000e+00 : f32
    %972 = vector.broadcast %cst_288 : f32 to vector<16x32xf32>
    %973 = arith.addf %972, %971 : vector<16x32xf32>
    %974 = arith.divf %972, %973 : vector<16x32xf32>
    %975 = vector.extract_strided_slice %943 {offsets = [0, 32], sizes = [16, 32], strides = [1, 1]} : vector<16x128xf32> to vector<16x32xf32>
    %976 = arith.negf %975 : vector<16x32xf32>
    %977 = math.exp %976 : vector<16x32xf32>
    %cst_289 = arith.constant 1.000000e+00 : f32
    %978 = vector.broadcast %cst_289 : f32 to vector<16x32xf32>
    %979 = arith.addf %978, %977 : vector<16x32xf32>
    %980 = arith.divf %978, %979 : vector<16x32xf32>
    %981 = vector.extract_strided_slice %943 {offsets = [0, 64], sizes = [16, 32], strides = [1, 1]} : vector<16x128xf32> to vector<16x32xf32>
    %982 = math.tanh %981 : vector<16x32xf32>
    %983 = vector.extract_strided_slice %943 {offsets = [0, 96], sizes = [16, 32], strides = [1, 1]} : vector<16x128xf32> to vector<16x32xf32>
    %984 = arith.negf %983 : vector<16x32xf32>
    %985 = math.exp %984 : vector<16x32xf32>
    %cst_290 = arith.constant 1.000000e+00 : f32
    %986 = vector.broadcast %cst_290 : f32 to vector<16x32xf32>
    %987 = arith.addf %986, %985 : vector<16x32xf32>
    %988 = arith.divf %986, %987 : vector<16x32xf32>
    %989 = arith.mulf %980, %931 : vector<16x32xf32>
    %990 = arith.mulf %974, %982 : vector<16x32xf32>
    %991 = arith.addf %989, %990 : vector<16x32xf32>
    %992 = math.tanh %991 : vector<16x32xf32>
    %993 = arith.mulf %988, %992 : vector<16x32xf32>
    %994 = arith.truncf %968 : vector<16x32xf32> to vector<16x32xbf16>
    %995 = arith.truncf %993 : vector<16x32xf32> to vector<16x32xbf16>
    %c112_291 = arith.constant 112 : index
    %c0_292 = arith.constant 0 : index
    %996 = vector.load %arg20[%c112_291, %c0_292] : memref<128x64xbf16, #tpu.memory_space<vmem>>, vector<16x32xbf16>
    tpu.vector_store %arg20[%c112_291, %c0_292], %994 {strides = array<i32>} : memref<128x64xbf16, #tpu.memory_space<vmem>>, vector<16x32xbf16>,
    %c0_293 = arith.constant 0 : index
    %c32_294 = arith.constant 32 : index
    %997 = vector.load %arg20[%c0_293, %c32_294] : memref<128x64xbf16, #tpu.memory_space<vmem>>, vector<16x32xbf16>
    tpu.vector_store %arg20[%c0_293, %c32_294], %995 {strides = array<i32>} : memref<128x64xbf16, #tpu.memory_space<vmem>>, vector<16x32xbf16>,
    %c0_295 = arith.constant 0 : index
    %c0_296 = arith.constant 0 : index
    %998 = vector.load %arg20[%c0_295, %c0_296] : memref<128x64xbf16, #tpu.memory_space<vmem>>, vector<128x64xbf16>
    %999 = vector.extract_strided_slice %998 {offsets = [0, 0], sizes = [128, 32], strides = [1, 1]} : vector<128x64xbf16> to vector<128x32xbf16>
    %1000 = arith.extf %999 : vector<128x32xbf16> to vector<128x32xf32>
    %1001 = vector.extract_strided_slice %998 {offsets = [0, 32], sizes = [128, 32], strides = [1, 1]} : vector<128x64xbf16> to vector<128x32xbf16>
    %1002 = arith.extf %1001 : vector<128x32xbf16> to vector<128x32xf32>
    %1003 = arith.addf %1000, %1002 : vector<128x32xf32>
    %1004 = arith.truncf %1003 : vector<128x32xf32> to vector<128x32xbf16>
    %c0_297 = arith.constant 0 : index
    %c0_298 = arith.constant 0 : index
    %1005 = vector.load %arg13[%c0_297, %c0_298] : memref<32x128xbf16, #tpu.memory_space<vmem>>, vector<32x128xbf16>
    %cst_299 = arith.constant dense<0.000000e+00> : vector<128x128xf32>
    %1006 = tpu.matmul %1004, %1005, %cst_299 {dimension_numbers = #tpu.dot_dimension_numbers<[1], [0], [0], [1], [0, 0, 1, 1], [], []>} : vector<128x32xbf16>, vector<32x128xbf16>, vector<128x128xf32> -> vector<128x128xf32>
    %c0_300 = arith.constant 0 : index
    %c0_301 = arith.constant 0 : index
    %1007 = vector.load %arg14[%c0_300, %c0_301] : memref<1x128xf32, #tpu.memory_space<vmem>>, vector<1x128xf32>
    %1008 = vector.broadcast %1007 : vector<1x128xf32> to vector<128x128xf32>
    %1009 = arith.addf %1006, %1008 : vector<128x128xf32>
    %cst_302 = arith.constant 0.000000e+00 : f32
    %1010 = vector.broadcast %cst_302 : f32 to vector<128x128xf32>
    %1011 = arith.maximumf %1009, %1010 : vector<128x128xf32>
    %1012 = arith.truncf %1011 : vector<128x128xf32> to vector<128x128xbf16>
    %c0_303 = arith.constant 0 : index
    %c0_304 = arith.constant 0 : index
    %1013 = vector.load %arg15[%c0_303, %c0_304] : memref<128x128xbf16, #tpu.memory_space<vmem>>, vector<128x128xbf16>
    %cst_305 = arith.constant dense<0.000000e+00> : vector<128x128xf32>
    %1014 = tpu.matmul %1012, %1013, %cst_305 {dimension_numbers = #tpu.dot_dimension_numbers<[1], [0], [0], [1], [0, 0, 1, 1], [], []>} : vector<128x128xbf16>, vector<128x128xbf16>, vector<128x128xf32> -> vector<128x128xf32>
    %c0_306 = arith.constant 0 : index
    %c0_307 = arith.constant 0 : index
    %1015 = vector.load %arg16[%c0_306, %c0_307] : memref<1x128xf32, #tpu.memory_space<vmem>>, vector<1x128xf32>
    %1016 = vector.broadcast %1015 : vector<1x128xf32> to vector<128x128xf32>
    %1017 = arith.addf %1014, %1016 : vector<128x128xf32>
    %c0_308 = arith.constant 0 : index
    %c0_309 = arith.constant 0 : index
    %1018 = vector.load %arg17[%c0_308, %c0_309] : memref<128x128xf32, #tpu.memory_space<vmem>>, vector<128x128xf32>
    tpu.vector_store %arg17[%c0_308, %c0_309], %1017 {strides = array<i32>} : memref<128x128xf32, #tpu.memory_space<vmem>>, vector<128x128xf32>,
    return
  }
}

</mosaic_0001>

<llo_original>
// kernel: tpu_custom_call.1
$region0: #{tpu_custom_call.1}
  #allocation0 [shape = 'u32[]', space=smem, size = 0x4, offset = 0x4, fixed_abs, tag = 'smem constant byte address 0x4 - core index']
  #allocation1 [shape = 'u32[72,128]{1,0:T(1,128)}', space=vmem, size = 0x9000, scoped, tag = 'internal scratch']
  #allocation2 [shape = 'f32[128,128]{1,0:T(8,128)}', space=vmem, size = 0x10000, scoped, tag = 'scratch operand']
  #allocation3 [shape = 'f32[128,128]{1,0:T(8,128)}', space=vmem, size = 0x10000, scoped, tag = 'scratch operand']
  #allocation4 [shape = 'bf16[128,64]{1,0:T(8,128)(2,1)}', space=vmem, size = 0x8000, scoped, tag = 'scratch operand']
  %s0 = inlined_call_operand.vmem [shape: bf16[128,32], index: 0, kind: input, shape index: {}]
  %s1 = inlined_call_operand.vmem [shape: bf16[32,128], index: 1, kind: input, shape index: {}]
  %s2 = inlined_call_operand.hbm [shape: bf16[32,128], index: 2, kind: input, shape index: {}]
  %s3 = inlined_call_operand.vmem [shape: f32[1,128], index: 3, kind: input, shape index: {}]
  %s4 = inlined_call_operand.hbm [shape: bf16[32,128], index: 4, kind: input, shape index: {}]
  %s5 = inlined_call_operand.hbm [shape: bf16[32,128], index: 5, kind: input, shape index: {}]
  %s6 = inlined_call_operand.vmem [shape: f32[1,128], index: 6, kind: input, shape index: {}]
  %s7 = inlined_call_operand.hbm [shape: bf16[64,128], index: 7, kind: input, shape index: {}]
  %s8 = inlined_call_operand.hbm [shape: bf16[32,128], index: 8, kind: input, shape index: {}]
  %s9 = inlined_call_operand.vmem [shape: f32[1,128], index: 9, kind: input, shape index: {}]
  %s10 = inlined_call_operand.hbm [shape: bf16[64,128], index: 10, kind: input, shape index: {}]
  %s11 = inlined_call_operand.hbm [shape: bf16[32,128], index: 11, kind: input, shape index: {}]
  %s12 = inlined_call_operand.vmem [shape: f32[1,128], index: 12, kind: input, shape index: {}]
  %s13 = inlined_call_operand.hbm [shape: bf16[32,128], index: 13, kind: input, shape index: {}]
  %s14 = inlined_call_operand.vmem [shape: f32[1,128], index: 14, kind: input, shape index: {}]
  %s15 = inlined_call_operand.vmem [shape: bf16[128,128], index: 15, kind: input, shape index: {}]
  %s16 = inlined_call_operand.vmem [shape: f32[1,128], index: 16, kind: input, shape index: {}]
  %s17 = inlined_call_operand.hbm [shape: f32[128,128], index: 17, kind: output, shape index: {}]
  %s18 = sld [smem:[#allocation0]]
  $region110: #{tpu_custom_call.1} parent=0
    _
  %s20 = ssub.s32 1, %s18
  %s21 = scalar_select 0, %s20, %s18
  $region1: #{tpu_custom_call.1} parent=0
    #allocation5 [shape = 'u8[8192]{0}', space=vmem, size = 0x2000, scoped, tag = 'input window, operand 2, single buffered']
    #allocation6 [shape = 's32[1]{0}', space=sflag, size = 0x4, scoped, tag = 'scoped memory for tpu_custom_call.1']
    #allocation7 [shape = 's32[1]{0}', space=sflag, size = 0x4, scoped, tag = 'scoped memory for tpu_custom_call.1']
    #allocation8 [shape = 'u8[8192]{0}', space=vmem, size = 0x2000, scoped, tag = 'input window, operand 4, single buffered']
    #allocation9 [shape = 's32[1]{0}', space=sflag, size = 0x4, scoped, tag = 'scoped memory for tpu_custom_call.1']
    #allocation10 [shape = 'u8[8192]{0}', space=vmem, size = 0x2000, scoped, tag = 'input window, operand 5, single buffered']
    #allocation11 [shape = 'u8[16384]{0}', space=vmem, size = 0x4000, scoped, tag = 'input window, operand 7, single buffered']
    #allocation12 [shape = 's32[1]{0}', space=sflag, size = 0x4, scoped, tag = 'scoped memory for tpu_custom_call.1']
    #allocation13 [shape = 'u8[8192]{0}', space=vmem, size = 0x2000, scoped, tag = 'input window, operand 8, single buffered']
    #allocation14 [shape = 'u8[16384]{0}', space=vmem, size = 0x4000, scoped, tag = 'input window, operand 10, single buffered']
    #allocation15 [shape = 's32[1]{0}', space=sflag, size = 0x4, scoped, tag = 'scoped memory for tpu_custom_call.1']
    #allocation16 [shape = 'u8[8192]{0}', space=vmem, size = 0x2000, scoped, tag = 'input window, operand 11, single buffered']
    #allocation17 [shape = 'u8[8192]{0}', space=vmem, size = 0x2000, scoped, tag = 'input window, operand 13, single buffered']
    #allocation18 [shape = 's32[1]{0}', space=sflag, size = 0x4, scoped, tag = 'scoped memory for tpu_custom_call.1']
    #allocation19 [shape = 'u8[65536]{0}', space=vmem, size = 0x10000, scoped, tag = 'output window, operand 0, single buffered']
    %22 = vsyncpa [#allocation6], 0
    %23 = vsyncpa [#allocation9], 0
    %24 = vsyncpa [#allocation12], 0
    %25 = vsyncpa [#allocation15], 0
    %26 = vsyncpa [#allocation18], 0
    %27 = vsyncpa [#allocation7], 0
    // Predicated region
    $region2: #{tpu_custom_call.1} parent=1 // pred_check
      _
    $region3: #{tpu_custom_call.1} parent=1 // pred_check_branch
      %29 = sbr.rel (0) target = $region5
    $region4: #{tpu_custom_call.1} parent=1 // pred_region
      _
    $region5: #{tpu_custom_call.1} parent=1 // pred_fallthru
      _
    // Predicated region
    $region6: #{tpu_custom_call.1} parent=1 // pred_check
      _
    $region7: #{tpu_custom_call.1} parent=1 // pred_check_branch
      %31 = sbr.rel (0) target = $region9
    $region8: #{tpu_custom_call.1} parent=1 // pred_region
      _
    $region9: #{tpu_custom_call.1} parent=1 // pred_fallthru
      _
    // Predicated region
    $region10: #{tpu_custom_call.1} parent=1 // pred_check
      _
    $region11: #{tpu_custom_call.1} parent=1 // pred_check_branch
      %33 = sbr.rel (0) target = $region13
    $region12: #{tpu_custom_call.1} parent=1 // pred_region
      %35 = vsyncadd [#allocation6], 0
      %s36 = sshll.u32 %s2, 4
      %s37 = int_to_ptr.hbm [resolvable:$true] %s36
      %s38 = sshll.u32 [#allocation5], 4
      %s39 = int_to_ptr.vmem [resolvable:$true] %s38
      %44 = dma.hbm_to_vmem [thread:$0]  %s37, 256, %s39, [#allocation6], 64, 64, 4
    $region13: #{tpu_custom_call.1} parent=1 // pred_fallthru
      _
    // Predicated region
    $region14: #{tpu_custom_call.1} parent=1 // pred_check
      _
    $region15: #{tpu_custom_call.1} parent=1 // pred_check_branch
      %46 = sbr.rel (0) target = $region17
    $region16: #{tpu_custom_call.1} parent=1 // pred_region
      _
    $region17: #{tpu_custom_call.1} parent=1 // pred_fallthru
      _
    // Predicated region
    $region18: #{tpu_custom_call.1} parent=1 // pred_check
      _
    $region19: #{tpu_custom_call.1} parent=1 // pred_check_branch
      %48 = sbr.rel (0) target = $region21
    $region20: #{tpu_custom_call.1} parent=1 // pred_region
      %50 = vsyncadd [#allocation9], 0
      %s51 = sshll.u32 %s4, 4
      %s52 = int_to_ptr.hbm [resolvable:$true] %s51
      %s53 = sshll.u32 [#allocation8], 4
      %s54 = int_to_ptr.vmem [resolvable:$true] %s53
      %59 = dma.hbm_to_vmem [thread:$0]  %s52, 256, %s54, [#allocation9], 64, 64, 4
    $region21: #{tpu_custom_call.1} parent=1 // pred_fallthru
      _
    // Predicated region
    $region22: #{tpu_custom_call.1} parent=1 // pred_check
      _
    $region23: #{tpu_custom_call.1} parent=1 // pred_check_branch
      %61 = sbr.rel (0) target = $region25
    $region24: #{tpu_custom_call.1} parent=1 // pred_region
      %63 = vsyncadd [#allocation9], 0
      %s64 = sshll.u32 %s5, 4
      %s65 = int_to_ptr.hbm [resolvable:$true] %s64
      %s66 = sshll.u32 [#allocation10], 4
      %s67 = int_to_ptr.vmem [resolvable:$true] %s66
      %72 = dma.hbm_to_vmem [thread:$0]  %s65, 256, %s67, [#allocation9], 64, 64, 4
    $region25: #{tpu_custom_call.1} parent=1 // pred_fallthru
      _
    // Predicated region
    $region26: #{tpu_custom_call.1} parent=1 // pred_check
      _
    $region27: #{tpu_custom_call.1} parent=1 // pred_check_branch
      %74 = sbr.rel (0) target = $region29
    $region28: #{tpu_custom_call.1} parent=1 // pred_region
      _
    $region29: #{tpu_custom_call.1} parent=1 // pred_fallthru
      _
    // Predicated region
    $region30: #{tpu_custom_call.1} parent=1 // pred_check
      _
    $region31: #{tpu_custom_call.1} parent=1 // pred_check_branch
      %76 = sbr.rel (0) target = $region33
    $region32: #{tpu_custom_call.1} parent=1 // pred_region
      %78 = vsyncadd [#allocation12], 0
      %s79 = sshll.u32 %s7, 4
      %s80 = int_to_ptr.hbm [resolvable:$true] %s79
      %s81 = sshll.u32 [#allocation11], 4
      %s82 = int_to_ptr.vmem [resolvable:$true] %s81
      %87 = dma.hbm_to_vmem [thread:$0]  %s80, 512, %s82, [#allocation12], 64, 64, 4
    $region33: #{tpu_custom_call.1} parent=1 // pred_fallthru
      _
    // Predicated region
    $region34: #{tpu_custom_call.1} parent=1 // pred_check
      _
    $region35: #{tpu_custom_call.1} parent=1 // pred_check_branch
      %89 = sbr.rel (0) target = $region37
    $region36: #{tpu_custom_call.1} parent=1 // pred_region
      %91 = vsyncadd [#allocation12], 0
      %s92 = sshll.u32 %s8, 4
      %s93 = int_to_ptr.hbm [resolvable:$true] %s92
      %s94 = sshll.u32 [#allocation13], 4
      %s95 = int_to_ptr.vmem [resolvable:$true] %s94
      %100 = dma.hbm_to_vmem [thread:$0]  %s93, 256, %s95, [#allocation12], 64, 64, 4
    $region37: #{tpu_custom_call.1} parent=1 // pred_fallthru
      _
    // Predicated region
    $region38: #{tpu_custom_call.1} parent=1 // pred_check
      _
    $region39: #{tpu_custom_call.1} parent=1 // pred_check_branch
      %102 = sbr.rel (0) target = $region41
    $region40: #{tpu_custom_call.1} parent=1 // pred_region
      _
    $region41: #{tpu_custom_call.1} parent=1 // pred_fallthru
      _
    // Predicated region
    $region42: #{tpu_custom_call.1} parent=1 // pred_check
      _
    $region43: #{tpu_custom_call.1} parent=1 // pred_check_branch
      %104 = sbr.rel (0) target = $region45
    $region44: #{tpu_custom_call.1} parent=1 // pred_region
      %106 = vsyncadd [#allocation15], 0
      %s107 = sshll.u32 %s10, 4
      %s108 = int_to_ptr.hbm [resolvable:$true] %s107
      %s109 = sshll.u32 [#allocation14], 4
      %s110 = int_to_ptr.vmem [resolvable:$true] %s109
      %115 = dma.hbm_to_vmem [thread:$0]  %s108, 512, %s110, [#allocation15], 64, 64, 4
    $region45: #{tpu_custom_call.1} parent=1 // pred_fallthru
      _
    // Predicated region
    $region46: #{tpu_custom_call.1} parent=1 // pred_check
      _
    $region47: #{tpu_custom_call.1} parent=1 // pred_check_branch
      %117 = sbr.rel (0) target = $region49
    $region48: #{tpu_custom_call.1} parent=1 // pred_region
      %119 = vsyncadd [#allocation15], 0
      %s120 = sshll.u32 %s11, 4
      %s121 = int_to_ptr.hbm [resolvable:$true] %s120
      %s122 = sshll.u32 [#allocation16], 4
      %s123 = int_to_ptr.vmem [resolvable:$true] %s122
      %128 = dma.hbm_to_vmem [thread:$0]  %s121, 256, %s123, [#allocation15], 64, 64, 4
    $region49: #{tpu_custom_call.1} parent=1 // pred_fallthru
      _
    // Predicated region
    $region50: #{tpu_custom_call.1} parent=1 // pred_check
      _
    $region51: #{tpu_custom_call.1} parent=1 // pred_check_branch
      %130 = sbr.rel (0) target = $region53
    $region52: #{tpu_custom_call.1} parent=1 // pred_region
      _
    $region53: #{tpu_custom_call.1} parent=1 // pred_fallthru
      _
    // Predicated region
    $region54: #{tpu_custom_call.1} parent=1 // pred_check
      _
    $region55: #{tpu_custom_call.1} parent=1 // pred_check_branch
      %132 = sbr.rel (0) target = $region57
    $region56: #{tpu_custom_call.1} parent=1 // pred_region
      %134 = vsyncadd [#allocation18], 0
      %s135 = sshll.u32 %s13, 4
      %s136 = int_to_ptr.hbm [resolvable:$true] %s135
      %s137 = sshll.u32 [#allocation17], 4
      %s138 = int_to_ptr.vmem [resolvable:$true] %s137
      %143 = dma.hbm_to_vmem [thread:$0]  %s136, 256, %s138, [#allocation18], 64, 64, 4
    $region57: #{tpu_custom_call.1} parent=1 // pred_fallthru
      _
    // Predicated region
    $region58: #{tpu_custom_call.1} parent=1 // pred_check
      _
    $region59: #{tpu_custom_call.1} parent=1 // pred_check_branch
      %145 = sbr.rel (0) target = $region61
    $region60: #{tpu_custom_call.1} parent=1 // pred_region
      _
    $region61: #{tpu_custom_call.1} parent=1 // pred_fallthru
      _
    // Predicated region
    $region62: #{tpu_custom_call.1} parent=1 // pred_check
      _
    $region63: #{tpu_custom_call.1} parent=1 // pred_check_branch
      %147 = sbr.rel (0) target = $region65
    $region64: #{tpu_custom_call.1} parent=1 // pred_region
      _
    $region65: #{tpu_custom_call.1} parent=1 // pred_fallthru
      _
    // Predicated region
    $region66: #{tpu_custom_call.1} parent=1 // pred_check
      _
    $region67: #{tpu_custom_call.1} parent=1 // pred_check_branch
      %149 = sbr.rel (0) target = $region69
    $region68: #{tpu_custom_call.1} parent=1 // pred_region
      _
    $region69: #{tpu_custom_call.1} parent=1 // pred_fallthru
      _
    // Predicated region
    $region70: #{tpu_custom_call.1} parent=1 // pred_check
      _
    $region71: #{tpu_custom_call.1} parent=1 // pred_check_branch
      %151 = sbr.rel (0) target = $region73
    $region72: #{tpu_custom_call.1} parent=1 // pred_region
      %153 = dma.done [#allocation6], 256
    $region73: #{tpu_custom_call.1} parent=1 // pred_fallthru
      _
    // Predicated region
    $region74: #{tpu_custom_call.1} parent=1 // pred_check
      _
    $region75: #{tpu_custom_call.1} parent=1 // pred_check_branch
      %155 = sbr.rel (0) target = $region77
    $region76: #{tpu_custom_call.1} parent=1 // pred_region
      %157 = dma.done [#allocation9], 256
    $region77: #{tpu_custom_call.1} parent=1 // pred_fallthru
      _
    // Predicated region
    $region78: #{tpu_custom_call.1} parent=1 // pred_check
      _
    $region79: #{tpu_custom_call.1} parent=1 // pred_check_branch
      %159 = sbr.rel (0) target = $region81
    $region80: #{tpu_custom_call.1} parent=1 // pred_region
      %161 = dma.done [#allocation9], 256
    $region81: #{tpu_custom_call.1} parent=1 // pred_fallthru
      _
    // Predicated region
    $region82: #{tpu_custom_call.1} parent=1 // pred_check
      _
    $region83: #{tpu_custom_call.1} parent=1 // pred_check_branch
      %163 = sbr.rel (0) target = $region85
    $region84: #{tpu_custom_call.1} parent=1 // pred_region
      %165 = dma.done [#allocation12], 512
    $region85: #{tpu_custom_call.1} parent=1 // pred_fallthru
      _
    // Predicated region
    $region86: #{tpu_custom_call.1} parent=1 // pred_check
      _
    $region87: #{tpu_custom_call.1} parent=1 // pred_check_branch
      %167 = sbr.rel (0) target = $region89
    $region88: #{tpu_custom_call.1} parent=1 // pred_region
      %169 = dma.done [#allocation12], 256
    $region89: #{tpu_custom_call.1} parent=1 // pred_fallthru
      _
    // Predicated region
    $region90: #{tpu_custom_call.1} parent=1 // pred_check
      _
    $region91: #{tpu_custom_call.1} parent=1 // pred_check_branch
      %171 = sbr.rel (0) target = $region93
    $region92: #{tpu_custom_call.1} parent=1 // pred_region
      %173 = dma.done [#allocation15], 512
    $region93: #{tpu_custom_call.1} parent=1 // pred_fallthru
      _
    // Predicated region
    $region94: #{tpu_custom_call.1} parent=1 // pred_check
      _
    $region95: #{tpu_custom_call.1} parent=1 // pred_check_branch
      %175 = sbr.rel (0) target = $region97
    $region96: #{tpu_custom_call.1} parent=1 // pred_region
      %177 = dma.done [#allocation15], 256
    $region97: #{tpu_custom_call.1} parent=1 // pred_fallthru
      _
    // Predicated region
    $region98: #{tpu_custom_call.1} parent=1 // pred_check
      _
    $region99: #{tpu_custom_call.1} parent=1 // pred_check_branch
      %179 = sbr.rel (0) target = $region101
    $region100: #{tpu_custom_call.1} parent=1 // pred_region
      %181 = dma.done [#allocation18], 256
    $region101: #{tpu_custom_call.1} parent=1 // pred_fallthru
      _
    %v183 = vld [vmem:[%s0] sm:$0xf]
    %v184 = vld [vmem:[%s0 + $0x4] sm:$0xf]
    %v185 = vld [vmem:[%s0 + $0x8] sm:$0xf]
    %v186 = vld [vmem:[%s0 + $0xc] sm:$0xf]
    %v187 = vld [vmem:[%s0 + $0x10] sm:$0xf]
    %v188 = vld [vmem:[%s0 + $0x14] sm:$0xf]
    %v189 = vld [vmem:[%s0 + $0x18] sm:$0xf]
    %v190 = vld [vmem:[%s0 + $0x1c] sm:$0xf]
    %v191 = vld [vmem:[%s0 + $0x20] sm:$0xf]
    %v192 = vld [vmem:[%s0 + $0x24] sm:$0xf]
    %v193 = vld [vmem:[%s0 + $0x28] sm:$0xf]
    %v194 = vld [vmem:[%s0 + $0x2c] sm:$0xf]
    %v195 = vld [vmem:[%s0 + $0x30] sm:$0xf]
    %v196 = vld [vmem:[%s0 + $0x34] sm:$0xf]
    %v197 = vld [vmem:[%s0 + $0x38] sm:$0xf]
    %v198 = vld [vmem:[%s0 + $0x3c] sm:$0xf]
    %v199 = vld [vmem:[%s1] sm:$0xf]
    %v200 = vld [vmem:[%s1 + $0x4] sm:$0xf]
    %v201 = vld [vmem:[%s1 + $0x8] sm:$0xf]
    %v202 = vld [vmem:[%s1 + $0xc] sm:$0xf]
    %v203 = vld [vmem:[%s3] sm:$0x1]
    %v205 = vperm.slane %v203, 0
    %v223 = vunpack.c.l.b16 %v183
    %v224 = vunpack.c.l.b16 %v184
    %v225 = vunpack.c.l.b16 %v185
    %v226 = vunpack.c.l.b16 %v186
    %v227 = vunpack.c.l.b16 %v187
    %v228 = vunpack.c.l.b16 %v188
    %v229 = vunpack.c.l.b16 %v189
    %v230 = vunpack.c.l.b16 %v190
    %v231 = vunpack.c.l.b16 %v191
    %v232 = vunpack.c.l.b16 %v192
    %v233 = vunpack.c.l.b16 %v193
    %v234 = vunpack.c.l.b16 %v194
    %v235 = vunpack.c.l.b16 %v195
    %v236 = vunpack.c.l.b16 %v196
    %v237 = vunpack.c.l.b16 %v197
    %v238 = vunpack.c.l.b16 %v198
    %v239 = vpack.c.b16 %v224, %v223
    %v240 = vpack.c.b16 %v226, %v225
    %v241 = vpack.c.b16 %v228, %v227
    %v242 = vpack.c.b16 %v230, %v229
    %v243 = vpack.c.b16 %v232, %v231
    %v244 = vpack.c.b16 %v234, %v233
    %v245 = vpack.c.b16 %v236, %v235
    %v246 = vpack.c.b16 %v238, %v237
    %v251 = vunpack.c.l.b16 %v199
    %v252 = vunpack.c.l.b16 %v200
    %v253 = vunpack.c.l.b16 %v201
    %v254 = vunpack.c.l.b16 %v202
    %v255 = vpack.c.b16 %v252, %v251
    %v256 = vpack.c.b16 %v254, %v253
    %vm259 = vcmask 261120
    %v261 = vsel %vm259, %v239, 0
    %v264 = vsel %vm259, %v240, 0
    %v267 = vsel %vm259, %v241, 0
    %v270 = vsel %vm259, %v242, 0
    %v273 = vsel %vm259, %v243, 0
    %v276 = vsel %vm259, %v244, 0
    %v279 = vsel %vm259, %v245, 0
    %v282 = vsel %vm259, %v246, 0
    %284 = vmatpush.bf16.msra.mxu0 0
    %285 = vmatpush.bf16.msra.mxu0 0
    %286 = vmatpush.bf16.msra.mxu0 0
    %287 = vmatpush.bf16.msra.mxu0 0
    %288 = vmatpush.bf16.msra.mxu0 0
    %289 = vmatpush.bf16.msra.mxu0 0
    %290 = vmatpush.bf16.msra.mxu0 %v256
    %291 = vmatpush.bf16.msra.mxu0 %v255
    %292 = vmatmul.bf16.gmra.mxu0 %v261
    %v293 = vpop.f32.mrf.mxu0
    %v294 = vadd.f32 %v205, %v293
    %v295 = vpop.f32.mrf.mxu0
    %v296 = vadd.f32 %v205, %v295
    %297 = vmatmul.bf16.gmra.mxu0 %v264
    %v298 = vpop.f32.mrf.mxu0
    %v299 = vadd.f32 %v205, %v298
    %v300 = vpop.f32.mrf.mxu0
    %v301 = vadd.f32 %v205, %v300
    %302 = vmatmul.bf16.gmra.mxu0 %v267
    %v303 = vpop.f32.mrf.mxu0
    %v304 = vadd.f32 %v205, %v303
    %v305 = vpop.f32.mrf.mxu0
    %v306 = vadd.f32 %v205, %v305
    %307 = vmatmul.bf16.gmra.mxu0 %v270
    %v308 = vpop.f32.mrf.mxu0
    %v309 = vadd.f32 %v205, %v308
    %v310 = vpop.f32.mrf.mxu0
    %v311 = vadd.f32 %v205, %v310
    %312 = vmatmul.bf16.gmra.mxu0 %v273
    %v313 = vpop.f32.mrf.mxu0
    %v314 = vadd.f32 %v205, %v313
    %v315 = vpop.f32.mrf.mxu0
    %v316 = vadd.f32 %v205, %v315
    %317 = vmatmul.bf16.gmra.mxu0 %v276
    %v318 = vpop.f32.mrf.mxu0
    %v319 = vadd.f32 %v205, %v318
    %v320 = vpop.f32.mrf.mxu0
    %v321 = vadd.f32 %v205, %v320
    %322 = vmatmul.bf16.gmra.mxu0 %v279
    %v323 = vpop.f32.mrf.mxu0
    %v324 = vadd.f32 %v205, %v323
    %v325 = vpop.f32.mrf.mxu0
    %v326 = vadd.f32 %v205, %v325
    %327 = vmatmul.bf16.gmra.mxu0 %v282
    %v328 = vpop.f32.mrf.mxu0
    %v329 = vadd.f32 %v205, %v328
    %v330 = vpop.f32.mrf.mxu0
    %v331 = vadd.f32 %v205, %v330
    %332 = vdwg.mxu0
    %333 = vst [vmem:[#allocation2] sm:$0xff] %v294
    %334 = vst [vmem:[#allocation2 + $0x8] sm:$0xff] %v296
    %335 = vst [vmem:[#allocation2 + $0x10] sm:$0xff] %v299
    %336 = vst [vmem:[#allocation2 + $0x18] sm:$0xff] %v301
    %337 = vst [vmem:[#allocation2 + $0x20] sm:$0xff] %v304
    %338 = vst [vmem:[#allocation2 + $0x28] sm:$0xff] %v306
    %339 = vst [vmem:[#allocation2 + $0x30] sm:$0xff] %v309
    %340 = vst [vmem:[#allocation2 + $0x38] sm:$0xff] %v311
    %341 = vst [vmem:[#allocation2 + $0x40] sm:$0xff] %v314
    %342 = vst [vmem:[#allocation2 + $0x48] sm:$0xff] %v316
    %343 = vst [vmem:[#allocation2 + $0x50] sm:$0xff] %v319
    %344 = vst [vmem:[#allocation2 + $0x58] sm:$0xff] %v321
    %345 = vst [vmem:[#allocation2 + $0x60] sm:$0xff] %v324
    %346 = vst [vmem:[#allocation2 + $0x68] sm:$0xff] %v326
    %347 = vst [vmem:[#allocation2 + $0x70] sm:$0xff] %v329
    %348 = vst [vmem:[#allocation2 + $0x78] sm:$0xff] %v331
    %v349 = vld [vmem:[#allocation8] sm:$0xf]
    %v350 = vld [vmem:[#allocation8 + $0x4] sm:$0xf]
    %v351 = vld [vmem:[#allocation8 + $0x8] sm:$0xf]
    %v352 = vld [vmem:[#allocation8 + $0xc] sm:$0xf]
    %v353 = vld [vmem:[%s6] sm:$0x1]
    %v355 = vperm.slane %v353, 0
    %v361 = vunpack.c.l.b16 %v349
    %v362 = vunpack.c.l.b16 %v350
    %v363 = vunpack.c.l.b16 %v351
    %v364 = vunpack.c.l.b16 %v352
    %v365 = vpack.c.b16 %v362, %v361
    %v366 = vpack.c.b16 %v364, %v363
    %369 = vmatpush.bf16.msra.mxu0 0
    %370 = vmatpush.bf16.msra.mxu0 0
    %371 = vmatpush.bf16.msra.mxu0 0
    %372 = vmatpush.bf16.msra.mxu0 0
    %373 = vmatpush.bf16.msra.mxu0 0
    %374 = vmatpush.bf16.msra.mxu0 0
    %375 = vmatpush.bf16.msra.mxu0 %v366
    %376 = vmatpush.bf16.msra.mxu0 %v365
    %377 = vmatmul.bf16.gmra.mxu0 %v261
    %v378 = vpop.f32.mrf.mxu0
    %v379 = vadd.f32 %v355, %v378
    %v380 = vpop.f32.mrf.mxu0
    %v381 = vadd.f32 %v355, %v380
    %382 = vmatmul.bf16.gmra.mxu0 %v264
    %v383 = vpop.f32.mrf.mxu0
    %v384 = vadd.f32 %v355, %v383
    %v385 = vpop.f32.mrf.mxu0
    %v386 = vadd.f32 %v355, %v385
    %387 = vmatmul.bf16.gmra.mxu0 %v267
    %v388 = vpop.f32.mrf.mxu0
    %v389 = vadd.f32 %v355, %v388
    %v390 = vpop.f32.mrf.mxu0
    %v391 = vadd.f32 %v355, %v390
    %392 = vmatmul.bf16.gmra.mxu0 %v270
    %v393 = vpop.f32.mrf.mxu0
    %v394 = vadd.f32 %v355, %v393
    %v395 = vpop.f32.mrf.mxu0
    %v396 = vadd.f32 %v355, %v395
    %397 = vmatmul.bf16.gmra.mxu0 %v273
    %v398 = vpop.f32.mrf.mxu0
    %v399 = vadd.f32 %v355, %v398
    %v400 = vpop.f32.mrf.mxu0
    %v401 = vadd.f32 %v355, %v400
    %402 = vmatmul.bf16.gmra.mxu0 %v276
    %v403 = vpop.f32.mrf.mxu0
    %v404 = vadd.f32 %v355, %v403
    %v405 = vpop.f32.mrf.mxu0
    %v406 = vadd.f32 %v355, %v405
    %407 = vmatmul.bf16.gmra.mxu0 %v279
    %v408 = vpop.f32.mrf.mxu0
    %v409 = vadd.f32 %v355, %v408
    %v410 = vpop.f32.mrf.mxu0
    %v411 = vadd.f32 %v355, %v410
    %412 = vmatmul.bf16.gmra.mxu0 %v282
    %v413 = vpop.f32.mrf.mxu0
    %v414 = vadd.f32 %v355, %v413
    %v415 = vpop.f32.mrf.mxu0
    %v416 = vadd.f32 %v355, %v415
    %417 = vdwg.mxu0
    %418 = vst [vmem:[#allocation3] sm:$0xff] %v379
    %419 = vst [vmem:[#allocation3 + $0x8] sm:$0xff] %v381
    %420 = vst [vmem:[#allocation3 + $0x10] sm:$0xff] %v384
    %421 = vst [vmem:[#allocation3 + $0x18] sm:$0xff] %v386
    %422 = vst [vmem:[#allocation3 + $0x20] sm:$0xff] %v389
    %423 = vst [vmem:[#allocation3 + $0x28] sm:$0xff] %v391
    %424 = vst [vmem:[#allocation3 + $0x30] sm:$0xff] %v394
    %425 = vst [vmem:[#allocation3 + $0x38] sm:$0xff] %v396
    %426 = vst [vmem:[#allocation3 + $0x40] sm:$0xff] %v399
    %427 = vst [vmem:[#allocation3 + $0x48] sm:$0xff] %v401
    %428 = vst [vmem:[#allocation3 + $0x50] sm:$0xff] %v404
    %429 = vst [vmem:[#allocation3 + $0x58] sm:$0xff] %v406
    %430 = vst [vmem:[#allocation3 + $0x60] sm:$0xff] %v409
    %431 = vst [vmem:[#allocation3 + $0x68] sm:$0xff] %v411
    %432 = vst [vmem:[#allocation3 + $0x70] sm:$0xff] %v414
    %433 = vst [vmem:[#allocation3 + $0x78] sm:$0xff] %v416
    %v434 = vld [vmem:[#allocation5] sm:$0xf]
    %v435 = vld [vmem:[#allocation5 + $0x4] sm:$0xf]
    %v436 = vld [vmem:[#allocation5 + $0x8] sm:$0xf]
    %v437 = vld [vmem:[#allocation5 + $0xc] sm:$0xf]
    %v438 = vld [vmem:[#allocation10] sm:$0xf]
    %v439 = vld [vmem:[#allocation10 + $0x4] sm:$0xf]
    %v440 = vld [vmem:[#allocation10 + $0x8] sm:$0xf]
    %v441 = vld [vmem:[#allocation10 + $0xc] sm:$0xf]
    %v442 = vld [vmem:[#allocation2] sm:$0xff]
    %v443 = vld [vmem:[#allocation2 + $0x8] sm:$0xff]
    %v448 = vunpack.c.l.b16 %v434
    %v449 = vunpack.c.l.b16 %v435
    %v450 = vunpack.c.l.b16 %v436
    %v451 = vunpack.c.l.b16 %v437
    %v452 = vpack.c.b16 %v449, %v448
    %v453 = vpack.c.b16 %v451, %v450
    %v457 = vsel %vm259, 0, 0
    %459 = vmatpush.bf16.msra.mxu0 0
    %460 = vmatpush.bf16.msra.mxu0 0
    %461 = vmatpush.bf16.msra.mxu0 0
    %462 = vmatpush.bf16.msra.mxu0 0
    %463 = vmatpush.bf16.msra.mxu0 0
    %464 = vmatpush.bf16.msra.mxu0 0
    %465 = vmatpush.bf16.msra.mxu0 %v453
    %466 = vmatpush.bf16.msra.mxu0 %v452
    %467 = vmatmul.bf16.gmra.mxu0 %v457
    %v468 = vpop.f32.mrf.mxu0
    %v469 = vadd.f32 0.0, %v468
    %v470 = vpop.f32.mrf.mxu0
    %v471 = vadd.f32 0.0, %v470
    %472 = vdwg.mxu0
    %v473 = vadd.f32 %v442, %v469
    %v474 = vadd.f32 %v443, %v471
    %v475 = vld [vmem:[#allocation3 + $0x70] sm:$0xff]
    %v476 = vld [vmem:[#allocation3 + $0x78] sm:$0xff]
    %v481 = vunpack.c.l.b16 %v438
    %v482 = vunpack.c.l.b16 %v439
    %v483 = vunpack.c.l.b16 %v440
    %v484 = vunpack.c.l.b16 %v441
    %v485 = vpack.c.b16 %v482, %v481
    %v486 = vpack.c.b16 %v484, %v483
    %489 = vmatpush.bf16.msra.mxu0 0
    %490 = vmatpush.bf16.msra.mxu0 0
    %491 = vmatpush.bf16.msra.mxu0 0
    %492 = vmatpush.bf16.msra.mxu0 0
    %493 = vmatpush.bf16.msra.mxu0 0
    %494 = vmatpush.bf16.msra.mxu0 0
    %495 = vmatpush.bf16.msra.mxu0 %v486
    %496 = vmatpush.bf16.msra.mxu0 %v485
    %497 = vmatmul.bf16.gmra.mxu0 %v457
    %v498 = vpop.f32.mrf.mxu0
    %v499 = vadd.f32 0.0, %v498
    %v500 = vpop.f32.mrf.mxu0
    %v501 = vadd.f32 0.0, %v500
    %502 = vdwg.mxu0
    %v503 = vadd.f32 %v475, %v499
    %v504 = vadd.f32 %v476, %v501
    %v505 = vxor.u32 %v473, 2147483648
    %v506 = vxor.u32 %v474, 2147483648
    %v507 = vmul.f32 %v505, 1.442695
    %v508 = vpow.pop %v507
    %v509 = vmul.f32 %v506, 1.442695
    %v510 = vpow.pop %v509
    %v511 = vadd.f32 %v508, 1.0
    %v512 = vadd.f32 %v510, 1.0
    %v513 = vrcp.pop %v511
    %v514 = vmul.f32 %v511, %v513
    %v515 = vsub.f32 1.0, %v514
    %v516 = vmul.f32 %v513, %v515
    %v517 = vadd.f32 %v513, %v516
    %vm518 = vweird.f32 %v511
    %vm519 = vweird.f32 %v513
    %vm520 = vmor %vm518, %vm519
    %v521 = vsel %vm520, %v513, %v517
    %v522 = vand.u32 2147483647, %v511
    %vm523 = vcmp.eq.f32.partialorder %v522, 8.507059e+37
    %v524 = vand.u32 %v511, 2147483648
    %v525 = vor.u32 1.1754944e-38, %v524
    %v526 = vsel %vm523, %v525, %v521
    %v527 = vmul.f32 1.0, %v526
    %v528 = vrcp.pop %v512
    %v529 = vmul.f32 %v512, %v528
    %v530 = vsub.f32 1.0, %v529
    %v531 = vmul.f32 %v528, %v530
    %v532 = vadd.f32 %v528, %v531
    %vm533 = vweird.f32 %v512
    %vm534 = vweird.f32 %v528
    %vm535 = vmor %vm533, %vm534
    %v536 = vsel %vm535, %v528, %v532
    %v537 = vand.u32 2147483647, %v512
    %vm538 = vcmp.eq.f32.partialorder %v537, 8.507059e+37
    %v539 = vand.u32 %v512, 2147483648
    %v540 = vor.u32 1.1754944e-38, %v539
    %v541 = vsel %vm538, %v540, %v536
    %v542 = vmul.f32 1.0, %v541
    %v543 = vtanh.pop %v473
    %v544 = vtanh.pop %v474
    %v545 = vmul.f32 %v527, 0.0
    %v546 = vmul.f32 %v542, 0.0
    %549 = vrot.lane.b32.xlu0 %v543, 64
    %v550 = vpop.permute.xlu0 %549
    %551 = vrot.lane.b32.xlu0 %v544, 64
    %v552 = vpop.permute.xlu0 %551
    %v555 = vmul.f32 %v527, %v550
    %v556 = vmul.f32 %v542, %v552
    %559 = vrot.lane.b32.xlu0 %v555, 32
    %v560 = vpop.permute.xlu0 %559
    %561 = vrot.lane.b32.xlu0 %v556, 32
    %v562 = vpop.permute.xlu0 %561
    %v565 = vadd.f32 %v545, %v560
    %v566 = vadd.f32 %v546, %v562
    %v567 = vtanh.pop %v565
    %v568 = vtanh.pop %v566
    %571 = vrot.lane.b32.xlu0 %v567, 64
    %v572 = vpop.permute.xlu0 %571
    %573 = vrot.lane.b32.xlu0 %v568, 64
    %v574 = vpop.permute.xlu0 %573
    %v577 = vmul.f32 %v527, %v572
    %v578 = vmul.f32 %v542, %v574
    %v579 = vxor.u32 %v503, 2147483648
    %v580 = vxor.u32 %v504, 2147483648
    %v581 = vmul.f32 %v579, 1.442695
    %v582 = vpow.pop %v581
    %v583 = vmul.f32 %v580, 1.442695
    %v584 = vpow.pop %v583
    %v585 = vadd.f32 %v582, 1.0
    %v586 = vadd.f32 %v584, 1.0
    %v587 = vrcp.pop %v585
    %v588 = vmul.f32 %v585, %v587
    %v589 = vsub.f32 1.0, %v588
    %v590 = vmul.f32 %v587, %v589
    %v591 = vadd.f32 %v587, %v590
    %vm592 = vweird.f32 %v585
    %vm593 = vweird.f32 %v587
    %vm594 = vmor %vm592, %vm593
    %v595 = vsel %vm594, %v587, %v591
    %v596 = vand.u32 2147483647, %v585
    %vm597 = vcmp.eq.f32.partialorder %v596, 8.507059e+37
    %v598 = vand.u32 %v585, 2147483648
    %v599 = vor.u32 1.1754944e-38, %v598
    %v600 = vsel %vm597, %v599, %v595
    %v601 = vmul.f32 1.0, %v600
    %v602 = vrcp.pop %v586
    %v603 = vmul.f32 %v586, %v602
    %v604 = vsub.f32 1.0, %v603
    %v605 = vmul.f32 %v602, %v604
    %v606 = vadd.f32 %v602, %v605
    %vm607 = vweird.f32 %v586
    %vm608 = vweird.f32 %v602
    %vm609 = vmor %vm607, %vm608
    %v610 = vsel %vm609, %v602, %v606
    %v611 = vand.u32 2147483647, %v586
    %vm612 = vcmp.eq.f32.partialorder %v611, 8.507059e+37
    %v613 = vand.u32 %v586, 2147483648
    %v614 = vor.u32 1.1754944e-38, %v613
    %v615 = vsel %vm612, %v614, %v610
    %v616 = vmul.f32 1.0, %v615
    %v617 = vtanh.pop %v503
    %v618 = vtanh.pop %v504
    %v619 = vmul.f32 %v601, 0.0
    %v620 = vmul.f32 %v616, 0.0
    %623 = vrot.lane.b32.xlu0 %v617, 64
    %v624 = vpop.permute.xlu0 %623
    %625 = vrot.lane.b32.xlu0 %v618, 64
    %v626 = vpop.permute.xlu0 %625
    %v629 = vmul.f32 %v601, %v624
    %v630 = vmul.f32 %v616, %v626
    %633 = vrot.lane.b32.xlu0 %v629, 32
    %v634 = vpop.permute.xlu0 %633
    %635 = vrot.lane.b32.xlu0 %v630, 32
    %v636 = vpop.permute.xlu0 %635
    %v639 = vadd.f32 %v619, %v634
    %v640 = vadd.f32 %v620, %v636
    %v641 = vtanh.pop %v639
    %v642 = vtanh.pop %v640
    %645 = vrot.lane.b32.xlu0 %v641, 64
    %v646 = vpop.permute.xlu0 %645
    %647 = vrot.lane.b32.xlu0 %v642, 64
    %v648 = vpop.permute.xlu0 %647
    %v651 = vmul.f32 %v601, %v646
    %v652 = vmul.f32 %v616, %v648
    %v653 = vpack.c.bf16 %v577, %v577
    %v654 = vpack.c.bf16 %v578, %v578
    %v655 = vpack.c.bf16 %v651, %v651
    %v656 = vpack.c.bf16 %v652, %v652
    %659 = vrot.lane.b32.xlu0 %v653, 32
    %v660 = vpop.permute.xlu0 %659
    %661 = vrot.lane.b32.xlu0 %v654, 32
    %v662 = vpop.permute.xlu0 %661
    %vm665 = vcmask 257024
    %666 = vst.msk [vmem:[#allocation4] sm:$0xf] %vm665, %v660
    %667 = vst.msk [vmem:[#allocation4 + $0x4] sm:$0xf] %vm665, %v662
    %670 = vrot.lane.b32.xlu0 %v655, 64
    %v671 = vpop.permute.xlu0 %670
    %672 = vrot.lane.b32.xlu0 %v656, 64
    %v673 = vpop.permute.xlu0 %672
    %vm676 = vcmask 519424
    %677 = vst.msk [vmem:[#allocation4 + $0x38] sm:$0xf] %vm676, %v671
    %678 = vst.msk [vmem:[#allocation4 + $0x3c] sm:$0xf] %vm676, %v673
    %v679 = vld [vmem:[#allocation2 + $0x10] sm:$0xff]
    %v680 = vld [vmem:[#allocation2 + $0x18] sm:$0xff]
    %v681 = vunpack.c.l.b16 %v653
    %v682 = vunpack.c.l.b16 %v654
    %v683 = vpack.c.b16 %v682, %v681
    %684 = vrot.lane.b32.xlu0 %v683, 32
    %v685 = vpop.permute.xlu0 %684
    %v687 = vsel %vm259, %v685, 0
    %689 = vmatpush.bf16.msra.mxu0 0
    %690 = vmatpush.bf16.msra.mxu0 0
    %691 = vmatpush.bf16.msra.mxu0 0
    %692 = vmatpush.bf16.msra.mxu0 0
    %693 = vmatpush.bf16.msra.mxu0 0
    %694 = vmatpush.bf16.msra.mxu0 0
    %695 = vmatpush.bf16.msra.mxu0 %v453
    %696 = vmatpush.bf16.msra.mxu0 %v452
    %697 = vmatmul.bf16.gmra.mxu0 %v687
    %v698 = vpop.f32.mrf.mxu0
    %v699 = vadd.f32 0.0, %v698
    %v700 = vpop.f32.mrf.mxu0
    %v701 = vadd.f32 0.0, %v700
    %702 = vdwg.mxu0
    %v703 = vadd.f32 %v679, %v699
    %v704 = vadd.f32 %v680, %v701
    %v705 = vld [vmem:[#allocation3 + $0x60] sm:$0xff]
    %v706 = vld [vmem:[#allocation3 + $0x68] sm:$0xff]
    %v707 = vunpack.c.l.b16 %v655
    %v708 = vunpack.c.l.b16 %v656
    %v709 = vpack.c.b16 %v708, %v707
    %710 = vrot.lane.b32.xlu0 %v709, 32
    %v711 = vpop.permute.xlu0 %710
    %v713 = vsel %vm259, %v711, 0
    %715 = vmatpush.bf16.msra.mxu0 0
    %716 = vmatpush.bf16.msra.mxu0 0
    %717 = vmatpush.bf16.msra.mxu0 0
    %718 = vmatpush.bf16.msra.mxu0 0
    %719 = vmatpush.bf16.msra.mxu0 0
    %720 = vmatpush.bf16.msra.mxu0 0
    %721 = vmatpush.bf16.msra.mxu0 %v486
    %722 = vmatpush.bf16.msra.mxu0 %v485
    %723 = vmatmul.bf16.gmra.mxu0 %v713
    %v724 = vpop.f32.mrf.mxu0
    %v725 = vadd.f32 0.0, %v724
    %v726 = vpop.f32.mrf.mxu0
    %v727 = vadd.f32 0.0, %v726
    %728 = vdwg.mxu0
    %v729 = vadd.f32 %v705, %v725
    %v730 = vadd.f32 %v706, %v727
    %v731 = vxor.u32 %v703, 2147483648
    %v732 = vxor.u32 %v704, 2147483648
    %v733 = vmul.f32 %v731, 1.442695
    %v734 = vpow.pop %v733
    %v735 = vmul.f32 %v732, 1.442695
    %v736 = vpow.pop %v735
    %v737 = vadd.f32 %v734, 1.0
    %v738 = vadd.f32 %v736, 1.0
    %v739 = vrcp.pop %v737
    %v740 = vmul.f32 %v737, %v739
    %v741 = vsub.f32 1.0, %v740
    %v742 = vmul.f32 %v739, %v741
    %v743 = vadd.f32 %v739, %v742
    %vm744 = vweird.f32 %v737
    %vm745 = vweird.f32 %v739
    %vm746 = vmor %vm744, %vm745
    %v747 = vsel %vm746, %v739, %v743
    %v748 = vand.u32 2147483647, %v737
    %vm749 = vcmp.eq.f32.partialorder %v748, 8.507059e+37
    %v750 = vand.u32 %v737, 2147483648
    %v751 = vor.u32 1.1754944e-38, %v750
    %v752 = vsel %vm749, %v751, %v747
    %v753 = vmul.f32 1.0, %v752
    %v754 = vrcp.pop %v738
    %v755 = vmul.f32 %v738, %v754
    %v756 = vsub.f32 1.0, %v755
    %v757 = vmul.f32 %v754, %v756
    %v758 = vadd.f32 %v754, %v757
    %vm759 = vweird.f32 %v738
    %vm760 = vweird.f32 %v754
    %vm761 = vmor %vm759, %vm760
    %v762 = vsel %vm761, %v754, %v758
    %v763 = vand.u32 2147483647, %v738
    %vm764 = vcmp.eq.f32.partialorder %v763, 8.507059e+37
    %v765 = vand.u32 %v738, 2147483648
    %v766 = vor.u32 1.1754944e-38, %v765
    %v767 = vsel %vm764, %v766, %v762
    %v768 = vmul.f32 1.0, %v767
    %v769 = vtanh.pop %v703
    %v770 = vtanh.pop %v704
    %v771 = vmul.f32 %v753, %v565
    %v772 = vmul.f32 %v768, %v566
    %775 = vrot.lane.b32.xlu0 %v769, 64
    %v776 = vpop.permute.xlu0 %775
    %777 = vrot.lane.b32.xlu0 %v770, 64
    %v778 = vpop.permute.xlu0 %777
    %v781 = vmul.f32 %v753, %v776
    %v782 = vmul.f32 %v768, %v778
    %785 = vrot.lane.b32.xlu0 %v781, 32
    %v786 = vpop.permute.xlu0 %785
    %787 = vrot.lane.b32.xlu0 %v782, 32
    %v788 = vpop.permute.xlu0 %787
    %v791 = vadd.f32 %v771, %v786
    %v792 = vadd.f32 %v772, %v788
    %v793 = vtanh.pop %v791
    %v794 = vtanh.pop %v792
    %797 = vrot.lane.b32.xlu0 %v793, 64
    %v798 = vpop.permute.xlu0 %797
    %799 = vrot.lane.b32.xlu0 %v794, 64
    %v800 = vpop.permute.xlu0 %799
    %v803 = vmul.f32 %v753, %v798
    %v804 = vmul.f32 %v768, %v800
    %v805 = vxor.u32 %v729, 2147483648
    %v806 = vxor.u32 %v730, 2147483648
    %v807 = vmul.f32 %v805, 1.442695
    %v808 = vpow.pop %v807
    %v809 = vmul.f32 %v806, 1.442695
    %v810 = vpow.pop %v809
    %v811 = vadd.f32 %v808, 1.0
    %v812 = vadd.f32 %v810, 1.0
    %v813 = vrcp.pop %v811
    %v814 = vmul.f32 %v811, %v813
    %v815 = vsub.f32 1.0, %v814
    %v816 = vmul.f32 %v813, %v815
    %v817 = vadd.f32 %v813, %v816
    %vm818 = vweird.f32 %v811
    %vm819 = vweird.f32 %v813
    %vm820 = vmor %vm818, %vm819
    %v821 = vsel %vm820, %v813, %v817
    %v822 = vand.u32 2147483647, %v811
    %vm823 = vcmp.eq.f32.partialorder %v822, 8.507059e+37
    %v824 = vand.u32 %v811, 2147483648
    %v825 = vor.u32 1.1754944e-38, %v824
    %v826 = vsel %vm823, %v825, %v821
    %v827 = vmul.f32 1.0, %v826
    %v828 = vrcp.pop %v812
    %v829 = vmul.f32 %v812, %v828
    %v830 = vsub.f32 1.0, %v829
    %v831 = vmul.f32 %v828, %v830
    %v832 = vadd.f32 %v828, %v831
    %vm833 = vweird.f32 %v812
    %vm834 = vweird.f32 %v828
    %vm835 = vmor %vm833, %vm834
    %v836 = vsel %vm835, %v828, %v832
    %v837 = vand.u32 2147483647, %v812
    %vm838 = vcmp.eq.f32.partialorder %v837, 8.507059e+37
    %v839 = vand.u32 %v812, 2147483648
    %v840 = vor.u32 1.1754944e-38, %v839
    %v841 = vsel %vm838, %v840, %v836
    %v842 = vmul.f32 1.0, %v841
    %v843 = vtanh.pop %v729
    %v844 = vtanh.pop %v730
    %v845 = vmul.f32 %v827, %v639
    %v846 = vmul.f32 %v842, %v640
    %849 = vrot.lane.b32.xlu0 %v843, 64
    %v850 = vpop.permute.xlu0 %849
    %851 = vrot.lane.b32.xlu0 %v844, 64
    %v852 = vpop.permute.xlu0 %851
    %v855 = vmul.f32 %v827, %v850
    %v856 = vmul.f32 %v842, %v852
    %859 = vrot.lane.b32.xlu0 %v855, 32
    %v860 = vpop.permute.xlu0 %859
    %861 = vrot.lane.b32.xlu0 %v856, 32
    %v862 = vpop.permute.xlu0 %861
    %v865 = vadd.f32 %v845, %v860
    %v866 = vadd.f32 %v846, %v862
    %v867 = vtanh.pop %v865
    %v868 = vtanh.pop %v866
    %871 = vrot.lane.b32.xlu0 %v867, 64
    %v872 = vpop.permute.xlu0 %871
    %873 = vrot.lane.b32.xlu0 %v868, 64
    %v874 = vpop.permute.xlu0 %873
    %v877 = vmul.f32 %v827, %v872
    %v878 = vmul.f32 %v842, %v874
    %v879 = vpack.c.bf16 %v803, %v803
    %v880 = vpack.c.bf16 %v804, %v804
    %v881 = vpack.c.bf16 %v877, %v877
    %v882 = vpack.c.bf16 %v878, %v878
    %885 = vrot.lane.b32.xlu0 %v879, 32
    %v886 = vpop.permute.xlu0 %885
    %887 = vrot.lane.b32.xlu0 %v880, 32
    %v888 = vpop.permute.xlu0 %887
    %891 = vst.msk [vmem:[#allocation4 + $0x8] sm:$0xf] %vm665, %v886
    %892 = vst.msk [vmem:[#allocation4 + $0xc] sm:$0xf] %vm665, %v888
    %895 = vrot.lane.b32.xlu0 %v881, 64
    %v896 = vpop.permute.xlu0 %895
    %897 = vrot.lane.b32.xlu0 %v882, 64
    %v898 = vpop.permute.xlu0 %897
    %901 = vst.msk [vmem:[#allocation4 + $0x30] sm:$0xf] %vm676, %v896
    %902 = vst.msk [vmem:[#allocation4 + $0x34] sm:$0xf] %vm676, %v898
    %v903 = vld [vmem:[#allocation2 + $0x20] sm:$0xff]
    %v904 = vld [vmem:[#allocation2 + $0x28] sm:$0xff]
    %v905 = vunpack.c.l.b16 %v879
    %v906 = vunpack.c.l.b16 %v880
    %v907 = vpack.c.b16 %v906, %v905
    %908 = vrot.lane.b32.xlu0 %v907, 32
    %v909 = vpop.permute.xlu0 %908
    %v911 = vsel %vm259, %v909, 0
    %913 = vmatpush.bf16.msra.mxu0 0
    %914 = vmatpush.bf16.msra.mxu0 0
    %915 = vmatpush.bf16.msra.mxu0 0
    %916 = vmatpush.bf16.msra.mxu0 0
    %917 = vmatpush.bf16.msra.mxu0 0
    %918 = vmatpush.bf16.msra.mxu0 0
    %919 = vmatpush.bf16.msra.mxu0 %v453
    %920 = vmatpush.bf16.msra.mxu0 %v452
    %921 = vmatmul.bf16.gmra.mxu0 %v911
    %v922 = vpop.f32.mrf.mxu0
    %v923 = vadd.f32 0.0, %v922
    %v924 = vpop.f32.mrf.mxu0
    %v925 = vadd.f32 0.0, %v924
    %926 = vdwg.mxu0
    %v927 = vadd.f32 %v903, %v923
    %v928 = vadd.f32 %v904, %v925
    %v929 = vld [vmem:[#allocation3 + $0x50] sm:$0xff]
    %v930 = vld [vmem:[#allocation3 + $0x58] sm:$0xff]
    %v931 = vunpack.c.l.b16 %v881
    %v932 = vunpack.c.l.b16 %v882
    %v933 = vpack.c.b16 %v932, %v931
    %934 = vrot.lane.b32.xlu0 %v933, 32
    %v935 = vpop.permute.xlu0 %934
    %v937 = vsel %vm259, %v935, 0
    %939 = vmatpush.bf16.msra.mxu0 0
    %940 = vmatpush.bf16.msra.mxu0 0
    %941 = vmatpush.bf16.msra.mxu0 0
    %942 = vmatpush.bf16.msra.mxu0 0
    %943 = vmatpush.bf16.msra.mxu0 0
    %944 = vmatpush.bf16.msra.mxu0 0
    %945 = vmatpush.bf16.msra.mxu0 %v486
    %946 = vmatpush.bf16.msra.mxu0 %v485
    %947 = vmatmul.bf16.gmra.mxu0 %v937
    %v948 = vpop.f32.mrf.mxu0
    %v949 = vadd.f32 0.0, %v948
    %v950 = vpop.f32.mrf.mxu0
    %v951 = vadd.f32 0.0, %v950
    %952 = vdwg.mxu0
    %v953 = vadd.f32 %v929, %v949
    %v954 = vadd.f32 %v930, %v951
    %v955 = vxor.u32 %v927, 2147483648
    %v956 = vxor.u32 %v928, 2147483648
    %v957 = vmul.f32 %v955, 1.442695
    %v958 = vpow.pop %v957
    %v959 = vmul.f32 %v956, 1.442695
    %v960 = vpow.pop %v959
    %v961 = vadd.f32 %v958, 1.0
    %v962 = vadd.f32 %v960, 1.0
    %v963 = vrcp.pop %v961
    %v964 = vmul.f32 %v961, %v963
    %v965 = vsub.f32 1.0, %v964
    %v966 = vmul.f32 %v963, %v965
    %v967 = vadd.f32 %v963, %v966
    %vm968 = vweird.f32 %v961
    %vm969 = vweird.f32 %v963
    %vm970 = vmor %vm968, %vm969
    %v971 = vsel %vm970, %v963, %v967
    %v972 = vand.u32 2147483647, %v961
    %vm973 = vcmp.eq.f32.partialorder %v972, 8.507059e+37
    %v974 = vand.u32 %v961, 2147483648
    %v975 = vor.u32 1.1754944e-38, %v974
    %v976 = vsel %vm973, %v975, %v971
    %v977 = vmul.f32 1.0, %v976
    %v978 = vrcp.pop %v962
    %v979 = vmul.f32 %v962, %v978
    %v980 = vsub.f32 1.0, %v979
    %v981 = vmul.f32 %v978, %v980
    %v982 = vadd.f32 %v978, %v981
    %vm983 = vweird.f32 %v962
    %vm984 = vweird.f32 %v978
    %vm985 = vmor %vm983, %vm984
    %v986 = vsel %vm985, %v978, %v982
    %v987 = vand.u32 2147483647, %v962
    %vm988 = vcmp.eq.f32.partialorder %v987, 8.507059e+37
    %v989 = vand.u32 %v962, 2147483648
    %v990 = vor.u32 1.1754944e-38, %v989
    %v991 = vsel %vm988, %v990, %v986
    %v992 = vmul.f32 1.0, %v991
    %v993 = vtanh.pop %v927
    %v994 = vtanh.pop %v928
    %v995 = vmul.f32 %v977, %v791
    %v996 = vmul.f32 %v992, %v792
    %999 = vrot.lane.b32.xlu0 %v993, 64
    %v1000 = vpop.permute.xlu0 %999
    %1001 = vrot.lane.b32.xlu0 %v994, 64
    %v1002 = vpop.permute.xlu0 %1001
    %v1005 = vmul.f32 %v977, %v1000
    %v1006 = vmul.f32 %v992, %v1002
    %1009 = vrot.lane.b32.xlu0 %v1005, 32
    %v1010 = vpop.permute.xlu0 %1009
    %1011 = vrot.lane.b32.xlu0 %v1006, 32
    %v1012 = vpop.permute.xlu0 %1011
    %v1015 = vadd.f32 %v995, %v1010
    %v1016 = vadd.f32 %v996, %v1012
    %v1017 = vtanh.pop %v1015
    %v1018 = vtanh.pop %v1016
    %1021 = vrot.lane.b32.xlu0 %v1017, 64
    %v1022 = vpop.permute.xlu0 %1021
    %1023 = vrot.lane.b32.xlu0 %v1018, 64
    %v1024 = vpop.permute.xlu0 %1023
    %v1027 = vmul.f32 %v977, %v1022
    %v1028 = vmul.f32 %v992, %v1024
    %v1029 = vxor.u32 %v953, 2147483648
    %v1030 = vxor.u32 %v954, 2147483648
    %v1031 = vmul.f32 %v1029, 1.442695
    %v1032 = vpow.pop %v1031
    %v1033 = vmul.f32 %v1030, 1.442695
    %v1034 = vpow.pop %v1033
    %v1035 = vadd.f32 %v1032, 1.0
    %v1036 = vadd.f32 %v1034, 1.0
    %v1037 = vrcp.pop %v1035
    %v1038 = vmul.f32 %v1035, %v1037
    %v1039 = vsub.f32 1.0, %v1038
    %v1040 = vmul.f32 %v1037, %v1039
    %v1041 = vadd.f32 %v1037, %v1040
    %vm1042 = vweird.f32 %v1035
    %vm1043 = vweird.f32 %v1037
    %vm1044 = vmor %vm1042, %vm1043
    %v1045 = vsel %vm1044, %v1037, %v1041
    %v1046 = vand.u32 2147483647, %v1035
    %vm1047 = vcmp.eq.f32.partialorder %v1046, 8.507059e+37
    %v1048 = vand.u32 %v1035, 2147483648
    %v1049 = vor.u32 1.1754944e-38, %v1048
    %v1050 = vsel %vm1047, %v1049, %v1045
    %v1051 = vmul.f32 1.0, %v1050
    %v1052 = vrcp.pop %v1036
    %v1053 = vmul.f32 %v1036, %v1052
    %v1054 = vsub.f32 1.0, %v1053
    %v1055 = vmul.f32 %v1052, %v1054
    %v1056 = vadd.f32 %v1052, %v1055
    %vm1057 = vweird.f32 %v1036
    %vm1058 = vweird.f32 %v1052
    %vm1059 = vmor %vm1057, %vm1058
    %v1060 = vsel %vm1059, %v1052, %v1056
    %v1061 = vand.u32 2147483647, %v1036
    %vm1062 = vcmp.eq.f32.partialorder %v1061, 8.507059e+37
    %v1063 = vand.u32 %v1036, 2147483648
    %v1064 = vor.u32 1.1754944e-38, %v1063
    %v1065 = vsel %vm1062, %v1064, %v1060
    %v1066 = vmul.f32 1.0, %v1065
    %v1067 = vtanh.pop %v953
    %v1068 = vtanh.pop %v954
    %v1069 = vmul.f32 %v1051, %v865
    %v1070 = vmul.f32 %v1066, %v866
    %1073 = vrot.lane.b32.xlu0 %v1067, 64
    %v1074 = vpop.permute.xlu0 %1073
    %1075 = vrot.lane.b32.xlu0 %v1068, 64
    %v1076 = vpop.permute.xlu0 %1075
    %v1079 = vmul.f32 %v1051, %v1074
    %v1080 = vmul.f32 %v1066, %v1076
    %1083 = vrot.lane.b32.xlu0 %v1079, 32
    %v1084 = vpop.permute.xlu0 %1083
    %1085 = vrot.lane.b32.xlu0 %v1080, 32
    %v1086 = vpop.permute.xlu0 %1085
    %v1089 = vadd.f32 %v1069, %v1084
    %v1090 = vadd.f32 %v1070, %v1086
    %v1091 = vtanh.pop %v1089
    %v1092 = vtanh.pop %v1090
    %1095 = vrot.lane.b32.xlu0 %v1091, 64
    %v1096 = vpop.permute.xlu0 %1095
    %1097 = vrot.lane.b32.xlu0 %v1092, 64
    %v1098 = vpop.permute.xlu0 %1097
    %v1101 = vmul.f32 %v1051, %v1096
    %v1102 = vmul.f32 %v1066, %v1098
    %v1103 = vpack.c.bf16 %v1027, %v1027
    %v1104 = vpack.c.bf16 %v1028, %v1028
    %v1105 = vpack.c.bf16 %v1101, %v1101
    %v1106 = vpack.c.bf16 %v1102, %v1102
    %1109 = vrot.lane.b32.xlu0 %v1103, 32
    %v1110 = vpop.permute.xlu0 %1109
    %1111 = vrot.lane.b32.xlu0 %v1104, 32
    %v1112 = vpop.permute.xlu0 %1111
    %1115 = vst.msk [vmem:[#allocation4 + $0x10] sm:$0xf] %vm665, %v1110
    %1116 = vst.msk [vmem:[#allocation4 + $0x14] sm:$0xf] %vm665, %v1112
    %1119 = vrot.lane.b32.xlu0 %v1105, 64
    %v1120 = vpop.permute.xlu0 %1119
    %1121 = vrot.lane.b32.xlu0 %v1106, 64
    %v1122 = vpop.permute.xlu0 %1121
    %1125 = vst.msk [vmem:[#allocation4 + $0x28] sm:$0xf] %vm676, %v1120
    %1126 = vst.msk [vmem:[#allocation4 + $0x2c] sm:$0xf] %vm676, %v1122
    %v1127 = vld [vmem:[#allocation2 + $0x30] sm:$0xff]
    %v1128 = vld [vmem:[#allocation2 + $0x38] sm:$0xff]
    %v1129 = vunpack.c.l.b16 %v1103
    %v1130 = vunpack.c.l.b16 %v1104
    %v1131 = vpack.c.b16 %v1130, %v1129
    %1132 = vrot.lane.b32.xlu0 %v1131, 32
    %v1133 = vpop.permute.xlu0 %1132
    %v1135 = vsel %vm259, %v1133, 0
    %1137 = vmatpush.bf16.msra.mxu0 0
    %1138 = vmatpush.bf16.msra.mxu0 0
    %1139 = vmatpush.bf16.msra.mxu0 0
    %1140 = vmatpush.bf16.msra.mxu0 0
    %1141 = vmatpush.bf16.msra.mxu0 0
    %1142 = vmatpush.bf16.msra.mxu0 0
    %1143 = vmatpush.bf16.msra.mxu0 %v453
    %1144 = vmatpush.bf16.msra.mxu0 %v452
    %1145 = vmatmul.bf16.gmra.mxu0 %v1135
    %v1146 = vpop.f32.mrf.mxu0
    %v1147 = vadd.f32 0.0, %v1146
    %v1148 = vpop.f32.mrf.mxu0
    %v1149 = vadd.f32 0.0, %v1148
    %1150 = vdwg.mxu0
    %v1151 = vadd.f32 %v1127, %v1147
    %v1152 = vadd.f32 %v1128, %v1149
    %v1153 = vld [vmem:[#allocation3 + $0x40] sm:$0xff]
    %v1154 = vld [vmem:[#allocation3 + $0x48] sm:$0xff]
    %v1155 = vunpack.c.l.b16 %v1105
    %v1156 = vunpack.c.l.b16 %v1106
    %v1157 = vpack.c.b16 %v1156, %v1155
    %1158 = vrot.lane.b32.xlu0 %v1157, 32
    %v1159 = vpop.permute.xlu0 %1158
    %v1161 = vsel %vm259, %v1159, 0
    %1163 = vmatpush.bf16.msra.mxu0 0
    %1164 = vmatpush.bf16.msra.mxu0 0
    %1165 = vmatpush.bf16.msra.mxu0 0
    %1166 = vmatpush.bf16.msra.mxu0 0
    %1167 = vmatpush.bf16.msra.mxu0 0
    %1168 = vmatpush.bf16.msra.mxu0 0
    %1169 = vmatpush.bf16.msra.mxu0 %v486
    %1170 = vmatpush.bf16.msra.mxu0 %v485
    %1171 = vmatmul.bf16.gmra.mxu0 %v1161
    %v1172 = vpop.f32.mrf.mxu0
    %v1173 = vadd.f32 0.0, %v1172
    %v1174 = vpop.f32.mrf.mxu0
    %v1175 = vadd.f32 0.0, %v1174
    %1176 = vdwg.mxu0
    %v1177 = vadd.f32 %v1153, %v1173
    %v1178 = vadd.f32 %v1154, %v1175
    %v1179 = vxor.u32 %v1151, 2147483648
    %v1180 = vxor.u32 %v1152, 2147483648
    %v1181 = vmul.f32 %v1179, 1.442695
    %v1182 = vpow.pop %v1181
    %v1183 = vmul.f32 %v1180, 1.442695
    %v1184 = vpow.pop %v1183
    %v1185 = vadd.f32 %v1182, 1.0
    %v1186 = vadd.f32 %v1184, 1.0
    %v1187 = vrcp.pop %v1185
    %v1188 = vmul.f32 %v1185, %v1187
    %v1189 = vsub.f32 1.0, %v1188
    %v1190 = vmul.f32 %v1187, %v1189
    %v1191 = vadd.f32 %v1187, %v1190
    %vm1192 = vweird.f32 %v1185
    %vm1193 = vweird.f32 %v1187
    %vm1194 = vmor %vm1192, %vm1193
    %v1195 = vsel %vm1194, %v1187, %v1191
    %v1196 = vand.u32 2147483647, %v1185
    %vm1197 = vcmp.eq.f32.partialorder %v1196, 8.507059e+37
    %v1198 = vand.u32 %v1185, 2147483648
    %v1199 = vor.u32 1.1754944e-38, %v1198
    %v1200 = vsel %vm1197, %v1199, %v1195
    %v1201 = vmul.f32 1.0, %v1200
    %v1202 = vrcp.pop %v1186
    %v1203 = vmul.f32 %v1186, %v1202
    %v1204 = vsub.f32 1.0, %v1203
    %v1205 = vmul.f32 %v1202, %v1204
    %v1206 = vadd.f32 %v1202, %v1205
    %vm1207 = vweird.f32 %v1186
    %vm1208 = vweird.f32 %v1202
    %vm1209 = vmor %vm1207, %vm1208
    %v1210 = vsel %vm1209, %v1202, %v1206
    %v1211 = vand.u32 2147483647, %v1186
    %vm1212 = vcmp.eq.f32.partialorder %v1211, 8.507059e+37
    %v1213 = vand.u32 %v1186, 2147483648
    %v1214 = vor.u32 1.1754944e-38, %v1213
    %v1215 = vsel %vm1212, %v1214, %v1210
    %v1216 = vmul.f32 1.0, %v1215
    %v1217 = vtanh.pop %v1151
    %v1218 = vtanh.pop %v1152
    %v1219 = vmul.f32 %v1201, %v1015
    %v1220 = vmul.f32 %v1216, %v1016
    %1223 = vrot.lane.b32.xlu0 %v1217, 64
    %v1224 = vpop.permute.xlu0 %1223
    %1225 = vrot.lane.b32.xlu0 %v1218, 64
    %v1226 = vpop.permute.xlu0 %1225
    %v1229 = vmul.f32 %v1201, %v1224
    %v1230 = vmul.f32 %v1216, %v1226
    %1233 = vrot.lane.b32.xlu0 %v1229, 32
    %v1234 = vpop.permute.xlu0 %1233
    %1235 = vrot.lane.b32.xlu0 %v1230, 32
    %v1236 = vpop.permute.xlu0 %1235
    %v1239 = vadd.f32 %v1219, %v1234
    %v1240 = vadd.f32 %v1220, %v1236
    %v1241 = vtanh.pop %v1239
    %v1242 = vtanh.pop %v1240
    %1245 = vrot.lane.b32.xlu0 %v1241, 64
    %v1246 = vpop.permute.xlu0 %1245
    %1247 = vrot.lane.b32.xlu0 %v1242, 64
    %v1248 = vpop.permute.xlu0 %1247
    %v1251 = vmul.f32 %v1201, %v1246
    %v1252 = vmul.f32 %v1216, %v1248
    %v1253 = vxor.u32 %v1177, 2147483648
    %v1254 = vxor.u32 %v1178, 2147483648
    %v1255 = vmul.f32 %v1253, 1.442695
    %v1256 = vpow.pop %v1255
    %v1257 = vmul.f32 %v1254, 1.442695
    %v1258 = vpow.pop %v1257
    %v1259 = vadd.f32 %v1256, 1.0
    %v1260 = vadd.f32 %v1258, 1.0
    %v1261 = vrcp.pop %v1259
    %v1262 = vmul.f32 %v1259, %v1261
    %v1263 = vsub.f32 1.0, %v1262
    %v1264 = vmul.f32 %v1261, %v1263
    %v1265 = vadd.f32 %v1261, %v1264
    %vm1266 = vweird.f32 %v1259
    %vm1267 = vweird.f32 %v1261
    %vm1268 = vmor %vm1266, %vm1267
    %v1269 = vsel %vm1268, %v1261, %v1265
    %v1270 = vand.u32 2147483647, %v1259
    %vm1271 = vcmp.eq.f32.partialorder %v1270, 8.507059e+37
    %v1272 = vand.u32 %v1259, 2147483648
    %v1273 = vor.u32 1.1754944e-38, %v1272
    %v1274 = vsel %vm1271, %v1273, %v1269
    %v1275 = vmul.f32 1.0, %v1274
    %v1276 = vrcp.pop %v1260
    %v1277 = vmul.f32 %v1260, %v1276
    %v1278 = vsub.f32 1.0, %v1277
    %v1279 = vmul.f32 %v1276, %v1278
    %v1280 = vadd.f32 %v1276, %v1279
    %vm1281 = vweird.f32 %v1260
    %vm1282 = vweird.f32 %v1276
    %vm1283 = vmor %vm1281, %vm1282
    %v1284 = vsel %vm1283, %v1276, %v1280
    %v1285 = vand.u32 2147483647, %v1260
    %vm1286 = vcmp.eq.f32.partialorder %v1285, 8.507059e+37
    %v1287 = vand.u32 %v1260, 2147483648
    %v1288 = vor.u32 1.1754944e-38, %v1287
    %v1289 = vsel %vm1286, %v1288, %v1284
    %v1290 = vmul.f32 1.0, %v1289
    %v1291 = vtanh.pop %v1177
    %v1292 = vtanh.pop %v1178
    %v1293 = vmul.f32 %v1275, %v1089
    %v1294 = vmul.f32 %v1290, %v1090
    %1297 = vrot.lane.b32.xlu0 %v1291, 64
    %v1298 = vpop.permute.xlu0 %1297
    %1299 = vrot.lane.b32.xlu0 %v1292, 64
    %v1300 = vpop.permute.xlu0 %1299
    %v1303 = vmul.f32 %v1275, %v1298
    %v1304 = vmul.f32 %v1290, %v1300
    %1307 = vrot.lane.b32.xlu0 %v1303, 32
    %v1308 = vpop.permute.xlu0 %1307
    %1309 = vrot.lane.b32.xlu0 %v1304, 32
    %v1310 = vpop.permute.xlu0 %1309
    %v1313 = vadd.f32 %v1293, %v1308
    %v1314 = vadd.f32 %v1294, %v1310
    %v1315 = vtanh.pop %v1313
    %v1316 = vtanh.pop %v1314
    %1319 = vrot.lane.b32.xlu0 %v1315, 64
    %v1320 = vpop.permute.xlu0 %1319
    %1321 = vrot.lane.b32.xlu0 %v1316, 64
    %v1322 = vpop.permute.xlu0 %1321
    %v1325 = vmul.f32 %v1275, %v1320
    %v1326 = vmul.f32 %v1290, %v1322
    %v1327 = vpack.c.bf16 %v1251, %v1251
    %v1328 = vpack.c.bf16 %v1252, %v1252
    %v1329 = vpack.c.bf16 %v1325, %v1325
    %v1330 = vpack.c.bf16 %v1326, %v1326
    %1333 = vrot.lane.b32.xlu0 %v1327, 32
    %v1334 = vpop.permute.xlu0 %1333
    %1335 = vrot.lane.b32.xlu0 %v1328, 32
    %v1336 = vpop.permute.xlu0 %1335
    %1339 = vst.msk [vmem:[#allocation4 + $0x18] sm:$0xf] %vm665, %v1334
    %1340 = vst.msk [vmem:[#allocation4 + $0x1c] sm:$0xf] %vm665, %v1336
    %1343 = vrot.lane.b32.xlu0 %v1329, 64
    %v1344 = vpop.permute.xlu0 %1343
    %1345 = vrot.lane.b32.xlu0 %v1330, 64
    %v1346 = vpop.permute.xlu0 %1345
    %1349 = vst.msk [vmem:[#allocation4 + $0x20] sm:$0xf] %vm676, %v1344
    %1350 = vst.msk [vmem:[#allocation4 + $0x24] sm:$0xf] %vm676, %v1346
    %v1351 = vld [vmem:[#allocation2 + $0x40] sm:$0xff]
    %v1352 = vld [vmem:[#allocation2 + $0x48] sm:$0xff]
    %v1353 = vunpack.c.l.b16 %v1327
    %v1354 = vunpack.c.l.b16 %v1328
    %v1355 = vpack.c.b16 %v1354, %v1353
    %1356 = vrot.lane.b32.xlu0 %v1355, 32
    %v1357 = vpop.permute.xlu0 %1356
    %v1359 = vsel %vm259, %v1357, 0
    %1361 = vmatpush.bf16.msra.mxu0 0
    %1362 = vmatpush.bf16.msra.mxu0 0
    %1363 = vmatpush.bf16.msra.mxu0 0
    %1364 = vmatpush.bf16.msra.mxu0 0
    %1365 = vmatpush.bf16.msra.mxu0 0
    %1366 = vmatpush.bf16.msra.mxu0 0
    %1367 = vmatpush.bf16.msra.mxu0 %v453
    %1368 = vmatpush.bf16.msra.mxu0 %v452
    %1369 = vmatmul.bf16.gmra.mxu0 %v1359
    %v1370 = vpop.f32.mrf.mxu0
    %v1371 = vadd.f32 0.0, %v1370
    %v1372 = vpop.f32.mrf.mxu0
    %v1373 = vadd.f32 0.0, %v1372
    %1374 = vdwg.mxu0
    %v1375 = vadd.f32 %v1351, %v1371
    %v1376 = vadd.f32 %v1352, %v1373
    %v1377 = vld [vmem:[#allocation3 + $0x30] sm:$0xff]
    %v1378 = vld [vmem:[#allocation3 + $0x38] sm:$0xff]
    %v1379 = vunpack.c.l.b16 %v1329
    %v1380 = vunpack.c.l.b16 %v1330
    %v1381 = vpack.c.b16 %v1380, %v1379
    %1382 = vrot.lane.b32.xlu0 %v1381, 32
    %v1383 = vpop.permute.xlu0 %1382
    %v1385 = vsel %vm259, %v1383, 0
    %1387 = vmatpush.bf16.msra.mxu0 0
    %1388 = vmatpush.bf16.msra.mxu0 0
    %1389 = vmatpush.bf16.msra.mxu0 0
    %1390 = vmatpush.bf16.msra.mxu0 0
    %1391 = vmatpush.bf16.msra.mxu0 0
    %1392 = vmatpush.bf16.msra.mxu0 0
    %1393 = vmatpush.bf16.msra.mxu0 %v486
    %1394 = vmatpush.bf16.msra.mxu0 %v485
    %1395 = vmatmul.bf16.gmra.mxu0 %v1385
    %v1396 = vpop.f32.mrf.mxu0
    %v1397 = vadd.f32 0.0, %v1396
    %v1398 = vpop.f32.mrf.mxu0
    %v1399 = vadd.f32 0.0, %v1398
    %1400 = vdwg.mxu0
    %v1401 = vadd.f32 %v1377, %v1397
    %v1402 = vadd.f32 %v1378, %v1399
    %v1403 = vxor.u32 %v1375, 2147483648
    %v1404 = vxor.u32 %v1376, 2147483648
    %v1405 = vmul.f32 %v1403, 1.442695
    %v1406 = vpow.pop %v1405
    %v1407 = vmul.f32 %v1404, 1.442695
    %v1408 = vpow.pop %v1407
    %v1409 = vadd.f32 %v1406, 1.0
    %v1410 = vadd.f32 %v1408, 1.0
    %v1411 = vrcp.pop %v1409
    %v1412 = vmul.f32 %v1409, %v1411
    %v1413 = vsub.f32 1.0, %v1412
    %v1414 = vmul.f32 %v1411, %v1413
    %v1415 = vadd.f32 %v1411, %v1414
    %vm1416 = vweird.f32 %v1409
    %vm1417 = vweird.f32 %v1411
    %vm1418 = vmor %vm1416, %vm1417
    %v1419 = vsel %vm1418, %v1411, %v1415
    %v1420 = vand.u32 2147483647, %v1409
    %vm1421 = vcmp.eq.f32.partialorder %v1420, 8.507059e+37
    %v1422 = vand.u32 %v1409, 2147483648
    %v1423 = vor.u32 1.1754944e-38, %v1422
    %v1424 = vsel %vm1421, %v1423, %v1419
    %v1425 = vmul.f32 1.0, %v1424
    %v1426 = vrcp.pop %v1410
    %v1427 = vmul.f32 %v1410, %v1426
    %v1428 = vsub.f32 1.0, %v1427
    %v1429 = vmul.f32 %v1426, %v1428
    %v1430 = vadd.f32 %v1426, %v1429
    %vm1431 = vweird.f32 %v1410
    %vm1432 = vweird.f32 %v1426
    %vm1433 = vmor %vm1431, %vm1432
    %v1434 = vsel %vm1433, %v1426, %v1430
    %v1435 = vand.u32 2147483647, %v1410
    %vm1436 = vcmp.eq.f32.partialorder %v1435, 8.507059e+37
    %v1437 = vand.u32 %v1410, 2147483648
    %v1438 = vor.u32 1.1754944e-38, %v1437
    %v1439 = vsel %vm1436, %v1438, %v1434
    %v1440 = vmul.f32 1.0, %v1439
    %v1441 = vtanh.pop %v1375
    %v1442 = vtanh.pop %v1376
    %v1443 = vmul.f32 %v1425, %v1239
    %v1444 = vmul.f32 %v1440, %v1240
    %1447 = vrot.lane.b32.xlu0 %v1441, 64
    %v1448 = vpop.permute.xlu0 %1447
    %1449 = vrot.lane.b32.xlu0 %v1442, 64
    %v1450 = vpop.permute.xlu0 %1449
    %v1453 = vmul.f32 %v1425, %v1448
    %v1454 = vmul.f32 %v1440, %v1450
    %1457 = vrot.lane.b32.xlu0 %v1453, 32
    %v1458 = vpop.permute.xlu0 %1457
    %1459 = vrot.lane.b32.xlu0 %v1454, 32
    %v1460 = vpop.permute.xlu0 %1459
    %v1463 = vadd.f32 %v1443, %v1458
    %v1464 = vadd.f32 %v1444, %v1460
    %v1465 = vtanh.pop %v1463
    %v1466 = vtanh.pop %v1464
    %1469 = vrot.lane.b32.xlu0 %v1465, 64
    %v1470 = vpop.permute.xlu0 %1469
    %1471 = vrot.lane.b32.xlu0 %v1466, 64
    %v1472 = vpop.permute.xlu0 %1471
    %v1475 = vmul.f32 %v1425, %v1470
    %v1476 = vmul.f32 %v1440, %v1472
    %v1477 = vxor.u32 %v1401, 2147483648
    %v1478 = vxor.u32 %v1402, 2147483648
    %v1479 = vmul.f32 %v1477, 1.442695
    %v1480 = vpow.pop %v1479
    %v1481 = vmul.f32 %v1478, 1.442695
    %v1482 = vpow.pop %v1481
    %v1483 = vadd.f32 %v1480, 1.0
    %v1484 = vadd.f32 %v1482, 1.0
    %v1485 = vrcp.pop %v1483
    %v1486 = vmul.f32 %v1483, %v1485
    %v1487 = vsub.f32 1.0, %v1486
    %v1488 = vmul.f32 %v1485, %v1487
    %v1489 = vadd.f32 %v1485, %v1488
    %vm1490 = vweird.f32 %v1483
    %vm1491 = vweird.f32 %v1485
    %vm1492 = vmor %vm1490, %vm1491
    %v1493 = vsel %vm1492, %v1485, %v1489
    %v1494 = vand.u32 2147483647, %v1483
    %vm1495 = vcmp.eq.f32.partialorder %v1494, 8.507059e+37
    %v1496 = vand.u32 %v1483, 2147483648
    %v1497 = vor.u32 1.1754944e-38, %v1496
    %v1498 = vsel %vm1495, %v1497, %v1493
    %v1499 = vmul.f32 1.0, %v1498
    %v1500 = vrcp.pop %v1484
    %v1501 = vmul.f32 %v1484, %v1500
    %v1502 = vsub.f32 1.0, %v1501
    %v1503 = vmul.f32 %v1500, %v1502
    %v1504 = vadd.f32 %v1500, %v1503
    %vm1505 = vweird.f32 %v1484
    %vm1506 = vweird.f32 %v1500
    %vm1507 = vmor %vm1505, %vm1506
    %v1508 = vsel %vm1507, %v1500, %v1504
    %v1509 = vand.u32 2147483647, %v1484
    %vm1510 = vcmp.eq.f32.partialorder %v1509, 8.507059e+37
    %v1511 = vand.u32 %v1484, 2147483648
    %v1512 = vor.u32 1.1754944e-38, %v1511
    %v1513 = vsel %vm1510, %v1512, %v1508
    %v1514 = vmul.f32 1.0, %v1513
    %v1515 = vtanh.pop %v1401
    %v1516 = vtanh.pop %v1402
    %v1517 = vmul.f32 %v1499, %v1313
    %v1518 = vmul.f32 %v1514, %v1314
    %1521 = vrot.lane.b32.xlu0 %v1515, 64
    %v1522 = vpop.permute.xlu0 %1521
    %1523 = vrot.lane.b32.xlu0 %v1516, 64
    %v1524 = vpop.permute.xlu0 %1523
    %v1527 = vmul.f32 %v1499, %v1522
    %v1528 = vmul.f32 %v1514, %v1524
    %1531 = vrot.lane.b32.xlu0 %v1527, 32
    %v1532 = vpop.permute.xlu0 %1531
    %1533 = vrot.lane.b32.xlu0 %v1528, 32
    %v1534 = vpop.permute.xlu0 %1533
    %v1537 = vadd.f32 %v1517, %v1532
    %v1538 = vadd.f32 %v1518, %v1534
    %v1539 = vtanh.pop %v1537
    %v1540 = vtanh.pop %v1538
    %1543 = vrot.lane.b32.xlu0 %v1539, 64
    %v1544 = vpop.permute.xlu0 %1543
    %1545 = vrot.lane.b32.xlu0 %v1540, 64
    %v1546 = vpop.permute.xlu0 %1545
    %v1549 = vmul.f32 %v1499, %v1544
    %v1550 = vmul.f32 %v1514, %v1546
    %v1551 = vpack.c.bf16 %v1475, %v1475
    %v1552 = vpack.c.bf16 %v1476, %v1476
    %v1553 = vpack.c.bf16 %v1549, %v1549
    %v1554 = vpack.c.bf16 %v1550, %v1550
    %1557 = vrot.lane.b32.xlu0 %v1551, 32
    %v1558 = vpop.permute.xlu0 %1557
    %1559 = vrot.lane.b32.xlu0 %v1552, 32
    %v1560 = vpop.permute.xlu0 %1559
    %1563 = vst.msk [vmem:[#allocation4 + $0x20] sm:$0xf] %vm665, %v1558
    %1564 = vst.msk [vmem:[#allocation4 + $0x24] sm:$0xf] %vm665, %v1560
    %1567 = vrot.lane.b32.xlu0 %v1553, 64
    %v1568 = vpop.permute.xlu0 %1567
    %1569 = vrot.lane.b32.xlu0 %v1554, 64
    %v1570 = vpop.permute.xlu0 %1569
    %1573 = vst.msk [vmem:[#allocation4 + $0x18] sm:$0xf] %vm676, %v1568
    %1574 = vst.msk [vmem:[#allocation4 + $0x1c] sm:$0xf] %vm676, %v1570
    %v1575 = vld [vmem:[#allocation2 + $0x50] sm:$0xff]
    %v1576 = vld [vmem:[#allocation2 + $0x58] sm:$0xff]
    %v1577 = vunpack.c.l.b16 %v1551
    %v1578 = vunpack.c.l.b16 %v1552
    %v1579 = vpack.c.b16 %v1578, %v1577
    %1580 = vrot.lane.b32.xlu0 %v1579, 32
    %v1581 = vpop.permute.xlu0 %1580
    %v1583 = vsel %vm259, %v1581, 0
    %1585 = vmatpush.bf16.msra.mxu0 0
    %1586 = vmatpush.bf16.msra.mxu0 0
    %1587 = vmatpush.bf16.msra.mxu0 0
    %1588 = vmatpush.bf16.msra.mxu0 0
    %1589 = vmatpush.bf16.msra.mxu0 0
    %1590 = vmatpush.bf16.msra.mxu0 0
    %1591 = vmatpush.bf16.msra.mxu0 %v453
    %1592 = vmatpush.bf16.msra.mxu0 %v452
    %1593 = vmatmul.bf16.gmra.mxu0 %v1583
    %v1594 = vpop.f32.mrf.mxu0
    %v1595 = vadd.f32 0.0, %v1594
    %v1596 = vpop.f32.mrf.mxu0
    %v1597 = vadd.f32 0.0, %v1596
    %1598 = vdwg.mxu0
    %v1599 = vadd.f32 %v1575, %v1595
    %v1600 = vadd.f32 %v1576, %v1597
    %v1601 = vld [vmem:[#allocation3 + $0x20] sm:$0xff]
    %v1602 = vld [vmem:[#allocation3 + $0x28] sm:$0xff]
    %v1603 = vunpack.c.l.b16 %v1553
    %v1604 = vunpack.c.l.b16 %v1554
    %v1605 = vpack.c.b16 %v1604, %v1603
    %1606 = vrot.lane.b32.xlu0 %v1605, 32
    %v1607 = vpop.permute.xlu0 %1606
    %v1609 = vsel %vm259, %v1607, 0
    %1611 = vmatpush.bf16.msra.mxu0 0
    %1612 = vmatpush.bf16.msra.mxu0 0
    %1613 = vmatpush.bf16.msra.mxu0 0
    %1614 = vmatpush.bf16.msra.mxu0 0
    %1615 = vmatpush.bf16.msra.mxu0 0
    %1616 = vmatpush.bf16.msra.mxu0 0
    %1617 = vmatpush.bf16.msra.mxu0 %v486
    %1618 = vmatpush.bf16.msra.mxu0 %v485
    %1619 = vmatmul.bf16.gmra.mxu0 %v1609
    %v1620 = vpop.f32.mrf.mxu0
    %v1621 = vadd.f32 0.0, %v1620
    %v1622 = vpop.f32.mrf.mxu0
    %v1623 = vadd.f32 0.0, %v1622
    %1624 = vdwg.mxu0
    %v1625 = vadd.f32 %v1601, %v1621
    %v1626 = vadd.f32 %v1602, %v1623
    %v1627 = vxor.u32 %v1599, 2147483648
    %v1628 = vxor.u32 %v1600, 2147483648
    %v1629 = vmul.f32 %v1627, 1.442695
    %v1630 = vpow.pop %v1629
    %v1631 = vmul.f32 %v1628, 1.442695
    %v1632 = vpow.pop %v1631
    %v1633 = vadd.f32 %v1630, 1.0
    %v1634 = vadd.f32 %v1632, 1.0
    %v1635 = vrcp.pop %v1633
    %v1636 = vmul.f32 %v1633, %v1635
    %v1637 = vsub.f32 1.0, %v1636
    %v1638 = vmul.f32 %v1635, %v1637
    %v1639 = vadd.f32 %v1635, %v1638
    %vm1640 = vweird.f32 %v1633
    %vm1641 = vweird.f32 %v1635
    %vm1642 = vmor %vm1640, %vm1641
    %v1643 = vsel %vm1642, %v1635, %v1639
    %v1644 = vand.u32 2147483647, %v1633
    %vm1645 = vcmp.eq.f32.partialorder %v1644, 8.507059e+37
    %v1646 = vand.u32 %v1633, 2147483648
    %v1647 = vor.u32 1.1754944e-38, %v1646
    %v1648 = vsel %vm1645, %v1647, %v1643
    %v1649 = vmul.f32 1.0, %v1648
    %v1650 = vrcp.pop %v1634
    %v1651 = vmul.f32 %v1634, %v1650
    %v1652 = vsub.f32 1.0, %v1651
    %v1653 = vmul.f32 %v1650, %v1652
    %v1654 = vadd.f32 %v1650, %v1653
    %vm1655 = vweird.f32 %v1634
    %vm1656 = vweird.f32 %v1650
    %vm1657 = vmor %vm1655, %vm1656
    %v1658 = vsel %vm1657, %v1650, %v1654
    %v1659 = vand.u32 2147483647, %v1634
    %vm1660 = vcmp.eq.f32.partialorder %v1659, 8.507059e+37
    %v1661 = vand.u32 %v1634, 2147483648
    %v1662 = vor.u32 1.1754944e-38, %v1661
    %v1663 = vsel %vm1660, %v1662, %v1658
    %v1664 = vmul.f32 1.0, %v1663
    %v1665 = vtanh.pop %v1599
    %v1666 = vtanh.pop %v1600
    %v1667 = vmul.f32 %v1649, %v1463
    %v1668 = vmul.f32 %v1664, %v1464
    %1671 = vrot.lane.b32.xlu0 %v1665, 64
    %v1672 = vpop.permute.xlu0 %1671
    %1673 = vrot.lane.b32.xlu0 %v1666, 64
    %v1674 = vpop.permute.xlu0 %1673
    %v1677 = vmul.f32 %v1649, %v1672
    %v1678 = vmul.f32 %v1664, %v1674
    %1681 = vrot.lane.b32.xlu0 %v1677, 32
    %v1682 = vpop.permute.xlu0 %1681
    %1683 = vrot.lane.b32.xlu0 %v1678, 32
    %v1684 = vpop.permute.xlu0 %1683
    %v1687 = vadd.f32 %v1667, %v1682
    %v1688 = vadd.f32 %v1668, %v1684
    %v1689 = vtanh.pop %v1687
    %v1690 = vtanh.pop %v1688
    %1693 = vrot.lane.b32.xlu0 %v1689, 64
    %v1694 = vpop.permute.xlu0 %1693
    %1695 = vrot.lane.b32.xlu0 %v1690, 64
    %v1696 = vpop.permute.xlu0 %1695
    %v1699 = vmul.f32 %v1649, %v1694
    %v1700 = vmul.f32 %v1664, %v1696
    %v1701 = vxor.u32 %v1625, 2147483648
    %v1702 = vxor.u32 %v1626, 2147483648
    %v1703 = vmul.f32 %v1701, 1.442695
    %v1704 = vpow.pop %v1703
    %v1705 = vmul.f32 %v1702, 1.442695
    %v1706 = vpow.pop %v1705
    %v1707 = vadd.f32 %v1704, 1.0
    %v1708 = vadd.f32 %v1706, 1.0
    %v1709 = vrcp.pop %v1707
    %v1710 = vmul.f32 %v1707, %v1709
    %v1711 = vsub.f32 1.0, %v1710
    %v1712 = vmul.f32 %v1709, %v1711
    %v1713 = vadd.f32 %v1709, %v1712
    %vm1714 = vweird.f32 %v1707
    %vm1715 = vweird.f32 %v1709
    %vm1716 = vmor %vm1714, %vm1715
    %v1717 = vsel %vm1716, %v1709, %v1713
    %v1718 = vand.u32 2147483647, %v1707
    %vm1719 = vcmp.eq.f32.partialorder %v1718, 8.507059e+37
    %v1720 = vand.u32 %v1707, 2147483648
    %v1721 = vor.u32 1.1754944e-38, %v1720
    %v1722 = vsel %vm1719, %v1721, %v1717
    %v1723 = vmul.f32 1.0, %v1722
    %v1724 = vrcp.pop %v1708
    %v1725 = vmul.f32 %v1708, %v1724
    %v1726 = vsub.f32 1.0, %v1725
    %v1727 = vmul.f32 %v1724, %v1726
    %v1728 = vadd.f32 %v1724, %v1727
    %vm1729 = vweird.f32 %v1708
    %vm1730 = vweird.f32 %v1724
    %vm1731 = vmor %vm1729, %vm1730
    %v1732 = vsel %vm1731, %v1724, %v1728
    %v1733 = vand.u32 2147483647, %v1708
    %vm1734 = vcmp.eq.f32.partialorder %v1733, 8.507059e+37
    %v1735 = vand.u32 %v1708, 2147483648
    %v1736 = vor.u32 1.1754944e-38, %v1735
    %v1737 = vsel %vm1734, %v1736, %v1732
    %v1738 = vmul.f32 1.0, %v1737
    %v1739 = vtanh.pop %v1625
    %v1740 = vtanh.pop %v1626
    %v1741 = vmul.f32 %v1723, %v1537
    %v1742 = vmul.f32 %v1738, %v1538
    %1745 = vrot.lane.b32.xlu0 %v1739, 64
    %v1746 = vpop.permute.xlu0 %1745
    %1747 = vrot.lane.b32.xlu0 %v1740, 64
    %v1748 = vpop.permute.xlu0 %1747
    %v1751 = vmul.f32 %v1723, %v1746
    %v1752 = vmul.f32 %v1738, %v1748
    %1755 = vrot.lane.b32.xlu0 %v1751, 32
    %v1756 = vpop.permute.xlu0 %1755
    %1757 = vrot.lane.b32.xlu0 %v1752, 32
    %v1758 = vpop.permute.xlu0 %1757
    %v1761 = vadd.f32 %v1741, %v1756
    %v1762 = vadd.f32 %v1742, %v1758
    %v1763 = vtanh.pop %v1761
    %v1764 = vtanh.pop %v1762
    %1767 = vrot.lane.b32.xlu0 %v1763, 64
    %v1768 = vpop.permute.xlu0 %1767
    %1769 = vrot.lane.b32.xlu0 %v1764, 64
    %v1770 = vpop.permute.xlu0 %1769
    %v1773 = vmul.f32 %v1723, %v1768
    %v1774 = vmul.f32 %v1738, %v1770
    %v1775 = vpack.c.bf16 %v1699, %v1699
    %v1776 = vpack.c.bf16 %v1700, %v1700
    %v1777 = vpack.c.bf16 %v1773, %v1773
    %v1778 = vpack.c.bf16 %v1774, %v1774
    %1781 = vrot.lane.b32.xlu0 %v1775, 32
    %v1782 = vpop.permute.xlu0 %1781
    %1783 = vrot.lane.b32.xlu0 %v1776, 32
    %v1784 = vpop.permute.xlu0 %1783
    %1787 = vst.msk [vmem:[#allocation4 + $0x28] sm:$0xf] %vm665, %v1782
    %1788 = vst.msk [vmem:[#allocation4 + $0x2c] sm:$0xf] %vm665, %v1784
    %1791 = vrot.lane.b32.xlu0 %v1777, 64
    %v1792 = vpop.permute.xlu0 %1791
    %1793 = vrot.lane.b32.xlu0 %v1778, 64
    %v1794 = vpop.permute.xlu0 %1793
    %1797 = vst.msk [vmem:[#allocation4 + $0x10] sm:$0xf] %vm676, %v1792
    %1798 = vst.msk [vmem:[#allocation4 + $0x14] sm:$0xf] %vm676, %v1794
    %v1799 = vld [vmem:[#allocation2 + $0x60] sm:$0xff]
    %v1800 = vld [vmem:[#allocation2 + $0x68] sm:$0xff]
    %v1801 = vunpack.c.l.b16 %v1775
    %v1802 = vunpack.c.l.b16 %v1776
    %v1803 = vpack.c.b16 %v1802, %v1801
    %1804 = vrot.lane.b32.xlu0 %v1803, 32
    %v1805 = vpop.permute.xlu0 %1804
    %v1807 = vsel %vm259, %v1805, 0
    %1809 = vmatpush.bf16.msra.mxu0 0
    %1810 = vmatpush.bf16.msra.mxu0 0
    %1811 = vmatpush.bf16.msra.mxu0 0
    %1812 = vmatpush.bf16.msra.mxu0 0
    %1813 = vmatpush.bf16.msra.mxu0 0
    %1814 = vmatpush.bf16.msra.mxu0 0
    %1815 = vmatpush.bf16.msra.mxu0 %v453
    %1816 = vmatpush.bf16.msra.mxu0 %v452
    %1817 = vmatmul.bf16.gmra.mxu0 %v1807
    %v1818 = vpop.f32.mrf.mxu0
    %v1819 = vadd.f32 0.0, %v1818
    %v1820 = vpop.f32.mrf.mxu0
    %v1821 = vadd.f32 0.0, %v1820
    %1822 = vdwg.mxu0
    %v1823 = vadd.f32 %v1799, %v1819
    %v1824 = vadd.f32 %v1800, %v1821
    %v1825 = vld [vmem:[#allocation3 + $0x10] sm:$0xff]
    %v1826 = vld [vmem:[#allocation3 + $0x18] sm:$0xff]
    %v1827 = vunpack.c.l.b16 %v1777
    %v1828 = vunpack.c.l.b16 %v1778
    %v1829 = vpack.c.b16 %v1828, %v1827
    %1830 = vrot.lane.b32.xlu0 %v1829, 32
    %v1831 = vpop.permute.xlu0 %1830
    %v1833 = vsel %vm259, %v1831, 0
    %1835 = vmatpush.bf16.msra.mxu0 0
    %1836 = vmatpush.bf16.msra.mxu0 0
    %1837 = vmatpush.bf16.msra.mxu0 0
    %1838 = vmatpush.bf16.msra.mxu0 0
    %1839 = vmatpush.bf16.msra.mxu0 0
    %1840 = vmatpush.bf16.msra.mxu0 0
    %1841 = vmatpush.bf16.msra.mxu0 %v486
    %1842 = vmatpush.bf16.msra.mxu0 %v485
    %1843 = vmatmul.bf16.gmra.mxu0 %v1833
    %v1844 = vpop.f32.mrf.mxu0
    %v1845 = vadd.f32 0.0, %v1844
    %v1846 = vpop.f32.mrf.mxu0
    %v1847 = vadd.f32 0.0, %v1846
    %1848 = vdwg.mxu0
    %v1849 = vadd.f32 %v1825, %v1845
    %v1850 = vadd.f32 %v1826, %v1847
    %v1851 = vxor.u32 %v1823, 2147483648
    %v1852 = vxor.u32 %v1824, 2147483648
    %v1853 = vmul.f32 %v1851, 1.442695
    %v1854 = vpow.pop %v1853
    %v1855 = vmul.f32 %v1852, 1.442695
    %v1856 = vpow.pop %v1855
    %v1857 = vadd.f32 %v1854, 1.0
    %v1858 = vadd.f32 %v1856, 1.0
    %v1859 = vrcp.pop %v1857
    %v1860 = vmul.f32 %v1857, %v1859
    %v1861 = vsub.f32 1.0, %v1860
    %v1862 = vmul.f32 %v1859, %v1861
    %v1863 = vadd.f32 %v1859, %v1862
    %vm1864 = vweird.f32 %v1857
    %vm1865 = vweird.f32 %v1859
    %vm1866 = vmor %vm1864, %vm1865
    %v1867 = vsel %vm1866, %v1859, %v1863
    %v1868 = vand.u32 2147483647, %v1857
    %vm1869 = vcmp.eq.f32.partialorder %v1868, 8.507059e+37
    %v1870 = vand.u32 %v1857, 2147483648
    %v1871 = vor.u32 1.1754944e-38, %v1870
    %v1872 = vsel %vm1869, %v1871, %v1867
    %v1873 = vmul.f32 1.0, %v1872
    %v1874 = vrcp.pop %v1858
    %v1875 = vmul.f32 %v1858, %v1874
    %v1876 = vsub.f32 1.0, %v1875
    %v1877 = vmul.f32 %v1874, %v1876
    %v1878 = vadd.f32 %v1874, %v1877
    %vm1879 = vweird.f32 %v1858
    %vm1880 = vweird.f32 %v1874
    %vm1881 = vmor %vm1879, %vm1880
    %v1882 = vsel %vm1881, %v1874, %v1878
    %v1883 = vand.u32 2147483647, %v1858
    %vm1884 = vcmp.eq.f32.partialorder %v1883, 8.507059e+37
    %v1885 = vand.u32 %v1858, 2147483648
    %v1886 = vor.u32 1.1754944e-38, %v1885
    %v1887 = vsel %vm1884, %v1886, %v1882
    %v1888 = vmul.f32 1.0, %v1887
    %v1889 = vtanh.pop %v1823
    %v1890 = vtanh.pop %v1824
    %v1891 = vmul.f32 %v1873, %v1687
    %v1892 = vmul.f32 %v1888, %v1688
    %1895 = vrot.lane.b32.xlu0 %v1889, 64
    %v1896 = vpop.permute.xlu0 %1895
    %1897 = vrot.lane.b32.xlu0 %v1890, 64
    %v1898 = vpop.permute.xlu0 %1897
    %v1901 = vmul.f32 %v1873, %v1896
    %v1902 = vmul.f32 %v1888, %v1898
    %1905 = vrot.lane.b32.xlu0 %v1901, 32
    %v1906 = vpop.permute.xlu0 %1905
    %1907 = vrot.lane.b32.xlu0 %v1902, 32
    %v1908 = vpop.permute.xlu0 %1907
    %v1911 = vadd.f32 %v1891, %v1906
    %v1912 = vadd.f32 %v1892, %v1908
    %v1913 = vtanh.pop %v1911
    %v1914 = vtanh.pop %v1912
    %1917 = vrot.lane.b32.xlu0 %v1913, 64
    %v1918 = vpop.permute.xlu0 %1917
    %1919 = vrot.lane.b32.xlu0 %v1914, 64
    %v1920 = vpop.permute.xlu0 %1919
    %v1923 = vmul.f32 %v1873, %v1918
    %v1924 = vmul.f32 %v1888, %v1920
    %v1925 = vxor.u32 %v1849, 2147483648
    %v1926 = vxor.u32 %v1850, 2147483648
    %v1927 = vmul.f32 %v1925, 1.442695
    %v1928 = vpow.pop %v1927
    %v1929 = vmul.f32 %v1926, 1.442695
    %v1930 = vpow.pop %v1929
    %v1931 = vadd.f32 %v1928, 1.0
    %v1932 = vadd.f32 %v1930, 1.0
    %v1933 = vrcp.pop %v1931
    %v1934 = vmul.f32 %v1931, %v1933
    %v1935 = vsub.f32 1.0, %v1934
    %v1936 = vmul.f32 %v1933, %v1935
    %v1937 = vadd.f32 %v1933, %v1936
    %vm1938 = vweird.f32 %v1931
    %vm1939 = vweird.f32 %v1933
    %vm1940 = vmor %vm1938, %vm1939
    %v1941 = vsel %vm1940, %v1933, %v1937
    %v1942 = vand.u32 2147483647, %v1931
    %vm1943 = vcmp.eq.f32.partialorder %v1942, 8.507059e+37
    %v1944 = vand.u32 %v1931, 2147483648
    %v1945 = vor.u32 1.1754944e-38, %v1944
    %v1946 = vsel %vm1943, %v1945, %v1941
    %v1947 = vmul.f32 1.0, %v1946
    %v1948 = vrcp.pop %v1932
    %v1949 = vmul.f32 %v1932, %v1948
    %v1950 = vsub.f32 1.0, %v1949
    %v1951 = vmul.f32 %v1948, %v1950
    %v1952 = vadd.f32 %v1948, %v1951
    %vm1953 = vweird.f32 %v1932
    %vm1954 = vweird.f32 %v1948
    %vm1955 = vmor %vm1953, %vm1954
    %v1956 = vsel %vm1955, %v1948, %v1952
    %v1957 = vand.u32 2147483647, %v1932
    %vm1958 = vcmp.eq.f32.partialorder %v1957, 8.507059e+37
    %v1959 = vand.u32 %v1932, 2147483648
    %v1960 = vor.u32 1.1754944e-38, %v1959
    %v1961 = vsel %vm1958, %v1960, %v1956
    %v1962 = vmul.f32 1.0, %v1961
    %v1963 = vtanh.pop %v1849
    %v1964 = vtanh.pop %v1850
    %v1965 = vmul.f32 %v1947, %v1761
    %v1966 = vmul.f32 %v1962, %v1762
    %1969 = vrot.lane.b32.xlu0 %v1963, 64
    %v1970 = vpop.permute.xlu0 %1969
    %1971 = vrot.lane.b32.xlu0 %v1964, 64
    %v1972 = vpop.permute.xlu0 %1971
    %v1975 = vmul.f32 %v1947, %v1970
    %v1976 = vmul.f32 %v1962, %v1972
    %1979 = vrot.lane.b32.xlu0 %v1975, 32
    %v1980 = vpop.permute.xlu0 %1979
    %1981 = vrot.lane.b32.xlu0 %v1976, 32
    %v1982 = vpop.permute.xlu0 %1981
    %v1985 = vadd.f32 %v1965, %v1980
    %v1986 = vadd.f32 %v1966, %v1982
    %v1987 = vtanh.pop %v1985
    %v1988 = vtanh.pop %v1986
    %1991 = vrot.lane.b32.xlu0 %v1987, 64
    %v1992 = vpop.permute.xlu0 %1991
    %1993 = vrot.lane.b32.xlu0 %v1988, 64
    %v1994 = vpop.permute.xlu0 %1993
    %v1997 = vmul.f32 %v1947, %v1992
    %v1998 = vmul.f32 %v1962, %v1994
    %v1999 = vpack.c.bf16 %v1923, %v1923
    %v2000 = vpack.c.bf16 %v1924, %v1924
    %v2001 = vpack.c.bf16 %v1997, %v1997
    %v2002 = vpack.c.bf16 %v1998, %v1998
    %2005 = vrot.lane.b32.xlu0 %v1999, 32
    %v2006 = vpop.permute.xlu0 %2005
    %2007 = vrot.lane.b32.xlu0 %v2000, 32
    %v2008 = vpop.permute.xlu0 %2007
    %2011 = vst.msk [vmem:[#allocation4 + $0x30] sm:$0xf] %vm665, %v2006
    %2012 = vst.msk [vmem:[#allocation4 + $0x34] sm:$0xf] %vm665, %v2008
    %2015 = vrot.lane.b32.xlu0 %v2001, 64
    %v2016 = vpop.permute.xlu0 %2015
    %2017 = vrot.lane.b32.xlu0 %v2002, 64
    %v2018 = vpop.permute.xlu0 %2017
    %2021 = vst.msk [vmem:[#allocation4 + $0x8] sm:$0xf] %vm676, %v2016
    %2022 = vst.msk [vmem:[#allocation4 + $0xc] sm:$0xf] %vm676, %v2018
    %v2023 = vld [vmem:[#allocation2 + $0x70] sm:$0xff]
    %v2024 = vld [vmem:[#allocation2 + $0x78] sm:$0xff]
    %v2025 = vunpack.c.l.b16 %v1999
    %v2026 = vunpack.c.l.b16 %v2000
    %v2027 = vpack.c.b16 %v2026, %v2025
    %2028 = vrot.lane.b32.xlu0 %v2027, 32
    %v2029 = vpop.permute.xlu0 %2028
    %v2031 = vsel %vm259, %v2029, 0
    %2033 = vmatpush.bf16.msra.mxu0 0
    %2034 = vmatpush.bf16.msra.mxu0 0
    %2035 = vmatpush.bf16.msra.mxu0 0
    %2036 = vmatpush.bf16.msra.mxu0 0
    %2037 = vmatpush.bf16.msra.mxu0 0
    %2038 = vmatpush.bf16.msra.mxu0 0
    %2039 = vmatpush.bf16.msra.mxu0 %v453
    %2040 = vmatpush.bf16.msra.mxu0 %v452
    %2041 = vmatmul.bf16.gmra.mxu0 %v2031
    %v2042 = vpop.f32.mrf.mxu0
    %v2043 = vadd.f32 0.0, %v2042
    %v2044 = vpop.f32.mrf.mxu0
    %v2045 = vadd.f32 0.0, %v2044
    %2046 = vdwg.mxu0
    %v2047 = vadd.f32 %v2023, %v2043
    %v2048 = vadd.f32 %v2024, %v2045
    %v2049 = vld [vmem:[#allocation3] sm:$0xff]
    %v2050 = vld [vmem:[#allocation3 + $0x8] sm:$0xff]
    %v2051 = vunpack.c.l.b16 %v2001
    %v2052 = vunpack.c.l.b16 %v2002
    %v2053 = vpack.c.b16 %v2052, %v2051
    %2054 = vrot.lane.b32.xlu0 %v2053, 32
    %v2055 = vpop.permute.xlu0 %2054
    %v2057 = vsel %vm259, %v2055, 0
    %2059 = vmatpush.bf16.msra.mxu0 0
    %2060 = vmatpush.bf16.msra.mxu0 0
    %2061 = vmatpush.bf16.msra.mxu0 0
    %2062 = vmatpush.bf16.msra.mxu0 0
    %2063 = vmatpush.bf16.msra.mxu0 0
    %2064 = vmatpush.bf16.msra.mxu0 0
    %2065 = vmatpush.bf16.msra.mxu0 %v486
    %2066 = vmatpush.bf16.msra.mxu0 %v485
    %2067 = vmatmul.bf16.gmra.mxu0 %v2057
    %v2068 = vpop.f32.mrf.mxu0
    %v2069 = vadd.f32 0.0, %v2068
    %v2070 = vpop.f32.mrf.mxu0
    %v2071 = vadd.f32 0.0, %v2070
    %2072 = vdwg.mxu0
    %v2073 = vadd.f32 %v2049, %v2069
    %v2074 = vadd.f32 %v2050, %v2071
    %v2075 = vxor.u32 %v2047, 2147483648
    %v2076 = vxor.u32 %v2048, 2147483648
    %v2077 = vmul.f32 %v2075, 1.442695
    %v2078 = vpow.pop %v2077
    %v2079 = vmul.f32 %v2076, 1.442695
    %v2080 = vpow.pop %v2079
    %v2081 = vadd.f32 %v2078, 1.0
    %v2082 = vadd.f32 %v2080, 1.0
    %v2083 = vrcp.pop %v2081
    %v2084 = vmul.f32 %v2081, %v2083
    %v2085 = vsub.f32 1.0, %v2084
    %v2086 = vmul.f32 %v2083, %v2085
    %v2087 = vadd.f32 %v2083, %v2086
    %vm2088 = vweird.f32 %v2081
    %vm2089 = vweird.f32 %v2083
    %vm2090 = vmor %vm2088, %vm2089
    %v2091 = vsel %vm2090, %v2083, %v2087
    %v2092 = vand.u32 2147483647, %v2081
    %vm2093 = vcmp.eq.f32.partialorder %v2092, 8.507059e+37
    %v2094 = vand.u32 %v2081, 2147483648
    %v2095 = vor.u32 1.1754944e-38, %v2094
    %v2096 = vsel %vm2093, %v2095, %v2091
    %v2097 = vmul.f32 1.0, %v2096
    %v2098 = vrcp.pop %v2082
    %v2099 = vmul.f32 %v2082, %v2098
    %v2100 = vsub.f32 1.0, %v2099
    %v2101 = vmul.f32 %v2098, %v2100
    %v2102 = vadd.f32 %v2098, %v2101
    %vm2103 = vweird.f32 %v2082
    %vm2104 = vweird.f32 %v2098
    %vm2105 = vmor %vm2103, %vm2104
    %v2106 = vsel %vm2105, %v2098, %v2102
    %v2107 = vand.u32 2147483647, %v2082
    %vm2108 = vcmp.eq.f32.partialorder %v2107, 8.507059e+37
    %v2109 = vand.u32 %v2082, 2147483648
    %v2110 = vor.u32 1.1754944e-38, %v2109
    %v2111 = vsel %vm2108, %v2110, %v2106
    %v2112 = vmul.f32 1.0, %v2111
    %v2113 = vtanh.pop %v2047
    %v2114 = vtanh.pop %v2048
    %v2115 = vmul.f32 %v2097, %v1911
    %v2116 = vmul.f32 %v2112, %v1912
    %2119 = vrot.lane.b32.xlu0 %v2113, 64
    %v2120 = vpop.permute.xlu0 %2119
    %2121 = vrot.lane.b32.xlu0 %v2114, 64
    %v2122 = vpop.permute.xlu0 %2121
    %v2125 = vmul.f32 %v2097, %v2120
    %v2126 = vmul.f32 %v2112, %v2122
    %2129 = vrot.lane.b32.xlu0 %v2125, 32
    %v2130 = vpop.permute.xlu0 %2129
    %2131 = vrot.lane.b32.xlu0 %v2126, 32
    %v2132 = vpop.permute.xlu0 %2131
    %v2135 = vadd.f32 %v2115, %v2130
    %v2136 = vadd.f32 %v2116, %v2132
    %v2137 = vtanh.pop %v2135
    %v2138 = vtanh.pop %v2136
    %2141 = vrot.lane.b32.xlu0 %v2137, 64
    %v2142 = vpop.permute.xlu0 %2141
    %2143 = vrot.lane.b32.xlu0 %v2138, 64
    %v2144 = vpop.permute.xlu0 %2143
    %v2147 = vmul.f32 %v2097, %v2142
    %v2148 = vmul.f32 %v2112, %v2144
    %v2149 = vxor.u32 %v2073, 2147483648
    %v2150 = vxor.u32 %v2074, 2147483648
    %v2151 = vmul.f32 %v2149, 1.442695
    %v2152 = vpow.pop %v2151
    %v2153 = vmul.f32 %v2150, 1.442695
    %v2154 = vpow.pop %v2153
    %v2155 = vadd.f32 %v2152, 1.0
    %v2156 = vadd.f32 %v2154, 1.0
    %v2157 = vrcp.pop %v2155
    %v2158 = vmul.f32 %v2155, %v2157
    %v2159 = vsub.f32 1.0, %v2158
    %v2160 = vmul.f32 %v2157, %v2159
    %v2161 = vadd.f32 %v2157, %v2160
    %vm2162 = vweird.f32 %v2155
    %vm2163 = vweird.f32 %v2157
    %vm2164 = vmor %vm2162, %vm2163
    %v2165 = vsel %vm2164, %v2157, %v2161
    %v2166 = vand.u32 2147483647, %v2155
    %vm2167 = vcmp.eq.f32.partialorder %v2166, 8.507059e+37
    %v2168 = vand.u32 %v2155, 2147483648
    %v2169 = vor.u32 1.1754944e-38, %v2168
    %v2170 = vsel %vm2167, %v2169, %v2165
    %v2171 = vmul.f32 1.0, %v2170
    %v2172 = vrcp.pop %v2156
    %v2173 = vmul.f32 %v2156, %v2172
    %v2174 = vsub.f32 1.0, %v2173
    %v2175 = vmul.f32 %v2172, %v2174
    %v2176 = vadd.f32 %v2172, %v2175
    %vm2177 = vweird.f32 %v2156
    %vm2178 = vweird.f32 %v2172
    %vm2179 = vmor %vm2177, %vm2178
    %v2180 = vsel %vm2179, %v2172, %v2176
    %v2181 = vand.u32 2147483647, %v2156
    %vm2182 = vcmp.eq.f32.partialorder %v2181, 8.507059e+37
    %v2183 = vand.u32 %v2156, 2147483648
    %v2184 = vor.u32 1.1754944e-38, %v2183
    %v2185 = vsel %vm2182, %v2184, %v2180
    %v2186 = vmul.f32 1.0, %v2185
    %v2187 = vtanh.pop %v2073
    %v2188 = vtanh.pop %v2074
    %v2189 = vmul.f32 %v2171, %v1985
    %v2190 = vmul.f32 %v2186, %v1986
    %2193 = vrot.lane.b32.xlu0 %v2187, 64
    %v2194 = vpop.permute.xlu0 %2193
    %2195 = vrot.lane.b32.xlu0 %v2188, 64
    %v2196 = vpop.permute.xlu0 %2195
    %v2199 = vmul.f32 %v2171, %v2194
    %v2200 = vmul.f32 %v2186, %v2196
    %2203 = vrot.lane.b32.xlu0 %v2199, 32
    %v2204 = vpop.permute.xlu0 %2203
    %2205 = vrot.lane.b32.xlu0 %v2200, 32
    %v2206 = vpop.permute.xlu0 %2205
    %v2209 = vadd.f32 %v2189, %v2204
    %v2210 = vadd.f32 %v2190, %v2206
    %v2211 = vtanh.pop %v2209
    %v2212 = vtanh.pop %v2210
    %2215 = vrot.lane.b32.xlu0 %v2211, 64
    %v2216 = vpop.permute.xlu0 %2215
    %2217 = vrot.lane.b32.xlu0 %v2212, 64
    %v2218 = vpop.permute.xlu0 %2217
    %v2221 = vmul.f32 %v2171, %v2216
    %v2222 = vmul.f32 %v2186, %v2218
    %v2223 = vpack.c.bf16 %v2147, %v2147
    %v2224 = vpack.c.bf16 %v2148, %v2148
    %v2225 = vpack.c.bf16 %v2221, %v2221
    %v2226 = vpack.c.bf16 %v2222, %v2222
    %2229 = vrot.lane.b32.xlu0 %v2223, 32
    %v2230 = vpop.permute.xlu0 %2229
    %2231 = vrot.lane.b32.xlu0 %v2224, 32
    %v2232 = vpop.permute.xlu0 %2231
    %2235 = vst.msk [vmem:[#allocation4 + $0x38] sm:$0xf] %vm665, %v2230
    %2236 = vst.msk [vmem:[#allocation4 + $0x3c] sm:$0xf] %vm665, %v2232
    %2239 = vrot.lane.b32.xlu0 %v2225, 64
    %v2240 = vpop.permute.xlu0 %2239
    %2241 = vrot.lane.b32.xlu0 %v2226, 64
    %v2242 = vpop.permute.xlu0 %2241
    %2245 = vst.msk [vmem:[#allocation4] sm:$0xf] %vm676, %v2240
    %2246 = vst.msk [vmem:[#allocation4 + $0x4] sm:$0xf] %vm676, %v2242
    %v2247 = vld [vmem:[#allocation4] sm:$0xf]
    %v2248 = vld [vmem:[#allocation4 + $0x4] sm:$0xf]
    %v2249 = vld [vmem:[#allocation4 + $0x8] sm:$0xf]
    %v2250 = vld [vmem:[#allocation4 + $0xc] sm:$0xf]
    %v2251 = vld [vmem:[#allocation4 + $0x10] sm:$0xf]
    %v2252 = vld [vmem:[#allocation4 + $0x14] sm:$0xf]
    %v2253 = vld [vmem:[#allocation4 + $0x18] sm:$0xf]
    %v2254 = vld [vmem:[#allocation4 + $0x1c] sm:$0xf]
    %v2255 = vld [vmem:[#allocation4 + $0x20] sm:$0xf]
    %v2256 = vld [vmem:[#allocation4 + $0x24] sm:$0xf]
    %v2257 = vld [vmem:[#allocation4 + $0x28] sm:$0xf]
    %v2258 = vld [vmem:[#allocation4 + $0x2c] sm:$0xf]
    %v2259 = vld [vmem:[#allocation4 + $0x30] sm:$0xf]
    %v2260 = vld [vmem:[#allocation4 + $0x34] sm:$0xf]
    %v2261 = vld [vmem:[#allocation4 + $0x38] sm:$0xf]
    %v2262 = vld [vmem:[#allocation4 + $0x3c] sm:$0xf]
    %v2263 = vld [vmem:[#allocation11] sm:$0xf]
    %v2264 = vld [vmem:[#allocation11 + $0x4] sm:$0xf]
    %v2265 = vld [vmem:[#allocation11 + $0x8] sm:$0xf]
    %v2266 = vld [vmem:[#allocation11 + $0xc] sm:$0xf]
    %v2267 = vld [vmem:[#allocation11 + $0x10] sm:$0xf]
    %v2268 = vld [vmem:[#allocation11 + $0x14] sm:$0xf]
    %v2269 = vld [vmem:[#allocation11 + $0x18] sm:$0xf]
    %v2270 = vld [vmem:[#allocation11 + $0x1c] sm:$0xf]
    %v2271 = vld [vmem:[%s9] sm:$0x1]
    %v2273 = vperm.slane %v2271, 0
    %v2291 = vunpack.c.l.b16 %v2247
    %v2292 = vunpack.c.l.b16 %v2248
    %v2293 = vunpack.c.l.b16 %v2249
    %v2294 = vunpack.c.l.b16 %v2250
    %v2295 = vunpack.c.l.b16 %v2251
    %v2296 = vunpack.c.l.b16 %v2252
    %v2297 = vunpack.c.l.b16 %v2253
    %v2298 = vunpack.c.l.b16 %v2254
    %v2299 = vunpack.c.l.b16 %v2255
    %v2300 = vunpack.c.l.b16 %v2256
    %v2301 = vunpack.c.l.b16 %v2257
    %v2302 = vunpack.c.l.b16 %v2258
    %v2303 = vunpack.c.l.b16 %v2259
    %v2304 = vunpack.c.l.b16 %v2260
    %v2305 = vunpack.c.l.b16 %v2261
    %v2306 = vunpack.c.l.b16 %v2262
    %v2307 = vpack.c.b16 %v2292, %v2291
    %v2308 = vpack.c.b16 %v2294, %v2293
    %v2309 = vpack.c.b16 %v2296, %v2295
    %v2310 = vpack.c.b16 %v2298, %v2297
    %v2311 = vpack.c.b16 %v2300, %v2299
    %v2312 = vpack.c.b16 %v2302, %v2301
    %v2313 = vpack.c.b16 %v2304, %v2303
    %v2314 = vpack.c.b16 %v2306, %v2305
    %v2323 = vunpack.c.l.b16 %v2263
    %v2324 = vunpack.c.l.b16 %v2264
    %v2325 = vunpack.c.l.b16 %v2265
    %v2326 = vunpack.c.l.b16 %v2266
    %v2327 = vunpack.c.l.b16 %v2267
    %v2328 = vunpack.c.l.b16 %v2268
    %v2329 = vunpack.c.l.b16 %v2269
    %v2330 = vunpack.c.l.b16 %v2270
    %v2331 = vpack.c.b16 %v2324, %v2323
    %v2332 = vpack.c.b16 %v2326, %v2325
    %v2333 = vpack.c.b16 %v2328, %v2327
    %v2334 = vpack.c.b16 %v2330, %v2329
    %vm2339 = vcmask 523264
    %v2341 = vsel %vm2339, %v2307, 0
    %v2344 = vsel %vm2339, %v2308, 0
    %v2347 = vsel %vm2339, %v2309, 0
    %v2350 = vsel %vm2339, %v2310, 0
    %v2353 = vsel %vm2339, %v2311, 0
    %v2356 = vsel %vm2339, %v2312, 0
    %v2359 = vsel %vm2339, %v2313, 0
    %v2362 = vsel %vm2339, %v2314, 0
    %2364 = vmatpush.bf16.msra.mxu0 0
    %2365 = vmatpush.bf16.msra.mxu0 0
    %2366 = vmatpush.bf16.msra.mxu0 0
    %2367 = vmatpush.bf16.msra.mxu0 0
    %2368 = vmatpush.bf16.msra.mxu0 %v2334
    %2369 = vmatpush.bf16.msra.mxu0 %v2333
    %2370 = vmatpush.bf16.msra.mxu0 %v2332
    %2371 = vmatpush.bf16.msra.mxu0 %v2331
    %2372 = vmatmul.bf16.gmra.mxu0 %v2341
    %v2373 = vpop.f32.mrf.mxu0
    %v2374 = vadd.f32 %v2273, %v2373
    %v2375 = vpop.f32.mrf.mxu0
    %v2376 = vadd.f32 %v2273, %v2375
    %2377 = vmatmul.bf16.gmra.mxu0 %v2344
    %v2378 = vpop.f32.mrf.mxu0
    %v2379 = vadd.f32 %v2273, %v2378
    %v2380 = vpop.f32.mrf.mxu0
    %v2381 = vadd.f32 %v2273, %v2380
    %2382 = vmatmul.bf16.gmra.mxu0 %v2347
    %v2383 = vpop.f32.mrf.mxu0
    %v2384 = vadd.f32 %v2273, %v2383
    %v2385 = vpop.f32.mrf.mxu0
    %v2386 = vadd.f32 %v2273, %v2385
    %2387 = vmatmul.bf16.gmra.mxu0 %v2350
    %v2388 = vpop.f32.mrf.mxu0
    %v2389 = vadd.f32 %v2273, %v2388
    %v2390 = vpop.f32.mrf.mxu0
    %v2391 = vadd.f32 %v2273, %v2390
    %2392 = vmatmul.bf16.gmra.mxu0 %v2353
    %v2393 = vpop.f32.mrf.mxu0
    %v2394 = vadd.f32 %v2273, %v2393
    %v2395 = vpop.f32.mrf.mxu0
    %v2396 = vadd.f32 %v2273, %v2395
    %2397 = vmatmul.bf16.gmra.mxu0 %v2356
    %v2398 = vpop.f32.mrf.mxu0
    %v2399 = vadd.f32 %v2273, %v2398
    %v2400 = vpop.f32.mrf.mxu0
    %v2401 = vadd.f32 %v2273, %v2400
    %2402 = vmatmul.bf16.gmra.mxu0 %v2359
    %v2403 = vpop.f32.mrf.mxu0
    %v2404 = vadd.f32 %v2273, %v2403
    %v2405 = vpop.f32.mrf.mxu0
    %v2406 = vadd.f32 %v2273, %v2405
    %2407 = vmatmul.bf16.gmra.mxu0 %v2362
    %v2408 = vpop.f32.mrf.mxu0
    %v2409 = vadd.f32 %v2273, %v2408
    %v2410 = vpop.f32.mrf.mxu0
    %v2411 = vadd.f32 %v2273, %v2410
    %2412 = vdwg.mxu0
    %2413 = vst [vmem:[#allocation2] sm:$0xff] %v2374
    %2414 = vst [vmem:[#allocation2 + $0x8] sm:$0xff] %v2376
    %2415 = vst [vmem:[#allocation2 + $0x10] sm:$0xff] %v2379
    %2416 = vst [vmem:[#allocation2 + $0x18] sm:$0xff] %v2381
    %2417 = vst [vmem:[#allocation2 + $0x20] sm:$0xff] %v2384
    %2418 = vst [vmem:[#allocation2 + $0x28] sm:$0xff] %v2386
    %2419 = vst [vmem:[#allocation2 + $0x30] sm:$0xff] %v2389
    %2420 = vst [vmem:[#allocation2 + $0x38] sm:$0xff] %v2391
    %2421 = vst [vmem:[#allocation2 + $0x40] sm:$0xff] %v2394
    %2422 = vst [vmem:[#allocation2 + $0x48] sm:$0xff] %v2396
    %2423 = vst [vmem:[#allocation2 + $0x50] sm:$0xff] %v2399
    %2424 = vst [vmem:[#allocation2 + $0x58] sm:$0xff] %v2401
    %2425 = vst [vmem:[#allocation2 + $0x60] sm:$0xff] %v2404
    %2426 = vst [vmem:[#allocation2 + $0x68] sm:$0xff] %v2406
    %2427 = vst [vmem:[#allocation2 + $0x70] sm:$0xff] %v2409
    %2428 = vst [vmem:[#allocation2 + $0x78] sm:$0xff] %v2411
    %v2429 = vld [vmem:[#allocation14] sm:$0xf]
    %v2430 = vld [vmem:[#allocation14 + $0x4] sm:$0xf]
    %v2431 = vld [vmem:[#allocation14 + $0x8] sm:$0xf]
    %v2432 = vld [vmem:[#allocation14 + $0xc] sm:$0xf]
    %v2433 = vld [vmem:[#allocation14 + $0x10] sm:$0xf]
    %v2434 = vld [vmem:[#allocation14 + $0x14] sm:$0xf]
    %v2435 = vld [vmem:[#allocation14 + $0x18] sm:$0xf]
    %v2436 = vld [vmem:[#allocation14 + $0x1c] sm:$0xf]
    %v2437 = vld [vmem:[%s12] sm:$0x1]
    %v2439 = vperm.slane %v2437, 0
    %v2449 = vunpack.c.l.b16 %v2429
    %v2450 = vunpack.c.l.b16 %v2430
    %v2451 = vunpack.c.l.b16 %v2431
    %v2452 = vunpack.c.l.b16 %v2432
    %v2453 = vunpack.c.l.b16 %v2433
    %v2454 = vunpack.c.l.b16 %v2434
    %v2455 = vunpack.c.l.b16 %v2435
    %v2456 = vunpack.c.l.b16 %v2436
    %v2457 = vpack.c.b16 %v2450, %v2449
    %v2458 = vpack.c.b16 %v2452, %v2451
    %v2459 = vpack.c.b16 %v2454, %v2453
    %v2460 = vpack.c.b16 %v2456, %v2455
    %2465 = vmatpush.bf16.msra.mxu0 0
    %2466 = vmatpush.bf16.msra.mxu0 0
    %2467 = vmatpush.bf16.msra.mxu0 0
    %2468 = vmatpush.bf16.msra.mxu0 0
    %2469 = vmatpush.bf16.msra.mxu0 %v2460
    %2470 = vmatpush.bf16.msra.mxu0 %v2459
    %2471 = vmatpush.bf16.msra.mxu0 %v2458
    %2472 = vmatpush.bf16.msra.mxu0 %v2457
    %2473 = vmatmul.bf16.gmra.mxu0 %v2341
    %v2474 = vpop.f32.mrf.mxu0
    %v2475 = vadd.f32 %v2439, %v2474
    %v2476 = vpop.f32.mrf.mxu0
    %v2477 = vadd.f32 %v2439, %v2476
    %2478 = vmatmul.bf16.gmra.mxu0 %v2344
    %v2479 = vpop.f32.mrf.mxu0
    %v2480 = vadd.f32 %v2439, %v2479
    %v2481 = vpop.f32.mrf.mxu0
    %v2482 = vadd.f32 %v2439, %v2481
    %2483 = vmatmul.bf16.gmra.mxu0 %v2347
    %v2484 = vpop.f32.mrf.mxu0
    %v2485 = vadd.f32 %v2439, %v2484
    %v2486 = vpop.f32.mrf.mxu0
    %v2487 = vadd.f32 %v2439, %v2486
    %2488 = vmatmul.bf16.gmra.mxu0 %v2350
    %v2489 = vpop.f32.mrf.mxu0
    %v2490 = vadd.f32 %v2439, %v2489
    %v2491 = vpop.f32.mrf.mxu0
    %v2492 = vadd.f32 %v2439, %v2491
    %2493 = vmatmul.bf16.gmra.mxu0 %v2353
    %v2494 = vpop.f32.mrf.mxu0
    %v2495 = vadd.f32 %v2439, %v2494
    %v2496 = vpop.f32.mrf.mxu0
    %v2497 = vadd.f32 %v2439, %v2496
    %2498 = vmatmul.bf16.gmra.mxu0 %v2356
    %v2499 = vpop.f32.mrf.mxu0
    %v2500 = vadd.f32 %v2439, %v2499
    %v2501 = vpop.f32.mrf.mxu0
    %v2502 = vadd.f32 %v2439, %v2501
    %2503 = vmatmul.bf16.gmra.mxu0 %v2359
    %v2504 = vpop.f32.mrf.mxu0
    %v2505 = vadd.f32 %v2439, %v2504
    %v2506 = vpop.f32.mrf.mxu0
    %v2507 = vadd.f32 %v2439, %v2506
    %2508 = vmatmul.bf16.gmra.mxu0 %v2362
    %v2509 = vpop.f32.mrf.mxu0
    %v2510 = vadd.f32 %v2439, %v2509
    %v2511 = vpop.f32.mrf.mxu0
    %v2512 = vadd.f32 %v2439, %v2511
    %2513 = vdwg.mxu0
    %2514 = vst [vmem:[#allocation3] sm:$0xff] %v2475
    %2515 = vst [vmem:[#allocation3 + $0x8] sm:$0xff] %v2477
    %2516 = vst [vmem:[#allocation3 + $0x10] sm:$0xff] %v2480
    %2517 = vst [vmem:[#allocation3 + $0x18] sm:$0xff] %v2482
    %2518 = vst [vmem:[#allocation3 + $0x20] sm:$0xff] %v2485
    %2519 = vst [vmem:[#allocation3 + $0x28] sm:$0xff] %v2487
    %2520 = vst [vmem:[#allocation3 + $0x30] sm:$0xff] %v2490
    %2521 = vst [vmem:[#allocation3 + $0x38] sm:$0xff] %v2492
    %2522 = vst [vmem:[#allocation3 + $0x40] sm:$0xff] %v2495
    %2523 = vst [vmem:[#allocation3 + $0x48] sm:$0xff] %v2497
    %2524 = vst [vmem:[#allocation3 + $0x50] sm:$0xff] %v2500
    %2525 = vst [vmem:[#allocation3 + $0x58] sm:$0xff] %v2502
    %2526 = vst [vmem:[#allocation3 + $0x60] sm:$0xff] %v2505
    %2527 = vst [vmem:[#allocation3 + $0x68] sm:$0xff] %v2507
    %2528 = vst [vmem:[#allocation3 + $0x70] sm:$0xff] %v2510
    %2529 = vst [vmem:[#allocation3 + $0x78] sm:$0xff] %v2512
    %v2530 = vld [vmem:[#allocation13] sm:$0xf]
    %v2531 = vld [vmem:[#allocation13 + $0x4] sm:$0xf]
    %v2532 = vld [vmem:[#allocation13 + $0x8] sm:$0xf]
    %v2533 = vld [vmem:[#allocation13 + $0xc] sm:$0xf]
    %v2534 = vld [vmem:[#allocation16] sm:$0xf]
    %v2535 = vld [vmem:[#allocation16 + $0x4] sm:$0xf]
    %v2536 = vld [vmem:[#allocation16 + $0x8] sm:$0xf]
    %v2537 = vld [vmem:[#allocation16 + $0xc] sm:$0xf]
    %v2538 = vld [vmem:[#allocation2] sm:$0xff]
    %v2539 = vld [vmem:[#allocation2 + $0x8] sm:$0xff]
    %v2544 = vunpack.c.l.b16 %v2530
    %v2545 = vunpack.c.l.b16 %v2531
    %v2546 = vunpack.c.l.b16 %v2532
    %v2547 = vunpack.c.l.b16 %v2533
    %v2548 = vpack.c.b16 %v2545, %v2544
    %v2549 = vpack.c.b16 %v2547, %v2546
    %2552 = vmatpush.bf16.msra.mxu0 0
    %2553 = vmatpush.bf16.msra.mxu0 0
    %2554 = vmatpush.bf16.msra.mxu0 0
    %2555 = vmatpush.bf16.msra.mxu0 0
    %2556 = vmatpush.bf16.msra.mxu0 0
    %2557 = vmatpush.bf16.msra.mxu0 0
    %2558 = vmatpush.bf16.msra.mxu0 %v2549
    %2559 = vmatpush.bf16.msra.mxu0 %v2548
    %2560 = vmatmul.bf16.gmra.mxu0 %v457
    %v2561 = vpop.f32.mrf.mxu0
    %v2562 = vadd.f32 0.0, %v2561
    %v2563 = vpop.f32.mrf.mxu0
    %v2564 = vadd.f32 0.0, %v2563
    %2565 = vdwg.mxu0
    %v2566 = vadd.f32 %v2538, %v2562
    %v2567 = vadd.f32 %v2539, %v2564
    %v2568 = vld [vmem:[#allocation3 + $0x70] sm:$0xff]
    %v2569 = vld [vmem:[#allocation3 + $0x78] sm:$0xff]
    %v2574 = vunpack.c.l.b16 %v2534
    %v2575 = vunpack.c.l.b16 %v2535
    %v2576 = vunpack.c.l.b16 %v2536
    %v2577 = vunpack.c.l.b16 %v2537
    %v2578 = vpack.c.b16 %v2575, %v2574
    %v2579 = vpack.c.b16 %v2577, %v2576
    %2582 = vmatpush.bf16.msra.mxu0 0
    %2583 = vmatpush.bf16.msra.mxu0 0
    %2584 = vmatpush.bf16.msra.mxu0 0
    %2585 = vmatpush.bf16.msra.mxu0 0
    %2586 = vmatpush.bf16.msra.mxu0 0
    %2587 = vmatpush.bf16.msra.mxu0 0
    %2588 = vmatpush.bf16.msra.mxu0 %v2579
    %2589 = vmatpush.bf16.msra.mxu0 %v2578
    %2590 = vmatmul.bf16.gmra.mxu0 %v457
    %v2591 = vpop.f32.mrf.mxu0
    %v2592 = vadd.f32 0.0, %v2591
    %v2593 = vpop.f32.mrf.mxu0
    %v2594 = vadd.f32 0.0, %v2593
    %2595 = vdwg.mxu0
    %v2596 = vadd.f32 %v2568, %v2592
    %v2597 = vadd.f32 %v2569, %v2594
    %v2598 = vxor.u32 %v2566, 2147483648
    %v2599 = vxor.u32 %v2567, 2147483648
    %v2600 = vmul.f32 %v2598, 1.442695
    %v2601 = vpow.pop %v2600
    %v2602 = vmul.f32 %v2599, 1.442695
    %v2603 = vpow.pop %v2602
    %v2604 = vadd.f32 %v2601, 1.0
    %v2605 = vadd.f32 %v2603, 1.0
    %v2606 = vrcp.pop %v2604
    %v2607 = vmul.f32 %v2604, %v2606
    %v2608 = vsub.f32 1.0, %v2607
    %v2609 = vmul.f32 %v2606, %v2608
    %v2610 = vadd.f32 %v2606, %v2609
    %vm2611 = vweird.f32 %v2604
    %vm2612 = vweird.f32 %v2606
    %vm2613 = vmor %vm2611, %vm2612
    %v2614 = vsel %vm2613, %v2606, %v2610
    %v2615 = vand.u32 2147483647, %v2604
    %vm2616 = vcmp.eq.f32.partialorder %v2615, 8.507059e+37
    %v2617 = vand.u32 %v2604, 2147483648
    %v2618 = vor.u32 1.1754944e-38, %v2617
    %v2619 = vsel %vm2616, %v2618, %v2614
    %v2620 = vmul.f32 1.0, %v2619
    %v2621 = vrcp.pop %v2605
    %v2622 = vmul.f32 %v2605, %v2621
    %v2623 = vsub.f32 1.0, %v2622
    %v2624 = vmul.f32 %v2621, %v2623
    %v2625 = vadd.f32 %v2621, %v2624
    %vm2626 = vweird.f32 %v2605
    %vm2627 = vweird.f32 %v2621
    %vm2628 = vmor %vm2626, %vm2627
    %v2629 = vsel %vm2628, %v2621, %v2625
    %v2630 = vand.u32 2147483647, %v2605
    %vm2631 = vcmp.eq.f32.partialorder %v2630, 8.507059e+37
    %v2632 = vand.u32 %v2605, 2147483648
    %v2633 = vor.u32 1.1754944e-38, %v2632
    %v2634 = vsel %vm2631, %v2633, %v2629
    %v2635 = vmul.f32 1.0, %v2634
    %v2636 = vtanh.pop %v2566
    %v2637 = vtanh.pop %v2567
    %v2638 = vmul.f32 %v2620, 0.0
    %v2639 = vmul.f32 %v2635, 0.0
    %2642 = vrot.lane.b32.xlu0 %v2636, 64
    %v2643 = vpop.permute.xlu0 %2642
    %2644 = vrot.lane.b32.xlu0 %v2637, 64
    %v2645 = vpop.permute.xlu0 %2644
    %v2648 = vmul.f32 %v2620, %v2643
    %v2649 = vmul.f32 %v2635, %v2645
    %2652 = vrot.lane.b32.xlu0 %v2648, 32
    %v2653 = vpop.permute.xlu0 %2652
    %2654 = vrot.lane.b32.xlu0 %v2649, 32
    %v2655 = vpop.permute.xlu0 %2654
    %v2658 = vadd.f32 %v2638, %v2653
    %v2659 = vadd.f32 %v2639, %v2655
    %v2660 = vtanh.pop %v2658
    %v2661 = vtanh.pop %v2659
    %2664 = vrot.lane.b32.xlu0 %v2660, 64
    %v2665 = vpop.permute.xlu0 %2664
    %2666 = vrot.lane.b32.xlu0 %v2661, 64
    %v2667 = vpop.permute.xlu0 %2666
    %v2670 = vmul.f32 %v2620, %v2665
    %v2671 = vmul.f32 %v2635, %v2667
    %v2672 = vxor.u32 %v2596, 2147483648
    %v2673 = vxor.u32 %v2597, 2147483648
    %v2674 = vmul.f32 %v2672, 1.442695
    %v2675 = vpow.pop %v2674
    %v2676 = vmul.f32 %v2673, 1.442695
    %v2677 = vpow.pop %v2676
    %v2678 = vadd.f32 %v2675, 1.0
    %v2679 = vadd.f32 %v2677, 1.0
    %v2680 = vrcp.pop %v2678
    %v2681 = vmul.f32 %v2678, %v2680
    %v2682 = vsub.f32 1.0, %v2681
    %v2683 = vmul.f32 %v2680, %v2682
    %v2684 = vadd.f32 %v2680, %v2683
    %vm2685 = vweird.f32 %v2678
    %vm2686 = vweird.f32 %v2680
    %vm2687 = vmor %vm2685, %vm2686
    %v2688 = vsel %vm2687, %v2680, %v2684
    %v2689 = vand.u32 2147483647, %v2678
    %vm2690 = vcmp.eq.f32.partialorder %v2689, 8.507059e+37
    %v2691 = vand.u32 %v2678, 2147483648
    %v2692 = vor.u32 1.1754944e-38, %v2691
    %v2693 = vsel %vm2690, %v2692, %v2688
    %v2694 = vmul.f32 1.0, %v2693
    %v2695 = vrcp.pop %v2679
    %v2696 = vmul.f32 %v2679, %v2695
    %v2697 = vsub.f32 1.0, %v2696
    %v2698 = vmul.f32 %v2695, %v2697
    %v2699 = vadd.f32 %v2695, %v2698
    %vm2700 = vweird.f32 %v2679
    %vm2701 = vweird.f32 %v2695
    %vm2702 = vmor %vm2700, %vm2701
    %v2703 = vsel %vm2702, %v2695, %v2699
    %v2704 = vand.u32 2147483647, %v2679
    %vm2705 = vcmp.eq.f32.partialorder %v2704, 8.507059e+37
    %v2706 = vand.u32 %v2679, 2147483648
    %v2707 = vor.u32 1.1754944e-38, %v2706
    %v2708 = vsel %vm2705, %v2707, %v2703
    %v2709 = vmul.f32 1.0, %v2708
    %v2710 = vtanh.pop %v2596
    %v2711 = vtanh.pop %v2597
    %v2712 = vmul.f32 %v2694, 0.0
    %v2713 = vmul.f32 %v2709, 0.0
    %2716 = vrot.lane.b32.xlu0 %v2710, 64
    %v2717 = vpop.permute.xlu0 %2716
    %2718 = vrot.lane.b32.xlu0 %v2711, 64
    %v2719 = vpop.permute.xlu0 %2718
    %v2722 = vmul.f32 %v2694, %v2717
    %v2723 = vmul.f32 %v2709, %v2719
    %2726 = vrot.lane.b32.xlu0 %v2722, 32
    %v2727 = vpop.permute.xlu0 %2726
    %2728 = vrot.lane.b32.xlu0 %v2723, 32
    %v2729 = vpop.permute.xlu0 %2728
    %v2732 = vadd.f32 %v2712, %v2727
    %v2733 = vadd.f32 %v2713, %v2729
    %v2734 = vtanh.pop %v2732
    %v2735 = vtanh.pop %v2733
    %2738 = vrot.lane.b32.xlu0 %v2734, 64
    %v2739 = vpop.permute.xlu0 %2738
    %2740 = vrot.lane.b32.xlu0 %v2735, 64
    %v2741 = vpop.permute.xlu0 %2740
    %v2744 = vmul.f32 %v2694, %v2739
    %v2745 = vmul.f32 %v2709, %v2741
    %v2746 = vpack.c.bf16 %v2670, %v2670
    %v2747 = vpack.c.bf16 %v2671, %v2671
    %v2748 = vpack.c.bf16 %v2744, %v2744
    %v2749 = vpack.c.bf16 %v2745, %v2745
    %2752 = vrot.lane.b32.xlu0 %v2746, 32
    %v2753 = vpop.permute.xlu0 %2752
    %2754 = vrot.lane.b32.xlu0 %v2747, 32
    %v2755 = vpop.permute.xlu0 %2754
    %2758 = vst.msk [vmem:[#allocation4] sm:$0xf] %vm665, %v2753
    %2759 = vst.msk [vmem:[#allocation4 + $0x4] sm:$0xf] %vm665, %v2755
    %2762 = vrot.lane.b32.xlu0 %v2748, 64
    %v2763 = vpop.permute.xlu0 %2762
    %2764 = vrot.lane.b32.xlu0 %v2749, 64
    %v2765 = vpop.permute.xlu0 %2764
    %2768 = vst.msk [vmem:[#allocation4 + $0x38] sm:$0xf] %vm676, %v2763
    %2769 = vst.msk [vmem:[#allocation4 + $0x3c] sm:$0xf] %vm676, %v2765
    %v2770 = vld [vmem:[#allocation2 + $0x10] sm:$0xff]
    %v2771 = vld [vmem:[#allocation2 + $0x18] sm:$0xff]
    %v2772 = vunpack.c.l.b16 %v2746
    %v2773 = vunpack.c.l.b16 %v2747
    %v2774 = vpack.c.b16 %v2773, %v2772
    %2775 = vrot.lane.b32.xlu0 %v2774, 32
    %v2776 = vpop.permute.xlu0 %2775
    %v2778 = vsel %vm259, %v2776, 0
    %2780 = vmatpush.bf16.msra.mxu0 0
    %2781 = vmatpush.bf16.msra.mxu0 0
    %2782 = vmatpush.bf16.msra.mxu0 0
    %2783 = vmatpush.bf16.msra.mxu0 0
    %2784 = vmatpush.bf16.msra.mxu0 0
    %2785 = vmatpush.bf16.msra.mxu0 0
    %2786 = vmatpush.bf16.msra.mxu0 %v2549
    %2787 = vmatpush.bf16.msra.mxu0 %v2548
    %2788 = vmatmul.bf16.gmra.mxu0 %v2778
    %v2789 = vpop.f32.mrf.mxu0
    %v2790 = vadd.f32 0.0, %v2789
    %v2791 = vpop.f32.mrf.mxu0
    %v2792 = vadd.f32 0.0, %v2791
    %2793 = vdwg.mxu0
    %v2794 = vadd.f32 %v2770, %v2790
    %v2795 = vadd.f32 %v2771, %v2792
    %v2796 = vld [vmem:[#allocation3 + $0x60] sm:$0xff]
    %v2797 = vld [vmem:[#allocation3 + $0x68] sm:$0xff]
    %v2798 = vunpack.c.l.b16 %v2748
    %v2799 = vunpack.c.l.b16 %v2749
    %v2800 = vpack.c.b16 %v2799, %v2798
    %2801 = vrot.lane.b32.xlu0 %v2800, 32
    %v2802 = vpop.permute.xlu0 %2801
    %v2804 = vsel %vm259, %v2802, 0
    %2806 = vmatpush.bf16.msra.mxu0 0
    %2807 = vmatpush.bf16.msra.mxu0 0
    %2808 = vmatpush.bf16.msra.mxu0 0
    %2809 = vmatpush.bf16.msra.mxu0 0
    %2810 = vmatpush.bf16.msra.mxu0 0
    %2811 = vmatpush.bf16.msra.mxu0 0
    %2812 = vmatpush.bf16.msra.mxu0 %v2579
    %2813 = vmatpush.bf16.msra.mxu0 %v2578
    %2814 = vmatmul.bf16.gmra.mxu0 %v2804
    %v2815 = vpop.f32.mrf.mxu0
    %v2816 = vadd.f32 0.0, %v2815
    %v2817 = vpop.f32.mrf.mxu0
    %v2818 = vadd.f32 0.0, %v2817
    %2819 = vdwg.mxu0
    %v2820 = vadd.f32 %v2796, %v2816
    %v2821 = vadd.f32 %v2797, %v2818
    %v2822 = vxor.u32 %v2794, 2147483648
    %v2823 = vxor.u32 %v2795, 2147483648
    %v2824 = vmul.f32 %v2822, 1.442695
    %v2825 = vpow.pop %v2824
    %v2826 = vmul.f32 %v2823, 1.442695
    %v2827 = vpow.pop %v2826
    %v2828 = vadd.f32 %v2825, 1.0
    %v2829 = vadd.f32 %v2827, 1.0
    %v2830 = vrcp.pop %v2828
    %v2831 = vmul.f32 %v2828, %v2830
    %v2832 = vsub.f32 1.0, %v2831
    %v2833 = vmul.f32 %v2830, %v2832
    %v2834 = vadd.f32 %v2830, %v2833
    %vm2835 = vweird.f32 %v2828
    %vm2836 = vweird.f32 %v2830
    %vm2837 = vmor %vm2835, %vm2836
    %v2838 = vsel %vm2837, %v2830, %v2834
    %v2839 = vand.u32 2147483647, %v2828
    %vm2840 = vcmp.eq.f32.partialorder %v2839, 8.507059e+37
    %v2841 = vand.u32 %v2828, 2147483648
    %v2842 = vor.u32 1.1754944e-38, %v2841
    %v2843 = vsel %vm2840, %v2842, %v2838
    %v2844 = vmul.f32 1.0, %v2843
    %v2845 = vrcp.pop %v2829
    %v2846 = vmul.f32 %v2829, %v2845
    %v2847 = vsub.f32 1.0, %v2846
    %v2848 = vmul.f32 %v2845, %v2847
    %v2849 = vadd.f32 %v2845, %v2848
    %vm2850 = vweird.f32 %v2829
    %vm2851 = vweird.f32 %v2845
    %vm2852 = vmor %vm2850, %vm2851
    %v2853 = vsel %vm2852, %v2845, %v2849
    %v2854 = vand.u32 2147483647, %v2829
    %vm2855 = vcmp.eq.f32.partialorder %v2854, 8.507059e+37
    %v2856 = vand.u32 %v2829, 2147483648
    %v2857 = vor.u32 1.1754944e-38, %v2856
    %v2858 = vsel %vm2855, %v2857, %v2853
    %v2859 = vmul.f32 1.0, %v2858
    %v2860 = vtanh.pop %v2794
    %v2861 = vtanh.pop %v2795
    %v2862 = vmul.f32 %v2844, %v2658
    %v2863 = vmul.f32 %v2859, %v2659
    %2866 = vrot.lane.b32.xlu0 %v2860, 64
    %v2867 = vpop.permute.xlu0 %2866
    %2868 = vrot.lane.b32.xlu0 %v2861, 64
    %v2869 = vpop.permute.xlu0 %2868
    %v2872 = vmul.f32 %v2844, %v2867
    %v2873 = vmul.f32 %v2859, %v2869
    %2876 = vrot.lane.b32.xlu0 %v2872, 32
    %v2877 = vpop.permute.xlu0 %2876
    %2878 = vrot.lane.b32.xlu0 %v2873, 32
    %v2879 = vpop.permute.xlu0 %2878
    %v2882 = vadd.f32 %v2862, %v2877
    %v2883 = vadd.f32 %v2863, %v2879
    %v2884 = vtanh.pop %v2882
    %v2885 = vtanh.pop %v2883
    %2888 = vrot.lane.b32.xlu0 %v2884, 64
    %v2889 = vpop.permute.xlu0 %2888
    %2890 = vrot.lane.b32.xlu0 %v2885, 64
    %v2891 = vpop.permute.xlu0 %2890
    %v2894 = vmul.f32 %v2844, %v2889
    %v2895 = vmul.f32 %v2859, %v2891
    %v2896 = vxor.u32 %v2820, 2147483648
    %v2897 = vxor.u32 %v2821, 2147483648
    %v2898 = vmul.f32 %v2896, 1.442695
    %v2899 = vpow.pop %v2898
    %v2900 = vmul.f32 %v2897, 1.442695
    %v2901 = vpow.pop %v2900
    %v2902 = vadd.f32 %v2899, 1.0
    %v2903 = vadd.f32 %v2901, 1.0
    %v2904 = vrcp.pop %v2902
    %v2905 = vmul.f32 %v2902, %v2904
    %v2906 = vsub.f32 1.0, %v2905
    %v2907 = vmul.f32 %v2904, %v2906
    %v2908 = vadd.f32 %v2904, %v2907
    %vm2909 = vweird.f32 %v2902
    %vm2910 = vweird.f32 %v2904
    %vm2911 = vmor %vm2909, %vm2910
    %v2912 = vsel %vm2911, %v2904, %v2908
    %v2913 = vand.u32 2147483647, %v2902
    %vm2914 = vcmp.eq.f32.partialorder %v2913, 8.507059e+37
    %v2915 = vand.u32 %v2902, 2147483648
    %v2916 = vor.u32 1.1754944e-38, %v2915
    %v2917 = vsel %vm2914, %v2916, %v2912
    %v2918 = vmul.f32 1.0, %v2917
    %v2919 = vrcp.pop %v2903
    %v2920 = vmul.f32 %v2903, %v2919
    %v2921 = vsub.f32 1.0, %v2920
    %v2922 = vmul.f32 %v2919, %v2921
    %v2923 = vadd.f32 %v2919, %v2922
    %vm2924 = vweird.f32 %v2903
    %vm2925 = vweird.f32 %v2919
    %vm2926 = vmor %vm2924, %vm2925
    %v2927 = vsel %vm2926, %v2919, %v2923
    %v2928 = vand.u32 2147483647, %v2903
    %vm2929 = vcmp.eq.f32.partialorder %v2928, 8.507059e+37
    %v2930 = vand.u32 %v2903, 2147483648
    %v2931 = vor.u32 1.1754944e-38, %v2930
    %v2932 = vsel %vm2929, %v2931, %v2927
    %v2933 = vmul.f32 1.0, %v2932
    %v2934 = vtanh.pop %v2820
    %v2935 = vtanh.pop %v2821
    %v2936 = vmul.f32 %v2918, %v2732
    %v2937 = vmul.f32 %v2933, %v2733
    %2940 = vrot.lane.b32.xlu0 %v2934, 64
    %v2941 = vpop.permute.xlu0 %2940
    %2942 = vrot.lane.b32.xlu0 %v2935, 64
    %v2943 = vpop.permute.xlu0 %2942
    %v2946 = vmul.f32 %v2918, %v2941
    %v2947 = vmul.f32 %v2933, %v2943
    %2950 = vrot.lane.b32.xlu0 %v2946, 32
    %v2951 = vpop.permute.xlu0 %2950
    %2952 = vrot.lane.b32.xlu0 %v2947, 32
    %v2953 = vpop.permute.xlu0 %2952
    %v2956 = vadd.f32 %v2936, %v2951
    %v2957 = vadd.f32 %v2937, %v2953
    %v2958 = vtanh.pop %v2956
    %v2959 = vtanh.pop %v2957
    %2962 = vrot.lane.b32.xlu0 %v2958, 64
    %v2963 = vpop.permute.xlu0 %2962
    %2964 = vrot.lane.b32.xlu0 %v2959, 64
    %v2965 = vpop.permute.xlu0 %2964
    %v2968 = vmul.f32 %v2918, %v2963
    %v2969 = vmul.f32 %v2933, %v2965
    %v2970 = vpack.c.bf16 %v2894, %v2894
    %v2971 = vpack.c.bf16 %v2895, %v2895
    %v2972 = vpack.c.bf16 %v2968, %v2968
    %v2973 = vpack.c.bf16 %v2969, %v2969
    %2976 = vrot.lane.b32.xlu0 %v2970, 32
    %v2977 = vpop.permute.xlu0 %2976
    %2978 = vrot.lane.b32.xlu0 %v2971, 32
    %v2979 = vpop.permute.xlu0 %2978
    %2982 = vst.msk [vmem:[#allocation4 + $0x8] sm:$0xf] %vm665, %v2977
    %2983 = vst.msk [vmem:[#allocation4 + $0xc] sm:$0xf] %vm665, %v2979
    %2986 = vrot.lane.b32.xlu0 %v2972, 64
    %v2987 = vpop.permute.xlu0 %2986
    %2988 = vrot.lane.b32.xlu0 %v2973, 64
    %v2989 = vpop.permute.xlu0 %2988
    %2992 = vst.msk [vmem:[#allocation4 + $0x30] sm:$0xf] %vm676, %v2987
    %2993 = vst.msk [vmem:[#allocation4 + $0x34] sm:$0xf] %vm676, %v2989
    %v2994 = vld [vmem:[#allocation2 + $0x20] sm:$0xff]
    %v2995 = vld [vmem:[#allocation2 + $0x28] sm:$0xff]
    %v2996 = vunpack.c.l.b16 %v2970
    %v2997 = vunpack.c.l.b16 %v2971
    %v2998 = vpack.c.b16 %v2997, %v2996
    %2999 = vrot.lane.b32.xlu0 %v2998, 32
    %v3000 = vpop.permute.xlu0 %2999
    %v3002 = vsel %vm259, %v3000, 0
    %3004 = vmatpush.bf16.msra.mxu0 0
    %3005 = vmatpush.bf16.msra.mxu0 0
    %3006 = vmatpush.bf16.msra.mxu0 0
    %3007 = vmatpush.bf16.msra.mxu0 0
    %3008 = vmatpush.bf16.msra.mxu0 0
    %3009 = vmatpush.bf16.msra.mxu0 0
    %3010 = vmatpush.bf16.msra.mxu0 %v2549
    %3011 = vmatpush.bf16.msra.mxu0 %v2548
    %3012 = vmatmul.bf16.gmra.mxu0 %v3002
    %v3013 = vpop.f32.mrf.mxu0
    %v3014 = vadd.f32 0.0, %v3013
    %v3015 = vpop.f32.mrf.mxu0
    %v3016 = vadd.f32 0.0, %v3015
    %3017 = vdwg.mxu0
    %v3018 = vadd.f32 %v2994, %v3014
    %v3019 = vadd.f32 %v2995, %v3016
    %v3020 = vld [vmem:[#allocation3 + $0x50] sm:$0xff]
    %v3021 = vld [vmem:[#allocation3 + $0x58] sm:$0xff]
    %v3022 = vunpack.c.l.b16 %v2972
    %v3023 = vunpack.c.l.b16 %v2973
    %v3024 = vpack.c.b16 %v3023, %v3022
    %3025 = vrot.lane.b32.xlu0 %v3024, 32
    %v3026 = vpop.permute.xlu0 %3025
    %v3028 = vsel %vm259, %v3026, 0
    %3030 = vmatpush.bf16.msra.mxu0 0
    %3031 = vmatpush.bf16.msra.mxu0 0
    %3032 = vmatpush.bf16.msra.mxu0 0
    %3033 = vmatpush.bf16.msra.mxu0 0
    %3034 = vmatpush.bf16.msra.mxu0 0
    %3035 = vmatpush.bf16.msra.mxu0 0
    %3036 = vmatpush.bf16.msra.mxu0 %v2579
    %3037 = vmatpush.bf16.msra.mxu0 %v2578
    %3038 = vmatmul.bf16.gmra.mxu0 %v3028
    %v3039 = vpop.f32.mrf.mxu0
    %v3040 = vadd.f32 0.0, %v3039
    %v3041 = vpop.f32.mrf.mxu0
    %v3042 = vadd.f32 0.0, %v3041
    %3043 = vdwg.mxu0
    %v3044 = vadd.f32 %v3020, %v3040
    %v3045 = vadd.f32 %v3021, %v3042
    %v3046 = vxor.u32 %v3018, 2147483648
    %v3047 = vxor.u32 %v3019, 2147483648
    %v3048 = vmul.f32 %v3046, 1.442695
    %v3049 = vpow.pop %v3048
    %v3050 = vmul.f32 %v3047, 1.442695
    %v3051 = vpow.pop %v3050
    %v3052 = vadd.f32 %v3049, 1.0
    %v3053 = vadd.f32 %v3051, 1.0
    %v3054 = vrcp.pop %v3052
    %v3055 = vmul.f32 %v3052, %v3054
    %v3056 = vsub.f32 1.0, %v3055
    %v3057 = vmul.f32 %v3054, %v3056
    %v3058 = vadd.f32 %v3054, %v3057
    %vm3059 = vweird.f32 %v3052
    %vm3060 = vweird.f32 %v3054
    %vm3061 = vmor %vm3059, %vm3060
    %v3062 = vsel %vm3061, %v3054, %v3058
    %v3063 = vand.u32 2147483647, %v3052
    %vm3064 = vcmp.eq.f32.partialorder %v3063, 8.507059e+37
    %v3065 = vand.u32 %v3052, 2147483648
    %v3066 = vor.u32 1.1754944e-38, %v3065
    %v3067 = vsel %vm3064, %v3066, %v3062
    %v3068 = vmul.f32 1.0, %v3067
    %v3069 = vrcp.pop %v3053
    %v3070 = vmul.f32 %v3053, %v3069
    %v3071 = vsub.f32 1.0, %v3070
    %v3072 = vmul.f32 %v3069, %v3071
    %v3073 = vadd.f32 %v3069, %v3072
    %vm3074 = vweird.f32 %v3053
    %vm3075 = vweird.f32 %v3069
    %vm3076 = vmor %vm3074, %vm3075
    %v3077 = vsel %vm3076, %v3069, %v3073
    %v3078 = vand.u32 2147483647, %v3053
    %vm3079 = vcmp.eq.f32.partialorder %v3078, 8.507059e+37
    %v3080 = vand.u32 %v3053, 2147483648
    %v3081 = vor.u32 1.1754944e-38, %v3080
    %v3082 = vsel %vm3079, %v3081, %v3077
    %v3083 = vmul.f32 1.0, %v3082
    %v3084 = vtanh.pop %v3018
    %v3085 = vtanh.pop %v3019
    %v3086 = vmul.f32 %v3068, %v2882
    %v3087 = vmul.f32 %v3083, %v2883
    %3090 = vrot.lane.b32.xlu0 %v3084, 64
    %v3091 = vpop.permute.xlu0 %3090
    %3092 = vrot.lane.b32.xlu0 %v3085, 64
    %v3093 = vpop.permute.xlu0 %3092
    %v3096 = vmul.f32 %v3068, %v3091
    %v3097 = vmul.f32 %v3083, %v3093
    %3100 = vrot.lane.b32.xlu0 %v3096, 32
    %v3101 = vpop.permute.xlu0 %3100
    %3102 = vrot.lane.b32.xlu0 %v3097, 32
    %v3103 = vpop.permute.xlu0 %3102
    %v3106 = vadd.f32 %v3086, %v3101
    %v3107 = vadd.f32 %v3087, %v3103
    %v3108 = vtanh.pop %v3106
    %v3109 = vtanh.pop %v3107
    %3112 = vrot.lane.b32.xlu0 %v3108, 64
    %v3113 = vpop.permute.xlu0 %3112
    %3114 = vrot.lane.b32.xlu0 %v3109, 64
    %v3115 = vpop.permute.xlu0 %3114
    %v3118 = vmul.f32 %v3068, %v3113
    %v3119 = vmul.f32 %v3083, %v3115
    %v3120 = vxor.u32 %v3044, 2147483648
    %v3121 = vxor.u32 %v3045, 2147483648
    %v3122 = vmul.f32 %v3120, 1.442695
    %v3123 = vpow.pop %v3122
    %v3124 = vmul.f32 %v3121, 1.442695
    %v3125 = vpow.pop %v3124
    %v3126 = vadd.f32 %v3123, 1.0
    %v3127 = vadd.f32 %v3125, 1.0
    %v3128 = vrcp.pop %v3126
    %v3129 = vmul.f32 %v3126, %v3128
    %v3130 = vsub.f32 1.0, %v3129
    %v3131 = vmul.f32 %v3128, %v3130
    %v3132 = vadd.f32 %v3128, %v3131
    %vm3133 = vweird.f32 %v3126
    %vm3134 = vweird.f32 %v3128
    %vm3135 = vmor %vm3133, %vm3134
    %v3136 = vsel %vm3135, %v3128, %v3132
    %v3137 = vand.u32 2147483647, %v3126
    %vm3138 = vcmp.eq.f32.partialorder %v3137, 8.507059e+37
    %v3139 = vand.u32 %v3126, 2147483648
    %v3140 = vor.u32 1.1754944e-38, %v3139
    %v3141 = vsel %vm3138, %v3140, %v3136
    %v3142 = vmul.f32 1.0, %v3141
    %v3143 = vrcp.pop %v3127
    %v3144 = vmul.f32 %v3127, %v3143
    %v3145 = vsub.f32 1.0, %v3144
    %v3146 = vmul.f32 %v3143, %v3145
    %v3147 = vadd.f32 %v3143, %v3146
    %vm3148 = vweird.f32 %v3127
    %vm3149 = vweird.f32 %v3143
    %vm3150 = vmor %vm3148, %vm3149
    %v3151 = vsel %vm3150, %v3143, %v3147
    %v3152 = vand.u32 2147483647, %v3127
    %vm3153 = vcmp.eq.f32.partialorder %v3152, 8.507059e+37
    %v3154 = vand.u32 %v3127, 2147483648
    %v3155 = vor.u32 1.1754944e-38, %v3154
    %v3156 = vsel %vm3153, %v3155, %v3151
    %v3157 = vmul.f32 1.0, %v3156
    %v3158 = vtanh.pop %v3044
    %v3159 = vtanh.pop %v3045
    %v3160 = vmul.f32 %v3142, %v2956
    %v3161 = vmul.f32 %v3157, %v2957
    %3164 = vrot.lane.b32.xlu0 %v3158, 64
    %v3165 = vpop.permute.xlu0 %3164
    %3166 = vrot.lane.b32.xlu0 %v3159, 64
    %v3167 = vpop.permute.xlu0 %3166
    %v3170 = vmul.f32 %v3142, %v3165
    %v3171 = vmul.f32 %v3157, %v3167
    %3174 = vrot.lane.b32.xlu0 %v3170, 32
    %v3175 = vpop.permute.xlu0 %3174
    %3176 = vrot.lane.b32.xlu0 %v3171, 32
    %v3177 = vpop.permute.xlu0 %3176
    %v3180 = vadd.f32 %v3160, %v3175
    %v3181 = vadd.f32 %v3161, %v3177
    %v3182 = vtanh.pop %v3180
    %v3183 = vtanh.pop %v3181
    %3186 = vrot.lane.b32.xlu0 %v3182, 64
    %v3187 = vpop.permute.xlu0 %3186
    %3188 = vrot.lane.b32.xlu0 %v3183, 64
    %v3189 = vpop.permute.xlu0 %3188
    %v3192 = vmul.f32 %v3142, %v3187
    %v3193 = vmul.f32 %v3157, %v3189
    %v3194 = vpack.c.bf16 %v3118, %v3118
    %v3195 = vpack.c.bf16 %v3119, %v3119
    %v3196 = vpack.c.bf16 %v3192, %v3192
    %v3197 = vpack.c.bf16 %v3193, %v3193
    %3200 = vrot.lane.b32.xlu0 %v3194, 32
    %v3201 = vpop.permute.xlu0 %3200
    %3202 = vrot.lane.b32.xlu0 %v3195, 32
    %v3203 = vpop.permute.xlu0 %3202
    %3206 = vst.msk [vmem:[#allocation4 + $0x10] sm:$0xf] %vm665, %v3201
    %3207 = vst.msk [vmem:[#allocation4 + $0x14] sm:$0xf] %vm665, %v3203
    %3210 = vrot.lane.b32.xlu0 %v3196, 64
    %v3211 = vpop.permute.xlu0 %3210
    %3212 = vrot.lane.b32.xlu0 %v3197, 64
    %v3213 = vpop.permute.xlu0 %3212
    %3216 = vst.msk [vmem:[#allocation4 + $0x28] sm:$0xf] %vm676, %v3211
    %3217 = vst.msk [vmem:[#allocation4 + $0x2c] sm:$0xf] %vm676, %v3213
    %v3218 = vld [vmem:[#allocation2 + $0x30] sm:$0xff]
    %v3219 = vld [vmem:[#allocation2 + $0x38] sm:$0xff]
    %v3220 = vunpack.c.l.b16 %v3194
    %v3221 = vunpack.c.l.b16 %v3195
    %v3222 = vpack.c.b16 %v3221, %v3220
    %3223 = vrot.lane.b32.xlu0 %v3222, 32
    %v3224 = vpop.permute.xlu0 %3223
    %v3226 = vsel %vm259, %v3224, 0
    %3228 = vmatpush.bf16.msra.mxu0 0
    %3229 = vmatpush.bf16.msra.mxu0 0
    %3230 = vmatpush.bf16.msra.mxu0 0
    %3231 = vmatpush.bf16.msra.mxu0 0
    %3232 = vmatpush.bf16.msra.mxu0 0
    %3233 = vmatpush.bf16.msra.mxu0 0
    %3234 = vmatpush.bf16.msra.mxu0 %v2549
    %3235 = vmatpush.bf16.msra.mxu0 %v2548
    %3236 = vmatmul.bf16.gmra.mxu0 %v3226
    %v3237 = vpop.f32.mrf.mxu0
    %v3238 = vadd.f32 0.0, %v3237
    %v3239 = vpop.f32.mrf.mxu0
    %v3240 = vadd.f32 0.0, %v3239
    %3241 = vdwg.mxu0
    %v3242 = vadd.f32 %v3218, %v3238
    %v3243 = vadd.f32 %v3219, %v3240
    %v3244 = vld [vmem:[#allocation3 + $0x40] sm:$0xff]
    %v3245 = vld [vmem:[#allocation3 + $0x48] sm:$0xff]
    %v3246 = vunpack.c.l.b16 %v3196
    %v3247 = vunpack.c.l.b16 %v3197
    %v3248 = vpack.c.b16 %v3247, %v3246
    %3249 = vrot.lane.b32.xlu0 %v3248, 32
    %v3250 = vpop.permute.xlu0 %3249
    %v3252 = vsel %vm259, %v3250, 0
    %3254 = vmatpush.bf16.msra.mxu0 0
    %3255 = vmatpush.bf16.msra.mxu0 0
    %3256 = vmatpush.bf16.msra.mxu0 0
    %3257 = vmatpush.bf16.msra.mxu0 0
    %3258 = vmatpush.bf16.msra.mxu0 0
    %3259 = vmatpush.bf16.msra.mxu0 0
    %3260 = vmatpush.bf16.msra.mxu0 %v2579
    %3261 = vmatpush.bf16.msra.mxu0 %v2578
    %3262 = vmatmul.bf16.gmra.mxu0 %v3252
    %v3263 = vpop.f32.mrf.mxu0
    %v3264 = vadd.f32 0.0, %v3263
    %v3265 = vpop.f32.mrf.mxu0
    %v3266 = vadd.f32 0.0, %v3265
    %3267 = vdwg.mxu0
    %v3268 = vadd.f32 %v3244, %v3264
    %v3269 = vadd.f32 %v3245, %v3266
    %v3270 = vxor.u32 %v3242, 2147483648
    %v3271 = vxor.u32 %v3243, 2147483648
    %v3272 = vmul.f32 %v3270, 1.442695
    %v3273 = vpow.pop %v3272
    %v3274 = vmul.f32 %v3271, 1.442695
    %v3275 = vpow.pop %v3274
    %v3276 = vadd.f32 %v3273, 1.0
    %v3277 = vadd.f32 %v3275, 1.0
    %v3278 = vrcp.pop %v3276
    %v3279 = vmul.f32 %v3276, %v3278
    %v3280 = vsub.f32 1.0, %v3279
    %v3281 = vmul.f32 %v3278, %v3280
    %v3282 = vadd.f32 %v3278, %v3281
    %vm3283 = vweird.f32 %v3276
    %vm3284 = vweird.f32 %v3278
    %vm3285 = vmor %vm3283, %vm3284
    %v3286 = vsel %vm3285, %v3278, %v3282
    %v3287 = vand.u32 2147483647, %v3276
    %vm3288 = vcmp.eq.f32.partialorder %v3287, 8.507059e+37
    %v3289 = vand.u32 %v3276, 2147483648
    %v3290 = vor.u32 1.1754944e-38, %v3289
    %v3291 = vsel %vm3288, %v3290, %v3286
    %v3292 = vmul.f32 1.0, %v3291
    %v3293 = vrcp.pop %v3277
    %v3294 = vmul.f32 %v3277, %v3293
    %v3295 = vsub.f32 1.0, %v3294
    %v3296 = vmul.f32 %v3293, %v3295
    %v3297 = vadd.f32 %v3293, %v3296
    %vm3298 = vweird.f32 %v3277
    %vm3299 = vweird.f32 %v3293
    %vm3300 = vmor %vm3298, %vm3299
    %v3301 = vsel %vm3300, %v3293, %v3297
    %v3302 = vand.u32 2147483647, %v3277
    %vm3303 = vcmp.eq.f32.partialorder %v3302, 8.507059e+37
    %v3304 = vand.u32 %v3277, 2147483648
    %v3305 = vor.u32 1.1754944e-38, %v3304
    %v3306 = vsel %vm3303, %v3305, %v3301
    %v3307 = vmul.f32 1.0, %v3306
    %v3308 = vtanh.pop %v3242
    %v3309 = vtanh.pop %v3243
    %v3310 = vmul.f32 %v3292, %v3106
    %v3311 = vmul.f32 %v3307, %v3107
    %3314 = vrot.lane.b32.xlu0 %v3308, 64
    %v3315 = vpop.permute.xlu0 %3314
    %3316 = vrot.lane.b32.xlu0 %v3309, 64
    %v3317 = vpop.permute.xlu0 %3316
    %v3320 = vmul.f32 %v3292, %v3315
    %v3321 = vmul.f32 %v3307, %v3317
    %3324 = vrot.lane.b32.xlu0 %v3320, 32
    %v3325 = vpop.permute.xlu0 %3324
    %3326 = vrot.lane.b32.xlu0 %v3321, 32
    %v3327 = vpop.permute.xlu0 %3326
    %v3330 = vadd.f32 %v3310, %v3325
    %v3331 = vadd.f32 %v3311, %v3327
    %v3332 = vtanh.pop %v3330
    %v3333 = vtanh.pop %v3331
    %3336 = vrot.lane.b32.xlu0 %v3332, 64
    %v3337 = vpop.permute.xlu0 %3336
    %3338 = vrot.lane.b32.xlu0 %v3333, 64
    %v3339 = vpop.permute.xlu0 %3338
    %v3342 = vmul.f32 %v3292, %v3337
    %v3343 = vmul.f32 %v3307, %v3339
    %v3344 = vxor.u32 %v3268, 2147483648
    %v3345 = vxor.u32 %v3269, 2147483648
    %v3346 = vmul.f32 %v3344, 1.442695
    %v3347 = vpow.pop %v3346
    %v3348 = vmul.f32 %v3345, 1.442695
    %v3349 = vpow.pop %v3348
    %v3350 = vadd.f32 %v3347, 1.0
    %v3351 = vadd.f32 %v3349, 1.0
    %v3352 = vrcp.pop %v3350
    %v3353 = vmul.f32 %v3350, %v3352
    %v3354 = vsub.f32 1.0, %v3353
    %v3355 = vmul.f32 %v3352, %v3354
    %v3356 = vadd.f32 %v3352, %v3355
    %vm3357 = vweird.f32 %v3350
    %vm3358 = vweird.f32 %v3352
    %vm3359 = vmor %vm3357, %vm3358
    %v3360 = vsel %vm3359, %v3352, %v3356
    %v3361 = vand.u32 2147483647, %v3350
    %vm3362 = vcmp.eq.f32.partialorder %v3361, 8.507059e+37
    %v3363 = vand.u32 %v3350, 2147483648
    %v3364 = vor.u32 1.1754944e-38, %v3363
    %v3365 = vsel %vm3362, %v3364, %v3360
    %v3366 = vmul.f32 1.0, %v3365
    %v3367 = vrcp.pop %v3351
    %v3368 = vmul.f32 %v3351, %v3367
    %v3369 = vsub.f32 1.0, %v3368
    %v3370 = vmul.f32 %v3367, %v3369
    %v3371 = vadd.f32 %v3367, %v3370
    %vm3372 = vweird.f32 %v3351
    %vm3373 = vweird.f32 %v3367
    %vm3374 = vmor %vm3372, %vm3373
    %v3375 = vsel %vm3374, %v3367, %v3371
    %v3376 = vand.u32 2147483647, %v3351
    %vm3377 = vcmp.eq.f32.partialorder %v3376, 8.507059e+37
    %v3378 = vand.u32 %v3351, 2147483648
    %v3379 = vor.u32 1.1754944e-38, %v3378
    %v3380 = vsel %vm3377, %v3379, %v3375
    %v3381 = vmul.f32 1.0, %v3380
    %v3382 = vtanh.pop %v3268
    %v3383 = vtanh.pop %v3269
    %v3384 = vmul.f32 %v3366, %v3180
    %v3385 = vmul.f32 %v3381, %v3181
    %3388 = vrot.lane.b32.xlu0 %v3382, 64
    %v3389 = vpop.permute.xlu0 %3388
    %3390 = vrot.lane.b32.xlu0 %v3383, 64
    %v3391 = vpop.permute.xlu0 %3390
    %v3394 = vmul.f32 %v3366, %v3389
    %v3395 = vmul.f32 %v3381, %v3391
    %3398 = vrot.lane.b32.xlu0 %v3394, 32
    %v3399 = vpop.permute.xlu0 %3398
    %3400 = vrot.lane.b32.xlu0 %v3395, 32
    %v3401 = vpop.permute.xlu0 %3400
    %v3404 = vadd.f32 %v3384, %v3399
    %v3405 = vadd.f32 %v3385, %v3401
    %v3406 = vtanh.pop %v3404
    %v3407 = vtanh.pop %v3405
    %3410 = vrot.lane.b32.xlu0 %v3406, 64
    %v3411 = vpop.permute.xlu0 %3410
    %3412 = vrot.lane.b32.xlu0 %v3407, 64
    %v3413 = vpop.permute.xlu0 %3412
    %v3416 = vmul.f32 %v3366, %v3411
    %v3417 = vmul.f32 %v3381, %v3413
    %v3418 = vpack.c.bf16 %v3342, %v3342
    %v3419 = vpack.c.bf16 %v3343, %v3343
    %v3420 = vpack.c.bf16 %v3416, %v3416
    %v3421 = vpack.c.bf16 %v3417, %v3417
    %3424 = vrot.lane.b32.xlu0 %v3418, 32
    %v3425 = vpop.permute.xlu0 %3424
    %3426 = vrot.lane.b32.xlu0 %v3419, 32
    %v3427 = vpop.permute.xlu0 %3426
    %3430 = vst.msk [vmem:[#allocation4 + $0x18] sm:$0xf] %vm665, %v3425
    %3431 = vst.msk [vmem:[#allocation4 + $0x1c] sm:$0xf] %vm665, %v3427
    %3434 = vrot.lane.b32.xlu0 %v3420, 64
    %v3435 = vpop.permute.xlu0 %3434
    %3436 = vrot.lane.b32.xlu0 %v3421, 64
    %v3437 = vpop.permute.xlu0 %3436
    %3440 = vst.msk [vmem:[#allocation4 + $0x20] sm:$0xf] %vm676, %v3435
    %3441 = vst.msk [vmem:[#allocation4 + $0x24] sm:$0xf] %vm676, %v3437
    %v3442 = vld [vmem:[#allocation2 + $0x40] sm:$0xff]
    %v3443 = vld [vmem:[#allocation2 + $0x48] sm:$0xff]
    %v3444 = vunpack.c.l.b16 %v3418
    %v3445 = vunpack.c.l.b16 %v3419
    %v3446 = vpack.c.b16 %v3445, %v3444
    %3447 = vrot.lane.b32.xlu0 %v3446, 32
    %v3448 = vpop.permute.xlu0 %3447
    %v3450 = vsel %vm259, %v3448, 0
    %3452 = vmatpush.bf16.msra.mxu0 0
    %3453 = vmatpush.bf16.msra.mxu0 0
    %3454 = vmatpush.bf16.msra.mxu0 0
    %3455 = vmatpush.bf16.msra.mxu0 0
    %3456 = vmatpush.bf16.msra.mxu0 0
    %3457 = vmatpush.bf16.msra.mxu0 0
    %3458 = vmatpush.bf16.msra.mxu0 %v2549
    %3459 = vmatpush.bf16.msra.mxu0 %v2548
    %3460 = vmatmul.bf16.gmra.mxu0 %v3450
    %v3461 = vpop.f32.mrf.mxu0
    %v3462 = vadd.f32 0.0, %v3461
    %v3463 = vpop.f32.mrf.mxu0
    %v3464 = vadd.f32 0.0, %v3463
    %3465 = vdwg.mxu0
    %v3466 = vadd.f32 %v3442, %v3462
    %v3467 = vadd.f32 %v3443, %v3464
    %v3468 = vld [vmem:[#allocation3 + $0x30] sm:$0xff]
    %v3469 = vld [vmem:[#allocation3 + $0x38] sm:$0xff]
    %v3470 = vunpack.c.l.b16 %v3420
    %v3471 = vunpack.c.l.b16 %v3421
    %v3472 = vpack.c.b16 %v3471, %v3470
    %3473 = vrot.lane.b32.xlu0 %v3472, 32
    %v3474 = vpop.permute.xlu0 %3473
    %v3476 = vsel %vm259, %v3474, 0
    %3478 = vmatpush.bf16.msra.mxu0 0
    %3479 = vmatpush.bf16.msra.mxu0 0
    %3480 = vmatpush.bf16.msra.mxu0 0
    %3481 = vmatpush.bf16.msra.mxu0 0
    %3482 = vmatpush.bf16.msra.mxu0 0
    %3483 = vmatpush.bf16.msra.mxu0 0
    %3484 = vmatpush.bf16.msra.mxu0 %v2579
    %3485 = vmatpush.bf16.msra.mxu0 %v2578
    %3486 = vmatmul.bf16.gmra.mxu0 %v3476
    %v3487 = vpop.f32.mrf.mxu0
    %v3488 = vadd.f32 0.0, %v3487
    %v3489 = vpop.f32.mrf.mxu0
    %v3490 = vadd.f32 0.0, %v3489
    %3491 = vdwg.mxu0
    %v3492 = vadd.f32 %v3468, %v3488
    %v3493 = vadd.f32 %v3469, %v3490
    %v3494 = vxor.u32 %v3466, 2147483648
    %v3495 = vxor.u32 %v3467, 2147483648
    %v3496 = vmul.f32 %v3494, 1.442695
    %v3497 = vpow.pop %v3496
    %v3498 = vmul.f32 %v3495, 1.442695
    %v3499 = vpow.pop %v3498
    %v3500 = vadd.f32 %v3497, 1.0
    %v3501 = vadd.f32 %v3499, 1.0
    %v3502 = vrcp.pop %v3500
    %v3503 = vmul.f32 %v3500, %v3502
    %v3504 = vsub.f32 1.0, %v3503
    %v3505 = vmul.f32 %v3502, %v3504
    %v3506 = vadd.f32 %v3502, %v3505
    %vm3507 = vweird.f32 %v3500
    %vm3508 = vweird.f32 %v3502
    %vm3509 = vmor %vm3507, %vm3508
    %v3510 = vsel %vm3509, %v3502, %v3506
    %v3511 = vand.u32 2147483647, %v3500
    %vm3512 = vcmp.eq.f32.partialorder %v3511, 8.507059e+37
    %v3513 = vand.u32 %v3500, 2147483648
    %v3514 = vor.u32 1.1754944e-38, %v3513
    %v3515 = vsel %vm3512, %v3514, %v3510
    %v3516 = vmul.f32 1.0, %v3515
    %v3517 = vrcp.pop %v3501
    %v3518 = vmul.f32 %v3501, %v3517
    %v3519 = vsub.f32 1.0, %v3518
    %v3520 = vmul.f32 %v3517, %v3519
    %v3521 = vadd.f32 %v3517, %v3520
    %vm3522 = vweird.f32 %v3501
    %vm3523 = vweird.f32 %v3517
    %vm3524 = vmor %vm3522, %vm3523
    %v3525 = vsel %vm3524, %v3517, %v3521
    %v3526 = vand.u32 2147483647, %v3501
    %vm3527 = vcmp.eq.f32.partialorder %v3526, 8.507059e+37
    %v3528 = vand.u32 %v3501, 2147483648
    %v3529 = vor.u32 1.1754944e-38, %v3528
    %v3530 = vsel %vm3527, %v3529, %v3525
    %v3531 = vmul.f32 1.0, %v3530
    %v3532 = vtanh.pop %v3466
    %v3533 = vtanh.pop %v3467
    %v3534 = vmul.f32 %v3516, %v3330
    %v3535 = vmul.f32 %v3531, %v3331
    %3538 = vrot.lane.b32.xlu0 %v3532, 64
    %v3539 = vpop.permute.xlu0 %3538
    %3540 = vrot.lane.b32.xlu0 %v3533, 64
    %v3541 = vpop.permute.xlu0 %3540
    %v3544 = vmul.f32 %v3516, %v3539
    %v3545 = vmul.f32 %v3531, %v3541
    %3548 = vrot.lane.b32.xlu0 %v3544, 32
    %v3549 = vpop.permute.xlu0 %3548
    %3550 = vrot.lane.b32.xlu0 %v3545, 32
    %v3551 = vpop.permute.xlu0 %3550
    %v3554 = vadd.f32 %v3534, %v3549
    %v3555 = vadd.f32 %v3535, %v3551
    %v3556 = vtanh.pop %v3554
    %v3557 = vtanh.pop %v3555
    %3560 = vrot.lane.b32.xlu0 %v3556, 64
    %v3561 = vpop.permute.xlu0 %3560
    %3562 = vrot.lane.b32.xlu0 %v3557, 64
    %v3563 = vpop.permute.xlu0 %3562
    %v3566 = vmul.f32 %v3516, %v3561
    %v3567 = vmul.f32 %v3531, %v3563
    %v3568 = vxor.u32 %v3492, 2147483648
    %v3569 = vxor.u32 %v3493, 2147483648
    %v3570 = vmul.f32 %v3568, 1.442695
    %v3571 = vpow.pop %v3570
    %v3572 = vmul.f32 %v3569, 1.442695
    %v3573 = vpow.pop %v3572
    %v3574 = vadd.f32 %v3571, 1.0
    %v3575 = vadd.f32 %v3573, 1.0
    %v3576 = vrcp.pop %v3574
    %v3577 = vmul.f32 %v3574, %v3576
    %v3578 = vsub.f32 1.0, %v3577
    %v3579 = vmul.f32 %v3576, %v3578
    %v3580 = vadd.f32 %v3576, %v3579
    %vm3581 = vweird.f32 %v3574
    %vm3582 = vweird.f32 %v3576
    %vm3583 = vmor %vm3581, %vm3582
    %v3584 = vsel %vm3583, %v3576, %v3580
    %v3585 = vand.u32 2147483647, %v3574
    %vm3586 = vcmp.eq.f32.partialorder %v3585, 8.507059e+37
    %v3587 = vand.u32 %v3574, 2147483648
    %v3588 = vor.u32 1.1754944e-38, %v3587
    %v3589 = vsel %vm3586, %v3588, %v3584
    %v3590 = vmul.f32 1.0, %v3589
    %v3591 = vrcp.pop %v3575
    %v3592 = vmul.f32 %v3575, %v3591
    %v3593 = vsub.f32 1.0, %v3592
    %v3594 = vmul.f32 %v3591, %v3593
    %v3595 = vadd.f32 %v3591, %v3594
    %vm3596 = vweird.f32 %v3575
    %vm3597 = vweird.f32 %v3591
    %vm3598 = vmor %vm3596, %vm3597
    %v3599 = vsel %vm3598, %v3591, %v3595
    %v3600 = vand.u32 2147483647, %v3575
    %vm3601 = vcmp.eq.f32.partialorder %v3600, 8.507059e+37
    %v3602 = vand.u32 %v3575, 2147483648
    %v3603 = vor.u32 1.1754944e-38, %v3602
    %v3604 = vsel %vm3601, %v3603, %v3599
    %v3605 = vmul.f32 1.0, %v3604
    %v3606 = vtanh.pop %v3492
    %v3607 = vtanh.pop %v3493
    %v3608 = vmul.f32 %v3590, %v3404
    %v3609 = vmul.f32 %v3605, %v3405
    %3612 = vrot.lane.b32.xlu0 %v3606, 64
    %v3613 = vpop.permute.xlu0 %3612
    %3614 = vrot.lane.b32.xlu0 %v3607, 64
    %v3615 = vpop.permute.xlu0 %3614
    %v3618 = vmul.f32 %v3590, %v3613
    %v3619 = vmul.f32 %v3605, %v3615
    %3622 = vrot.lane.b32.xlu0 %v3618, 32
    %v3623 = vpop.permute.xlu0 %3622
    %3624 = vrot.lane.b32.xlu0 %v3619, 32
    %v3625 = vpop.permute.xlu0 %3624
    %v3628 = vadd.f32 %v3608, %v3623
    %v3629 = vadd.f32 %v3609, %v3625
    %v3630 = vtanh.pop %v3628
    %v3631 = vtanh.pop %v3629
    %3634 = vrot.lane.b32.xlu0 %v3630, 64
    %v3635 = vpop.permute.xlu0 %3634
    %3636 = vrot.lane.b32.xlu0 %v3631, 64
    %v3637 = vpop.permute.xlu0 %3636
    %v3640 = vmul.f32 %v3590, %v3635
    %v3641 = vmul.f32 %v3605, %v3637
    %v3642 = vpack.c.bf16 %v3566, %v3566
    %v3643 = vpack.c.bf16 %v3567, %v3567
    %v3644 = vpack.c.bf16 %v3640, %v3640
    %v3645 = vpack.c.bf16 %v3641, %v3641
    %3648 = vrot.lane.b32.xlu0 %v3642, 32
    %v3649 = vpop.permute.xlu0 %3648
    %3650 = vrot.lane.b32.xlu0 %v3643, 32
    %v3651 = vpop.permute.xlu0 %3650
    %3654 = vst.msk [vmem:[#allocation4 + $0x20] sm:$0xf] %vm665, %v3649
    %3655 = vst.msk [vmem:[#allocation4 + $0x24] sm:$0xf] %vm665, %v3651
    %3658 = vrot.lane.b32.xlu0 %v3644, 64
    %v3659 = vpop.permute.xlu0 %3658
    %3660 = vrot.lane.b32.xlu0 %v3645, 64
    %v3661 = vpop.permute.xlu0 %3660
    %3664 = vst.msk [vmem:[#allocation4 + $0x18] sm:$0xf] %vm676, %v3659
    %3665 = vst.msk [vmem:[#allocation4 + $0x1c] sm:$0xf] %vm676, %v3661
    %v3666 = vld [vmem:[#allocation2 + $0x50] sm:$0xff]
    %v3667 = vld [vmem:[#allocation2 + $0x58] sm:$0xff]
    %v3668 = vunpack.c.l.b16 %v3642
    %v3669 = vunpack.c.l.b16 %v3643
    %v3670 = vpack.c.b16 %v3669, %v3668
    %3671 = vrot.lane.b32.xlu0 %v3670, 32
    %v3672 = vpop.permute.xlu0 %3671
    %v3674 = vsel %vm259, %v3672, 0
    %3676 = vmatpush.bf16.msra.mxu0 0
    %3677 = vmatpush.bf16.msra.mxu0 0
    %3678 = vmatpush.bf16.msra.mxu0 0
    %3679 = vmatpush.bf16.msra.mxu0 0
    %3680 = vmatpush.bf16.msra.mxu0 0
    %3681 = vmatpush.bf16.msra.mxu0 0
    %3682 = vmatpush.bf16.msra.mxu0 %v2549
    %3683 = vmatpush.bf16.msra.mxu0 %v2548
    %3684 = vmatmul.bf16.gmra.mxu0 %v3674
    %v3685 = vpop.f32.mrf.mxu0
    %v3686 = vadd.f32 0.0, %v3685
    %v3687 = vpop.f32.mrf.mxu0
    %v3688 = vadd.f32 0.0, %v3687
    %3689 = vdwg.mxu0
    %v3690 = vadd.f32 %v3666, %v3686
    %v3691 = vadd.f32 %v3667, %v3688
    %v3692 = vld [vmem:[#allocation3 + $0x20] sm:$0xff]
    %v3693 = vld [vmem:[#allocation3 + $0x28] sm:$0xff]
    %v3694 = vunpack.c.l.b16 %v3644
    %v3695 = vunpack.c.l.b16 %v3645
    %v3696 = vpack.c.b16 %v3695, %v3694
    %3697 = vrot.lane.b32.xlu0 %v3696, 32
    %v3698 = vpop.permute.xlu0 %3697
    %v3700 = vsel %vm259, %v3698, 0
    %3702 = vmatpush.bf16.msra.mxu0 0
    %3703 = vmatpush.bf16.msra.mxu0 0
    %3704 = vmatpush.bf16.msra.mxu0 0
    %3705 = vmatpush.bf16.msra.mxu0 0
    %3706 = vmatpush.bf16.msra.mxu0 0
    %3707 = vmatpush.bf16.msra.mxu0 0
    %3708 = vmatpush.bf16.msra.mxu0 %v2579
    %3709 = vmatpush.bf16.msra.mxu0 %v2578
    %3710 = vmatmul.bf16.gmra.mxu0 %v3700
    %v3711 = vpop.f32.mrf.mxu0
    %v3712 = vadd.f32 0.0, %v3711
    %v3713 = vpop.f32.mrf.mxu0
    %v3714 = vadd.f32 0.0, %v3713
    %3715 = vdwg.mxu0
    %v3716 = vadd.f32 %v3692, %v3712
    %v3717 = vadd.f32 %v3693, %v3714
    %v3718 = vxor.u32 %v3690, 2147483648
    %v3719 = vxor.u32 %v3691, 2147483648
    %v3720 = vmul.f32 %v3718, 1.442695
    %v3721 = vpow.pop %v3720
    %v3722 = vmul.f32 %v3719, 1.442695
    %v3723 = vpow.pop %v3722
    %v3724 = vadd.f32 %v3721, 1.0
    %v3725 = vadd.f32 %v3723, 1.0
    %v3726 = vrcp.pop %v3724
    %v3727 = vmul.f32 %v3724, %v3726
    %v3728 = vsub.f32 1.0, %v3727
    %v3729 = vmul.f32 %v3726, %v3728
    %v3730 = vadd.f32 %v3726, %v3729
    %vm3731 = vweird.f32 %v3724
    %vm3732 = vweird.f32 %v3726
    %vm3733 = vmor %vm3731, %vm3732
    %v3734 = vsel %vm3733, %v3726, %v3730
    %v3735 = vand.u32 2147483647, %v3724
    %vm3736 = vcmp.eq.f32.partialorder %v3735, 8.507059e+37
    %v3737 = vand.u32 %v3724, 2147483648
    %v3738 = vor.u32 1.1754944e-38, %v3737
    %v3739 = vsel %vm3736, %v3738, %v3734
    %v3740 = vmul.f32 1.0, %v3739
    %v3741 = vrcp.pop %v3725
    %v3742 = vmul.f32 %v3725, %v3741
    %v3743 = vsub.f32 1.0, %v3742
    %v3744 = vmul.f32 %v3741, %v3743
    %v3745 = vadd.f32 %v3741, %v3744
    %vm3746 = vweird.f32 %v3725
    %vm3747 = vweird.f32 %v3741
    %vm3748 = vmor %vm3746, %vm3747
    %v3749 = vsel %vm3748, %v3741, %v3745
    %v3750 = vand.u32 2147483647, %v3725
    %vm3751 = vcmp.eq.f32.partialorder %v3750, 8.507059e+37
    %v3752 = vand.u32 %v3725, 2147483648
    %v3753 = vor.u32 1.1754944e-38, %v3752
    %v3754 = vsel %vm3751, %v3753, %v3749
    %v3755 = vmul.f32 1.0, %v3754
    %v3756 = vtanh.pop %v3690
    %v3757 = vtanh.pop %v3691
    %v3758 = vmul.f32 %v3740, %v3554
    %v3759 = vmul.f32 %v3755, %v3555
    %3762 = vrot.lane.b32.xlu0 %v3756, 64
    %v3763 = vpop.permute.xlu0 %3762
    %3764 = vrot.lane.b32.xlu0 %v3757, 64
    %v3765 = vpop.permute.xlu0 %3764
    %v3768 = vmul.f32 %v3740, %v3763
    %v3769 = vmul.f32 %v3755, %v3765
    %3772 = vrot.lane.b32.xlu0 %v3768, 32
    %v3773 = vpop.permute.xlu0 %3772
    %3774 = vrot.lane.b32.xlu0 %v3769, 32
    %v3775 = vpop.permute.xlu0 %3774
    %v3778 = vadd.f32 %v3758, %v3773
    %v3779 = vadd.f32 %v3759, %v3775
    %v3780 = vtanh.pop %v3778
    %v3781 = vtanh.pop %v3779
    %3784 = vrot.lane.b32.xlu0 %v3780, 64
    %v3785 = vpop.permute.xlu0 %3784
    %3786 = vrot.lane.b32.xlu0 %v3781, 64
    %v3787 = vpop.permute.xlu0 %3786
    %v3790 = vmul.f32 %v3740, %v3785
    %v3791 = vmul.f32 %v3755, %v3787
    %v3792 = vxor.u32 %v3716, 2147483648
    %v3793 = vxor.u32 %v3717, 2147483648
    %v3794 = vmul.f32 %v3792, 1.442695
    %v3795 = vpow.pop %v3794
    %v3796 = vmul.f32 %v3793, 1.442695
    %v3797 = vpow.pop %v3796
    %v3798 = vadd.f32 %v3795, 1.0
    %v3799 = vadd.f32 %v3797, 1.0
    %v3800 = vrcp.pop %v3798
    %v3801 = vmul.f32 %v3798, %v3800
    %v3802 = vsub.f32 1.0, %v3801
    %v3803 = vmul.f32 %v3800, %v3802
    %v3804 = vadd.f32 %v3800, %v3803
    %vm3805 = vweird.f32 %v3798
    %vm3806 = vweird.f32 %v3800
    %vm3807 = vmor %vm3805, %vm3806
    %v3808 = vsel %vm3807, %v3800, %v3804
    %v3809 = vand.u32 2147483647, %v3798
    %vm3810 = vcmp.eq.f32.partialorder %v3809, 8.507059e+37
    %v3811 = vand.u32 %v3798, 2147483648
    %v3812 = vor.u32 1.1754944e-38, %v3811
    %v3813 = vsel %vm3810, %v3812, %v3808
    %v3814 = vmul.f32 1.0, %v3813
    %v3815 = vrcp.pop %v3799
    %v3816 = vmul.f32 %v3799, %v3815
    %v3817 = vsub.f32 1.0, %v3816
    %v3818 = vmul.f32 %v3815, %v3817
    %v3819 = vadd.f32 %v3815, %v3818
    %vm3820 = vweird.f32 %v3799
    %vm3821 = vweird.f32 %v3815
    %vm3822 = vmor %vm3820, %vm3821
    %v3823 = vsel %vm3822, %v3815, %v3819
    %v3824 = vand.u32 2147483647, %v3799
    %vm3825 = vcmp.eq.f32.partialorder %v3824, 8.507059e+37
    %v3826 = vand.u32 %v3799, 2147483648
    %v3827 = vor.u32 1.1754944e-38, %v3826
    %v3828 = vsel %vm3825, %v3827, %v3823
    %v3829 = vmul.f32 1.0, %v3828
    %v3830 = vtanh.pop %v3716
    %v3831 = vtanh.pop %v3717
    %v3832 = vmul.f32 %v3814, %v3628
    %v3833 = vmul.f32 %v3829, %v3629
    %3836 = vrot.lane.b32.xlu0 %v3830, 64
    %v3837 = vpop.permute.xlu0 %3836
    %3838 = vrot.lane.b32.xlu0 %v3831, 64
    %v3839 = vpop.permute.xlu0 %3838
    %v3842 = vmul.f32 %v3814, %v3837
    %v3843 = vmul.f32 %v3829, %v3839
    %3846 = vrot.lane.b32.xlu0 %v3842, 32
    %v3847 = vpop.permute.xlu0 %3846
    %3848 = vrot.lane.b32.xlu0 %v3843, 32
    %v3849 = vpop.permute.xlu0 %3848
    %v3852 = vadd.f32 %v3832, %v3847
    %v3853 = vadd.f32 %v3833, %v3849
    %v3854 = vtanh.pop %v3852
    %v3855 = vtanh.pop %v3853
    %3858 = vrot.lane.b32.xlu0 %v3854, 64
    %v3859 = vpop.permute.xlu0 %3858
    %3860 = vrot.lane.b32.xlu0 %v3855, 64
    %v3861 = vpop.permute.xlu0 %3860
    %v3864 = vmul.f32 %v3814, %v3859
    %v3865 = vmul.f32 %v3829, %v3861
    %v3866 = vpack.c.bf16 %v3790, %v3790
    %v3867 = vpack.c.bf16 %v3791, %v3791
    %v3868 = vpack.c.bf16 %v3864, %v3864
    %v3869 = vpack.c.bf16 %v3865, %v3865
    %3872 = vrot.lane.b32.xlu0 %v3866, 32
    %v3873 = vpop.permute.xlu0 %3872
    %3874 = vrot.lane.b32.xlu0 %v3867, 32
    %v3875 = vpop.permute.xlu0 %3874
    %3878 = vst.msk [vmem:[#allocation4 + $0x28] sm:$0xf] %vm665, %v3873
    %3879 = vst.msk [vmem:[#allocation4 + $0x2c] sm:$0xf] %vm665, %v3875
    %3882 = vrot.lane.b32.xlu0 %v3868, 64
    %v3883 = vpop.permute.xlu0 %3882
    %3884 = vrot.lane.b32.xlu0 %v3869, 64
    %v3885 = vpop.permute.xlu0 %3884
    %3888 = vst.msk [vmem:[#allocation4 + $0x10] sm:$0xf] %vm676, %v3883
    %3889 = vst.msk [vmem:[#allocation4 + $0x14] sm:$0xf] %vm676, %v3885
    %v3890 = vld [vmem:[#allocation2 + $0x60] sm:$0xff]
    %v3891 = vld [vmem:[#allocation2 + $0x68] sm:$0xff]
    %v3892 = vunpack.c.l.b16 %v3866
    %v3893 = vunpack.c.l.b16 %v3867
    %v3894 = vpack.c.b16 %v3893, %v3892
    %3895 = vrot.lane.b32.xlu0 %v3894, 32
    %v3896 = vpop.permute.xlu0 %3895
    %v3898 = vsel %vm259, %v3896, 0
    %3900 = vmatpush.bf16.msra.mxu0 0
    %3901 = vmatpush.bf16.msra.mxu0 0
    %3902 = vmatpush.bf16.msra.mxu0 0
    %3903 = vmatpush.bf16.msra.mxu0 0
    %3904 = vmatpush.bf16.msra.mxu0 0
    %3905 = vmatpush.bf16.msra.mxu0 0
    %3906 = vmatpush.bf16.msra.mxu0 %v2549
    %3907 = vmatpush.bf16.msra.mxu0 %v2548
    %3908 = vmatmul.bf16.gmra.mxu0 %v3898
    %v3909 = vpop.f32.mrf.mxu0
    %v3910 = vadd.f32 0.0, %v3909
    %v3911 = vpop.f32.mrf.mxu0
    %v3912 = vadd.f32 0.0, %v3911
    %3913 = vdwg.mxu0
    %v3914 = vadd.f32 %v3890, %v3910
    %v3915 = vadd.f32 %v3891, %v3912
    %v3916 = vld [vmem:[#allocation3 + $0x10] sm:$0xff]
    %v3917 = vld [vmem:[#allocation3 + $0x18] sm:$0xff]
    %v3918 = vunpack.c.l.b16 %v3868
    %v3919 = vunpack.c.l.b16 %v3869
    %v3920 = vpack.c.b16 %v3919, %v3918
    %3921 = vrot.lane.b32.xlu0 %v3920, 32
    %v3922 = vpop.permute.xlu0 %3921
    %v3924 = vsel %vm259, %v3922, 0
    %3926 = vmatpush.bf16.msra.mxu0 0
    %3927 = vmatpush.bf16.msra.mxu0 0
    %3928 = vmatpush.bf16.msra.mxu0 0
    %3929 = vmatpush.bf16.msra.mxu0 0
    %3930 = vmatpush.bf16.msra.mxu0 0
    %3931 = vmatpush.bf16.msra.mxu0 0
    %3932 = vmatpush.bf16.msra.mxu0 %v2579
    %3933 = vmatpush.bf16.msra.mxu0 %v2578
    %3934 = vmatmul.bf16.gmra.mxu0 %v3924
    %v3935 = vpop.f32.mrf.mxu0
    %v3936 = vadd.f32 0.0, %v3935
    %v3937 = vpop.f32.mrf.mxu0
    %v3938 = vadd.f32 0.0, %v3937
    %3939 = vdwg.mxu0
    %v3940 = vadd.f32 %v3916, %v3936
    %v3941 = vadd.f32 %v3917, %v3938
    %v3942 = vxor.u32 %v3914, 2147483648
    %v3943 = vxor.u32 %v3915, 2147483648
    %v3944 = vmul.f32 %v3942, 1.442695
    %v3945 = vpow.pop %v3944
    %v3946 = vmul.f32 %v3943, 1.442695
    %v3947 = vpow.pop %v3946
    %v3948 = vadd.f32 %v3945, 1.0
    %v3949 = vadd.f32 %v3947, 1.0
    %v3950 = vrcp.pop %v3948
    %v3951 = vmul.f32 %v3948, %v3950
    %v3952 = vsub.f32 1.0, %v3951
    %v3953 = vmul.f32 %v3950, %v3952
    %v3954 = vadd.f32 %v3950, %v3953
    %vm3955 = vweird.f32 %v3948
    %vm3956 = vweird.f32 %v3950
    %vm3957 = vmor %vm3955, %vm3956
    %v3958 = vsel %vm3957, %v3950, %v3954
    %v3959 = vand.u32 2147483647, %v3948
    %vm3960 = vcmp.eq.f32.partialorder %v3959, 8.507059e+37
    %v3961 = vand.u32 %v3948, 2147483648
    %v3962 = vor.u32 1.1754944e-38, %v3961
    %v3963 = vsel %vm3960, %v3962, %v3958
    %v3964 = vmul.f32 1.0, %v3963
    %v3965 = vrcp.pop %v3949
    %v3966 = vmul.f32 %v3949, %v3965
    %v3967 = vsub.f32 1.0, %v3966
    %v3968 = vmul.f32 %v3965, %v3967
    %v3969 = vadd.f32 %v3965, %v3968
    %vm3970 = vweird.f32 %v3949
    %vm3971 = vweird.f32 %v3965
    %vm3972 = vmor %vm3970, %vm3971
    %v3973 = vsel %vm3972, %v3965, %v3969
    %v3974 = vand.u32 2147483647, %v3949
    %vm3975 = vcmp.eq.f32.partialorder %v3974, 8.507059e+37
    %v3976 = vand.u32 %v3949, 2147483648
    %v3977 = vor.u32 1.1754944e-38, %v3976
    %v3978 = vsel %vm3975, %v3977, %v3973
    %v3979 = vmul.f32 1.0, %v3978
    %v3980 = vtanh.pop %v3914
    %v3981 = vtanh.pop %v3915
    %v3982 = vmul.f32 %v3964, %v3778
    %v3983 = vmul.f32 %v3979, %v3779
    %3986 = vrot.lane.b32.xlu0 %v3980, 64
    %v3987 = vpop.permute.xlu0 %3986
    %3988 = vrot.lane.b32.xlu0 %v3981, 64
    %v3989 = vpop.permute.xlu0 %3988
    %v3992 = vmul.f32 %v3964, %v3987
    %v3993 = vmul.f32 %v3979, %v3989
    %3996 = vrot.lane.b32.xlu0 %v3992, 32
    %v3997 = vpop.permute.xlu0 %3996
    %3998 = vrot.lane.b32.xlu0 %v3993, 32
    %v3999 = vpop.permute.xlu0 %3998
    %v4002 = vadd.f32 %v3982, %v3997
    %v4003 = vadd.f32 %v3983, %v3999
    %v4004 = vtanh.pop %v4002
    %v4005 = vtanh.pop %v4003
    %4008 = vrot.lane.b32.xlu0 %v4004, 64
    %v4009 = vpop.permute.xlu0 %4008
    %4010 = vrot.lane.b32.xlu0 %v4005, 64
    %v4011 = vpop.permute.xlu0 %4010
    %v4014 = vmul.f32 %v3964, %v4009
    %v4015 = vmul.f32 %v3979, %v4011
    %v4016 = vxor.u32 %v3940, 2147483648
    %v4017 = vxor.u32 %v3941, 2147483648
    %v4018 = vmul.f32 %v4016, 1.442695
    %v4019 = vpow.pop %v4018
    %v4020 = vmul.f32 %v4017, 1.442695
    %v4021 = vpow.pop %v4020
    %v4022 = vadd.f32 %v4019, 1.0
    %v4023 = vadd.f32 %v4021, 1.0
    %v4024 = vrcp.pop %v4022
    %v4025 = vmul.f32 %v4022, %v4024
    %v4026 = vsub.f32 1.0, %v4025
    %v4027 = vmul.f32 %v4024, %v4026
    %v4028 = vadd.f32 %v4024, %v4027
    %vm4029 = vweird.f32 %v4022
    %vm4030 = vweird.f32 %v4024
    %vm4031 = vmor %vm4029, %vm4030
    %v4032 = vsel %vm4031, %v4024, %v4028
    %v4033 = vand.u32 2147483647, %v4022
    %vm4034 = vcmp.eq.f32.partialorder %v4033, 8.507059e+37
    %v4035 = vand.u32 %v4022, 2147483648
    %v4036 = vor.u32 1.1754944e-38, %v4035
    %v4037 = vsel %vm4034, %v4036, %v4032
    %v4038 = vmul.f32 1.0, %v4037
    %v4039 = vrcp.pop %v4023
    %v4040 = vmul.f32 %v4023, %v4039
    %v4041 = vsub.f32 1.0, %v4040
    %v4042 = vmul.f32 %v4039, %v4041
    %v4043 = vadd.f32 %v4039, %v4042
    %vm4044 = vweird.f32 %v4023
    %vm4045 = vweird.f32 %v4039
    %vm4046 = vmor %vm4044, %vm4045
    %v4047 = vsel %vm4046, %v4039, %v4043
    %v4048 = vand.u32 2147483647, %v4023
    %vm4049 = vcmp.eq.f32.partialorder %v4048, 8.507059e+37
    %v4050 = vand.u32 %v4023, 2147483648
    %v4051 = vor.u32 1.1754944e-38, %v4050
    %v4052 = vsel %vm4049, %v4051, %v4047
    %v4053 = vmul.f32 1.0, %v4052
    %v4054 = vtanh.pop %v3940
    %v4055 = vtanh.pop %v3941
    %v4056 = vmul.f32 %v4038, %v3852
    %v4057 = vmul.f32 %v4053, %v3853
    %4060 = vrot.lane.b32.xlu0 %v4054, 64
    %v4061 = vpop.permute.xlu0 %4060
    %4062 = vrot.lane.b32.xlu0 %v4055, 64
    %v4063 = vpop.permute.xlu0 %4062
    %v4066 = vmul.f32 %v4038, %v4061
    %v4067 = vmul.f32 %v4053, %v4063
    %4070 = vrot.lane.b32.xlu0 %v4066, 32
    %v4071 = vpop.permute.xlu0 %4070
    %4072 = vrot.lane.b32.xlu0 %v4067, 32
    %v4073 = vpop.permute.xlu0 %4072
    %v4076 = vadd.f32 %v4056, %v4071
    %v4077 = vadd.f32 %v4057, %v4073
    %v4078 = vtanh.pop %v4076
    %v4079 = vtanh.pop %v4077
    %4082 = vrot.lane.b32.xlu0 %v4078, 64
    %v4083 = vpop.permute.xlu0 %4082
    %4084 = vrot.lane.b32.xlu0 %v4079, 64
    %v4085 = vpop.permute.xlu0 %4084
    %v4088 = vmul.f32 %v4038, %v4083
    %v4089 = vmul.f32 %v4053, %v4085
    %v4090 = vpack.c.bf16 %v4014, %v4014
    %v4091 = vpack.c.bf16 %v4015, %v4015
    %v4092 = vpack.c.bf16 %v4088, %v4088
    %v4093 = vpack.c.bf16 %v4089, %v4089
    %4096 = vrot.lane.b32.xlu0 %v4090, 32
    %v4097 = vpop.permute.xlu0 %4096
    %4098 = vrot.lane.b32.xlu0 %v4091, 32
    %v4099 = vpop.permute.xlu0 %4098
    %4102 = vst.msk [vmem:[#allocation4 + $0x30] sm:$0xf] %vm665, %v4097
    %4103 = vst.msk [vmem:[#allocation4 + $0x34] sm:$0xf] %vm665, %v4099
    %4106 = vrot.lane.b32.xlu0 %v4092, 64
    %v4107 = vpop.permute.xlu0 %4106
    %4108 = vrot.lane.b32.xlu0 %v4093, 64
    %v4109 = vpop.permute.xlu0 %4108
    %4112 = vst.msk [vmem:[#allocation4 + $0x8] sm:$0xf] %vm676, %v4107
    %4113 = vst.msk [vmem:[#allocation4 + $0xc] sm:$0xf] %vm676, %v4109
    %v4114 = vld [vmem:[#allocation2 + $0x70] sm:$0xff]
    %v4115 = vld [vmem:[#allocation2 + $0x78] sm:$0xff]
    %v4116 = vunpack.c.l.b16 %v4090
    %v4117 = vunpack.c.l.b16 %v4091
    %v4118 = vpack.c.b16 %v4117, %v4116
    %4119 = vrot.lane.b32.xlu0 %v4118, 32
    %v4120 = vpop.permute.xlu0 %4119
    %v4122 = vsel %vm259, %v4120, 0
    %4124 = vmatpush.bf16.msra.mxu0 0
    %4125 = vmatpush.bf16.msra.mxu0 0
    %4126 = vmatpush.bf16.msra.mxu0 0
    %4127 = vmatpush.bf16.msra.mxu0 0
    %4128 = vmatpush.bf16.msra.mxu0 0
    %4129 = vmatpush.bf16.msra.mxu0 0
    %4130 = vmatpush.bf16.msra.mxu0 %v2549
    %4131 = vmatpush.bf16.msra.mxu0 %v2548
    %4132 = vmatmul.bf16.gmra.mxu0 %v4122
    %v4133 = vpop.f32.mrf.mxu0
    %v4134 = vadd.f32 0.0, %v4133
    %v4135 = vpop.f32.mrf.mxu0
    %v4136 = vadd.f32 0.0, %v4135
    %4137 = vdwg.mxu0
    %v4138 = vadd.f32 %v4114, %v4134
    %v4139 = vadd.f32 %v4115, %v4136
    %v4140 = vld [vmem:[#allocation3] sm:$0xff]
    %v4141 = vld [vmem:[#allocation3 + $0x8] sm:$0xff]
    %v4142 = vunpack.c.l.b16 %v4092
    %v4143 = vunpack.c.l.b16 %v4093
    %v4144 = vpack.c.b16 %v4143, %v4142
    %4145 = vrot.lane.b32.xlu0 %v4144, 32
    %v4146 = vpop.permute.xlu0 %4145
    %v4148 = vsel %vm259, %v4146, 0
    %4150 = vmatpush.bf16.msra.mxu0 0
    %4151 = vmatpush.bf16.msra.mxu0 0
    %4152 = vmatpush.bf16.msra.mxu0 0
    %4153 = vmatpush.bf16.msra.mxu0 0
    %4154 = vmatpush.bf16.msra.mxu0 0
    %4155 = vmatpush.bf16.msra.mxu0 0
    %4156 = vmatpush.bf16.msra.mxu0 %v2579
    %4157 = vmatpush.bf16.msra.mxu0 %v2578
    %4158 = vmatmul.bf16.gmra.mxu0 %v4148
    %v4159 = vpop.f32.mrf.mxu0
    %v4160 = vadd.f32 0.0, %v4159
    %v4161 = vpop.f32.mrf.mxu0
    %v4162 = vadd.f32 0.0, %v4161
    %4163 = vdwg.mxu0
    %v4164 = vadd.f32 %v4140, %v4160
    %v4165 = vadd.f32 %v4141, %v4162
    %v4166 = vxor.u32 %v4138, 2147483648
    %v4167 = vxor.u32 %v4139, 2147483648
    %v4168 = vmul.f32 %v4166, 1.442695
    %v4169 = vpow.pop %v4168
    %v4170 = vmul.f32 %v4167, 1.442695
    %v4171 = vpow.pop %v4170
    %v4172 = vadd.f32 %v4169, 1.0
    %v4173 = vadd.f32 %v4171, 1.0
    %v4174 = vrcp.pop %v4172
    %v4175 = vmul.f32 %v4172, %v4174
    %v4176 = vsub.f32 1.0, %v4175
    %v4177 = vmul.f32 %v4174, %v4176
    %v4178 = vadd.f32 %v4174, %v4177
    %vm4179 = vweird.f32 %v4172
    %vm4180 = vweird.f32 %v4174
    %vm4181 = vmor %vm4179, %vm4180
    %v4182 = vsel %vm4181, %v4174, %v4178
    %v4183 = vand.u32 2147483647, %v4172
    %vm4184 = vcmp.eq.f32.partialorder %v4183, 8.507059e+37
    %v4185 = vand.u32 %v4172, 2147483648
    %v4186 = vor.u32 1.1754944e-38, %v4185
    %v4187 = vsel %vm4184, %v4186, %v4182
    %v4188 = vmul.f32 1.0, %v4187
    %v4189 = vrcp.pop %v4173
    %v4190 = vmul.f32 %v4173, %v4189
    %v4191 = vsub.f32 1.0, %v4190
    %v4192 = vmul.f32 %v4189, %v4191
    %v4193 = vadd.f32 %v4189, %v4192
    %vm4194 = vweird.f32 %v4173
    %vm4195 = vweird.f32 %v4189
    %vm4196 = vmor %vm4194, %vm4195
    %v4197 = vsel %vm4196, %v4189, %v4193
    %v4198 = vand.u32 2147483647, %v4173
    %vm4199 = vcmp.eq.f32.partialorder %v4198, 8.507059e+37
    %v4200 = vand.u32 %v4173, 2147483648
    %v4201 = vor.u32 1.1754944e-38, %v4200
    %v4202 = vsel %vm4199, %v4201, %v4197
    %v4203 = vmul.f32 1.0, %v4202
    %v4204 = vtanh.pop %v4138
    %v4205 = vtanh.pop %v4139
    %v4206 = vmul.f32 %v4188, %v4002
    %v4207 = vmul.f32 %v4203, %v4003
    %4210 = vrot.lane.b32.xlu0 %v4204, 64
    %v4211 = vpop.permute.xlu0 %4210
    %4212 = vrot.lane.b32.xlu0 %v4205, 64
    %v4213 = vpop.permute.xlu0 %4212
    %v4216 = vmul.f32 %v4188, %v4211
    %v4217 = vmul.f32 %v4203, %v4213
    %4220 = vrot.lane.b32.xlu0 %v4216, 32
    %v4221 = vpop.permute.xlu0 %4220
    %4222 = vrot.lane.b32.xlu0 %v4217, 32
    %v4223 = vpop.permute.xlu0 %4222
    %v4226 = vadd.f32 %v4206, %v4221
    %v4227 = vadd.f32 %v4207, %v4223
    %v4228 = vtanh.pop %v4226
    %v4229 = vtanh.pop %v4227
    %4232 = vrot.lane.b32.xlu0 %v4228, 64
    %v4233 = vpop.permute.xlu0 %4232
    %4234 = vrot.lane.b32.xlu0 %v4229, 64
    %v4235 = vpop.permute.xlu0 %4234
    %v4238 = vmul.f32 %v4188, %v4233
    %v4239 = vmul.f32 %v4203, %v4235
    %v4240 = vxor.u32 %v4164, 2147483648
    %v4241 = vxor.u32 %v4165, 2147483648
    %v4242 = vmul.f32 %v4240, 1.442695
    %v4243 = vpow.pop %v4242
    %v4244 = vmul.f32 %v4241, 1.442695
    %v4245 = vpow.pop %v4244
    %v4246 = vadd.f32 %v4243, 1.0
    %v4247 = vadd.f32 %v4245, 1.0
    %v4248 = vrcp.pop %v4246
    %v4249 = vmul.f32 %v4246, %v4248
    %v4250 = vsub.f32 1.0, %v4249
    %v4251 = vmul.f32 %v4248, %v4250
    %v4252 = vadd.f32 %v4248, %v4251
    %vm4253 = vweird.f32 %v4246
    %vm4254 = vweird.f32 %v4248
    %vm4255 = vmor %vm4253, %vm4254
    %v4256 = vsel %vm4255, %v4248, %v4252
    %v4257 = vand.u32 2147483647, %v4246
    %vm4258 = vcmp.eq.f32.partialorder %v4257, 8.507059e+37
    %v4259 = vand.u32 %v4246, 2147483648
    %v4260 = vor.u32 1.1754944e-38, %v4259
    %v4261 = vsel %vm4258, %v4260, %v4256
    %v4262 = vmul.f32 1.0, %v4261
    %v4263 = vrcp.pop %v4247
    %v4264 = vmul.f32 %v4247, %v4263
    %v4265 = vsub.f32 1.0, %v4264
    %v4266 = vmul.f32 %v4263, %v4265
    %v4267 = vadd.f32 %v4263, %v4266
    %vm4268 = vweird.f32 %v4247
    %vm4269 = vweird.f32 %v4263
    %vm4270 = vmor %vm4268, %vm4269
    %v4271 = vsel %vm4270, %v4263, %v4267
    %v4272 = vand.u32 2147483647, %v4247
    %vm4273 = vcmp.eq.f32.partialorder %v4272, 8.507059e+37
    %v4274 = vand.u32 %v4247, 2147483648
    %v4275 = vor.u32 1.1754944e-38, %v4274
    %v4276 = vsel %vm4273, %v4275, %v4271
    %v4277 = vmul.f32 1.0, %v4276
    %v4278 = vtanh.pop %v4164
    %v4279 = vtanh.pop %v4165
    %v4280 = vmul.f32 %v4262, %v4076
    %v4281 = vmul.f32 %v4277, %v4077
    %4284 = vrot.lane.b32.xlu0 %v4278, 64
    %v4285 = vpop.permute.xlu0 %4284
    %4286 = vrot.lane.b32.xlu0 %v4279, 64
    %v4287 = vpop.permute.xlu0 %4286
    %v4290 = vmul.f32 %v4262, %v4285
    %v4291 = vmul.f32 %v4277, %v4287
    %4294 = vrot.lane.b32.xlu0 %v4290, 32
    %v4295 = vpop.permute.xlu0 %4294
    %4296 = vrot.lane.b32.xlu0 %v4291, 32
    %v4297 = vpop.permute.xlu0 %4296
    %v4300 = vadd.f32 %v4280, %v4295
    %v4301 = vadd.f32 %v4281, %v4297
    %v4302 = vtanh.pop %v4300
    %v4303 = vtanh.pop %v4301
    %4306 = vrot.lane.b32.xlu0 %v4302, 64
    %v4307 = vpop.permute.xlu0 %4306
    %4308 = vrot.lane.b32.xlu0 %v4303, 64
    %v4309 = vpop.permute.xlu0 %4308
    %v4312 = vmul.f32 %v4262, %v4307
    %v4313 = vmul.f32 %v4277, %v4309
    %v4314 = vpack.c.bf16 %v4238, %v4238
    %v4315 = vpack.c.bf16 %v4239, %v4239
    %v4316 = vpack.c.bf16 %v4312, %v4312
    %v4317 = vpack.c.bf16 %v4313, %v4313
    %4320 = vrot.lane.b32.xlu0 %v4314, 32
    %v4321 = vpop.permute.xlu0 %4320
    %4322 = vrot.lane.b32.xlu0 %v4315, 32
    %v4323 = vpop.permute.xlu0 %4322
    %4326 = vst.msk [vmem:[#allocation4 + $0x38] sm:$0xf] %vm665, %v4321
    %4327 = vst.msk [vmem:[#allocation4 + $0x3c] sm:$0xf] %vm665, %v4323
    %4330 = vrot.lane.b32.xlu0 %v4316, 64
    %v4331 = vpop.permute.xlu0 %4330
    %4332 = vrot.lane.b32.xlu0 %v4317, 64
    %v4333 = vpop.permute.xlu0 %4332
    %4336 = vst.msk [vmem:[#allocation4] sm:$0xf] %vm676, %v4331
    %4337 = vst.msk [vmem:[#allocation4 + $0x4] sm:$0xf] %vm676, %v4333
    %v4338 = vld [vmem:[#allocation4] sm:$0xf]
    %v4339 = vld [vmem:[#allocation4 + $0x4] sm:$0xf]
    %v4340 = vld [vmem:[#allocation4 + $0x8] sm:$0xf]
    %v4341 = vld [vmem:[#allocation4 + $0xc] sm:$0xf]
    %v4342 = vld [vmem:[#allocation4 + $0x10] sm:$0xf]
    %v4343 = vld [vmem:[#allocation4 + $0x14] sm:$0xf]
    %v4344 = vld [vmem:[#allocation4 + $0x18] sm:$0xf]
    %v4345 = vld [vmem:[#allocation4 + $0x1c] sm:$0xf]
    %v4346 = vld [vmem:[#allocation4 + $0x20] sm:$0xf]
    %v4347 = vld [vmem:[#allocation4 + $0x24] sm:$0xf]
    %v4348 = vld [vmem:[#allocation4 + $0x28] sm:$0xf]
    %v4349 = vld [vmem:[#allocation4 + $0x2c] sm:$0xf]
    %v4350 = vld [vmem:[#allocation4 + $0x30] sm:$0xf]
    %v4351 = vld [vmem:[#allocation4 + $0x34] sm:$0xf]
    %v4352 = vld [vmem:[#allocation4 + $0x38] sm:$0xf]
    %v4353 = vld [vmem:[#allocation4 + $0x3c] sm:$0xf]
    %v4354 = vunpack.c.l.bf16 %v4338
    %v4355 = vunpack.c.l.bf16 %v4339
    %v4356 = vunpack.c.l.bf16 %v4340
    %v4357 = vunpack.c.l.bf16 %v4341
    %v4358 = vunpack.c.l.bf16 %v4342
    %v4359 = vunpack.c.l.bf16 %v4343
    %v4360 = vunpack.c.l.bf16 %v4344
    %v4361 = vunpack.c.l.bf16 %v4345
    %v4362 = vunpack.c.l.bf16 %v4346
    %v4363 = vunpack.c.l.bf16 %v4347
    %v4364 = vunpack.c.l.bf16 %v4348
    %v4365 = vunpack.c.l.bf16 %v4349
    %v4366 = vunpack.c.l.bf16 %v4350
    %v4367 = vunpack.c.l.bf16 %v4351
    %v4368 = vunpack.c.l.bf16 %v4352
    %v4369 = vunpack.c.l.bf16 %v4353
    %4386 = vrot.lane.b32.xlu0 %v4354, 96
    %v4387 = vpop.permute.xlu0 %4386
    %4388 = vrot.lane.b32.xlu0 %v4355, 96
    %v4389 = vpop.permute.xlu0 %4388
    %4390 = vrot.lane.b32.xlu0 %v4356, 96
    %v4391 = vpop.permute.xlu0 %4390
    %4392 = vrot.lane.b32.xlu0 %v4357, 96
    %v4393 = vpop.permute.xlu0 %4392
    %4394 = vrot.lane.b32.xlu0 %v4358, 96
    %v4395 = vpop.permute.xlu0 %4394
    %4396 = vrot.lane.b32.xlu0 %v4359, 96
    %v4397 = vpop.permute.xlu0 %4396
    %4398 = vrot.lane.b32.xlu0 %v4360, 96
    %v4399 = vpop.permute.xlu0 %4398
    %4400 = vrot.lane.b32.xlu0 %v4361, 96
    %v4401 = vpop.permute.xlu0 %4400
    %4402 = vrot.lane.b32.xlu0 %v4362, 96
    %v4403 = vpop.permute.xlu0 %4402
    %4404 = vrot.lane.b32.xlu0 %v4363, 96
    %v4405 = vpop.permute.xlu0 %4404
    %4406 = vrot.lane.b32.xlu0 %v4364, 96
    %v4407 = vpop.permute.xlu0 %4406
    %4408 = vrot.lane.b32.xlu0 %v4365, 96
    %v4409 = vpop.permute.xlu0 %4408
    %4410 = vrot.lane.b32.xlu0 %v4366, 96
    %v4411 = vpop.permute.xlu0 %4410
    %4412 = vrot.lane.b32.xlu0 %v4367, 96
    %v4413 = vpop.permute.xlu0 %4412
    %4414 = vrot.lane.b32.xlu0 %v4368, 96
    %v4415 = vpop.permute.xlu0 %4414
    %4416 = vrot.lane.b32.xlu0 %v4369, 96
    %v4417 = vpop.permute.xlu0 %4416
    %v4434 = vadd.f32 %v4354, %v4387
    %v4435 = vadd.f32 %v4355, %v4389
    %v4436 = vadd.f32 %v4356, %v4391
    %v4437 = vadd.f32 %v4357, %v4393
    %v4438 = vadd.f32 %v4358, %v4395
    %v4439 = vadd.f32 %v4359, %v4397
    %v4440 = vadd.f32 %v4360, %v4399
    %v4441 = vadd.f32 %v4361, %v4401
    %v4442 = vadd.f32 %v4362, %v4403
    %v4443 = vadd.f32 %v4363, %v4405
    %v4444 = vadd.f32 %v4364, %v4407
    %v4445 = vadd.f32 %v4365, %v4409
    %v4446 = vadd.f32 %v4366, %v4411
    %v4447 = vadd.f32 %v4367, %v4413
    %v4448 = vadd.f32 %v4368, %v4415
    %v4449 = vadd.f32 %v4369, %v4417
    %v4450 = vpack.c.bf16 %v4435, %v4434
    %v4451 = vpack.c.bf16 %v4437, %v4436
    %v4452 = vpack.c.bf16 %v4439, %v4438
    %v4453 = vpack.c.bf16 %v4441, %v4440
    %v4454 = vpack.c.bf16 %v4443, %v4442
    %v4455 = vpack.c.bf16 %v4445, %v4444
    %v4456 = vpack.c.bf16 %v4447, %v4446
    %v4457 = vpack.c.bf16 %v4449, %v4448
    %v4458 = vld [vmem:[#allocation17] sm:$0xf]
    %v4459 = vld [vmem:[#allocation17 + $0x4] sm:$0xf]
    %v4460 = vld [vmem:[#allocation17 + $0x8] sm:$0xf]
    %v4461 = vld [vmem:[#allocation17 + $0xc] sm:$0xf]
    %v4462 = vld [vmem:[%s14] sm:$0x1]
    %v4464 = vperm.slane %v4462, 0
    %v4470 = vunpack.c.l.b16 %v4458
    %v4471 = vunpack.c.l.b16 %v4459
    %v4472 = vunpack.c.l.b16 %v4460
    %v4473 = vunpack.c.l.b16 %v4461
    %v4474 = vpack.c.b16 %v4471, %v4470
    %v4475 = vpack.c.b16 %v4473, %v4472
    %v4479 = vsel %vm259, %v4450, 0
    %v4482 = vsel %vm259, %v4451, 0
    %v4485 = vsel %vm259, %v4452, 0
    %v4488 = vsel %vm259, %v4453, 0
    %v4491 = vsel %vm259, %v4454, 0
    %v4494 = vsel %vm259, %v4455, 0
    %v4497 = vsel %vm259, %v4456, 0
    %v4500 = vsel %vm259, %v4457, 0
    %4502 = vmatpush.bf16.msra.mxu0 0
    %4503 = vmatpush.bf16.msra.mxu0 0
    %4504 = vmatpush.bf16.msra.mxu0 0
    %4505 = vmatpush.bf16.msra.mxu0 0
    %4506 = vmatpush.bf16.msra.mxu0 0
    %4507 = vmatpush.bf16.msra.mxu0 0
    %4508 = vmatpush.bf16.msra.mxu0 %v4475
    %4509 = vmatpush.bf16.msra.mxu0 %v4474
    %4510 = vmatmul.bf16.gmra.mxu0 %v4479
    %v4511 = vpop.f32.mrf.mxu0
    %v4512 = vadd.f32 %v4464, %v4511
    %v4513 = vpop.f32.mrf.mxu0
    %v4514 = vadd.f32 %v4464, %v4513
    %4515 = vmatmul.bf16.gmra.mxu0 %v4482
    %v4516 = vpop.f32.mrf.mxu0
    %v4517 = vadd.f32 %v4464, %v4516
    %v4518 = vpop.f32.mrf.mxu0
    %v4519 = vadd.f32 %v4464, %v4518
    %4520 = vmatmul.bf16.gmra.mxu0 %v4485
    %v4521 = vpop.f32.mrf.mxu0
    %v4522 = vadd.f32 %v4464, %v4521
    %v4523 = vpop.f32.mrf.mxu0
    %v4524 = vadd.f32 %v4464, %v4523
    %4525 = vmatmul.bf16.gmra.mxu0 %v4488
    %v4526 = vpop.f32.mrf.mxu0
    %v4527 = vadd.f32 %v4464, %v4526
    %v4528 = vpop.f32.mrf.mxu0
    %v4529 = vadd.f32 %v4464, %v4528
    %4530 = vmatmul.bf16.gmra.mxu0 %v4491
    %v4531 = vpop.f32.mrf.mxu0
    %v4532 = vadd.f32 %v4464, %v4531
    %v4533 = vpop.f32.mrf.mxu0
    %v4534 = vadd.f32 %v4464, %v4533
    %4535 = vmatmul.bf16.gmra.mxu0 %v4494
    %v4536 = vpop.f32.mrf.mxu0
    %v4537 = vadd.f32 %v4464, %v4536
    %v4538 = vpop.f32.mrf.mxu0
    %v4539 = vadd.f32 %v4464, %v4538
    %4540 = vmatmul.bf16.gmra.mxu0 %v4497
    %v4541 = vpop.f32.mrf.mxu0
    %v4542 = vadd.f32 %v4464, %v4541
    %v4543 = vpop.f32.mrf.mxu0
    %v4544 = vadd.f32 %v4464, %v4543
    %4545 = vmatmul.bf16.gmra.mxu0 %v4500
    %v4546 = vpop.f32.mrf.mxu0
    %v4547 = vadd.f32 %v4464, %v4546
    %v4548 = vpop.f32.mrf.mxu0
    %v4549 = vadd.f32 %v4464, %v4548
    %4550 = vdwg.mxu0
    %v4551 = vmax.f32 %v4512, 0.0
    %v4552 = vmax.f32 %v4514, 0.0
    %v4553 = vmax.f32 %v4517, 0.0
    %v4554 = vmax.f32 %v4519, 0.0
    %v4555 = vmax.f32 %v4522, 0.0
    %v4556 = vmax.f32 %v4524, 0.0
    %v4557 = vmax.f32 %v4527, 0.0
    %v4558 = vmax.f32 %v4529, 0.0
    %v4559 = vmax.f32 %v4532, 0.0
    %v4560 = vmax.f32 %v4534, 0.0
    %v4561 = vmax.f32 %v4537, 0.0
    %v4562 = vmax.f32 %v4539, 0.0
    %v4563 = vmax.f32 %v4542, 0.0
    %v4564 = vmax.f32 %v4544, 0.0
    %v4565 = vmax.f32 %v4547, 0.0
    %v4566 = vmax.f32 %v4549, 0.0
    %v4567 = vpack.c.bf16 %v4552, %v4551
    %v4568 = vpack.c.bf16 %v4554, %v4553
    %v4569 = vpack.c.bf16 %v4556, %v4555
    %v4570 = vpack.c.bf16 %v4558, %v4557
    %v4571 = vpack.c.bf16 %v4560, %v4559
    %v4572 = vpack.c.bf16 %v4562, %v4561
    %v4573 = vpack.c.bf16 %v4564, %v4563
    %v4574 = vpack.c.bf16 %v4566, %v4565
    %v4575 = vld [vmem:[%s15] sm:$0xf]
    %v4576 = vld [vmem:[%s15 + $0x4] sm:$0xf]
    %v4577 = vld [vmem:[%s15 + $0x8] sm:$0xf]
    %v4578 = vld [vmem:[%s15 + $0xc] sm:$0xf]
    %v4579 = vld [vmem:[%s15 + $0x10] sm:$0xf]
    %v4580 = vld [vmem:[%s15 + $0x14] sm:$0xf]
    %v4581 = vld [vmem:[%s15 + $0x18] sm:$0xf]
    %v4582 = vld [vmem:[%s15 + $0x1c] sm:$0xf]
    %v4583 = vld [vmem:[%s15 + $0x20] sm:$0xf]
    %v4584 = vld [vmem:[%s15 + $0x24] sm:$0xf]
    %v4585 = vld [vmem:[%s15 + $0x28] sm:$0xf]
    %v4586 = vld [vmem:[%s15 + $0x2c] sm:$0xf]
    %v4587 = vld [vmem:[%s15 + $0x30] sm:$0xf]
    %v4588 = vld [vmem:[%s15 + $0x34] sm:$0xf]
    %v4589 = vld [vmem:[%s15 + $0x38] sm:$0xf]
    %v4590 = vld [vmem:[%s15 + $0x3c] sm:$0xf]
    %v4591 = vld [vmem:[%s16] sm:$0x1]
    %v4593 = vperm.slane %v4591, 0
    %v4611 = vunpack.c.l.b16 %v4575
    %v4612 = vunpack.c.l.b16 %v4576
    %v4613 = vunpack.c.l.b16 %v4577
    %v4614 = vunpack.c.l.b16 %v4578
    %v4615 = vunpack.c.l.b16 %v4579
    %v4616 = vunpack.c.l.b16 %v4580
    %v4617 = vunpack.c.l.b16 %v4581
    %v4618 = vunpack.c.l.b16 %v4582
    %v4619 = vunpack.c.l.b16 %v4583
    %v4620 = vunpack.c.l.b16 %v4584
    %v4621 = vunpack.c.l.b16 %v4585
    %v4622 = vunpack.c.l.b16 %v4586
    %v4623 = vunpack.c.l.b16 %v4587
    %v4624 = vunpack.c.l.b16 %v4588
    %v4625 = vunpack.c.l.b16 %v4589
    %v4626 = vunpack.c.l.b16 %v4590
    %v4627 = vpack.c.b16 %v4612, %v4611
    %v4628 = vpack.c.b16 %v4614, %v4613
    %v4629 = vpack.c.b16 %v4616, %v4615
    %v4630 = vpack.c.b16 %v4618, %v4617
    %v4631 = vpack.c.b16 %v4620, %v4619
    %v4632 = vpack.c.b16 %v4622, %v4621
    %v4633 = vpack.c.b16 %v4624, %v4623
    %v4634 = vpack.c.b16 %v4626, %v4625
    %4643 = vmatpush.bf16.msra.mxu0 %v4634
    %4644 = vmatpush.bf16.msra.mxu0 %v4633
    %4645 = vmatpush.bf16.msra.mxu0 %v4632
    %4646 = vmatpush.bf16.msra.mxu0 %v4631
    %4647 = vmatpush.bf16.msra.mxu0 %v4630
    %4648 = vmatpush.bf16.msra.mxu0 %v4629
    %4649 = vmatpush.bf16.msra.mxu0 %v4628
    %4650 = vmatpush.bf16.msra.mxu0 %v4627
    %4651 = vmatmul.bf16.gmra.mxu0 %v4567
    %v4652 = vpop.f32.mrf.mxu0
    %v4653 = vadd.f32 %v4593, %v4652
    %v4654 = vpop.f32.mrf.mxu0
    %v4655 = vadd.f32 %v4593, %v4654
    %4656 = vmatmul.bf16.gmra.mxu0 %v4568
    %v4657 = vpop.f32.mrf.mxu0
    %v4658 = vadd.f32 %v4593, %v4657
    %v4659 = vpop.f32.mrf.mxu0
    %v4660 = vadd.f32 %v4593, %v4659
    %4661 = vmatmul.bf16.gmra.mxu0 %v4569
    %v4662 = vpop.f32.mrf.mxu0
    %v4663 = vadd.f32 %v4593, %v4662
    %v4664 = vpop.f32.mrf.mxu0
    %v4665 = vadd.f32 %v4593, %v4664
    %4666 = vmatmul.bf16.gmra.mxu0 %v4570
    %v4667 = vpop.f32.mrf.mxu0
    %v4668 = vadd.f32 %v4593, %v4667
    %v4669 = vpop.f32.mrf.mxu0
    %v4670 = vadd.f32 %v4593, %v4669
    %4671 = vmatmul.bf16.gmra.mxu0 %v4571
    %v4672 = vpop.f32.mrf.mxu0
    %v4673 = vadd.f32 %v4593, %v4672
    %v4674 = vpop.f32.mrf.mxu0
    %v4675 = vadd.f32 %v4593, %v4674
    %4676 = vmatmul.bf16.gmra.mxu0 %v4572
    %v4677 = vpop.f32.mrf.mxu0
    %v4678 = vadd.f32 %v4593, %v4677
    %v4679 = vpop.f32.mrf.mxu0
    %v4680 = vadd.f32 %v4593, %v4679
    %4681 = vmatmul.bf16.gmra.mxu0 %v4573
    %v4682 = vpop.f32.mrf.mxu0
    %v4683 = vadd.f32 %v4593, %v4682
    %v4684 = vpop.f32.mrf.mxu0
    %v4685 = vadd.f32 %v4593, %v4684
    %4686 = vmatmul.bf16.gmra.mxu0 %v4574
    %v4687 = vpop.f32.mrf.mxu0
    %v4688 = vadd.f32 %v4593, %v4687
    %v4689 = vpop.f32.mrf.mxu0
    %v4690 = vadd.f32 %v4593, %v4689
    %4691 = vdwg.mxu0
    %4692 = vst [vmem:[#allocation19] sm:$0xff] %v4653
    %4693 = vst [vmem:[#allocation19 + $0x8] sm:$0xff] %v4655
    %4694 = vst [vmem:[#allocation19 + $0x10] sm:$0xff] %v4658
    %4695 = vst [vmem:[#allocation19 + $0x18] sm:$0xff] %v4660
    %4696 = vst [vmem:[#allocation19 + $0x20] sm:$0xff] %v4663
    %4697 = vst [vmem:[#allocation19 + $0x28] sm:$0xff] %v4665
    %4698 = vst [vmem:[#allocation19 + $0x30] sm:$0xff] %v4668
    %4699 = vst [vmem:[#allocation19 + $0x38] sm:$0xff] %v4670
    %4700 = vst [vmem:[#allocation19 + $0x40] sm:$0xff] %v4673
    %4701 = vst [vmem:[#allocation19 + $0x48] sm:$0xff] %v4675
    %4702 = vst [vmem:[#allocation19 + $0x50] sm:$0xff] %v4678
    %4703 = vst [vmem:[#allocation19 + $0x58] sm:$0xff] %v4680
    %4704 = vst [vmem:[#allocation19 + $0x60] sm:$0xff] %v4683
    %4705 = vst [vmem:[#allocation19 + $0x68] sm:$0xff] %v4685
    %4706 = vst [vmem:[#allocation19 + $0x70] sm:$0xff] %v4688
    %4707 = vst [vmem:[#allocation19 + $0x78] sm:$0xff] %v4690
    // Predicated region
    $region102: #{tpu_custom_call.1} parent=1 // pred_check
      _
    $region103: #{tpu_custom_call.1} parent=1 // pred_check_branch
      %4709 = sbr.rel (0) target = $region105
    $region104: #{tpu_custom_call.1} parent=1 // pred_region
      %4711 = vsyncadd [#allocation7], 0
      %s4712 = sshll.u32 [#allocation19], 4
      %s4713 = int_to_ptr.vmem [resolvable:$true] %s4712
      %s4714 = sshll.u32 %s17, 4
      %s4715 = int_to_ptr.hbm [resolvable:$true] %s4714
      %4720 = dma.vmem_to_hbm [thread:$0]  %s4713, 2048, %s4715, [#allocation7], 128, 128, 8
    $region105: #{tpu_custom_call.1} parent=1 // pred_fallthru
      _
    // Predicated region
    $region106: #{tpu_custom_call.1} parent=1 // pred_check
      _
    $region107: #{tpu_custom_call.1} parent=1 // pred_check_branch
      %4722 = sbr.rel (0) target = $region109
    $region108: #{tpu_custom_call.1} parent=1 // pred_region
      %4724 = dma.done [#allocation7], 2048
    $region109: #{tpu_custom_call.1} parent=1 // pred_fallthru
      _
    %4725 = vsyncpa [#allocation6], 1
    %4726 = vsyncpa [#allocation9], 1
    %4727 = vsyncpa [#allocation12], 1
    %4728 = vsyncpa [#allocation15], 1
    %4729 = vsyncpa [#allocation18], 1
    %4730 = vsyncpa [#allocation7], 1

</llo_original>
